<compile_context>
chip_gen: v6e
topology: v6e:2x2x1
jax: 0.10.0
libtpu: 0.0.40
codegen_flags: <defaults>
</compile_context>

<pallas_src>
import functools

import jax
import jax.numpy as jnp
from jax import lax
from jax.experimental import pallas as pl
from jax.experimental.pallas import tpu as pltpu

_BN_EPS = 1e-5
_MAX_TL = 32768                  # cap on lane-tile width (bounds in-kernel unroll)
_SEG_VREG_BYTES = 256 * 1024     # target live bytes per in-kernel segment (~vreg file)
_DEFAULT_BLOCK_BYTES = 4 * 1024 * 1024   # ~4 MiB x block: amortizes ~0.35us/step on all gens


def _tpu_vmem_capacity_bytes():
    try:
        return int(pltpu.get_tpu_info().vmem_capacity_bytes)
    except Exception:
        return 64 * 1024 * 1024  # conservative (v7x-sized) fallback


def _choose_tiles(L, C, itemsize, target_block_bytes):
    """Pick (TL, SW, need_mask): lane-tile width, in-kernel segment width, ragged flag."""
    if L <= 128:
        return L, L, False
    # segment width: keep a (C, SW) f32 segment around one vreg-file worth of data
    sw = 128
    for cand in (512, 256):
        if C * cand * 4 <= _SEG_VREG_BYTES:
            sw = cand
            break
    max_tl = (L // sw) * sw
    if max_tl == 0:
        sw = 128
        max_tl = (L // 128) * 128
    want = (target_block_bytes // max(1, C * itemsize)) // sw * sw
    tl = max(sw, min(max_tl, min(want, _MAX_TL)))
    if L % tl == 0:
        return tl, sw, False
    # prefer an exact divisor of L (multiple of sw) close to the target -> no masking
    t = tl
    while t >= sw:
        if L % t == 0:
            break
        t -= sw
    if t >= sw and L % t == 0 and t >= tl // 2:
        return t, sw, False
    return tl, sw, True


def _make_channel_kernel(C, TL, SW, L, need_mask):
    """Pass 1: ca = sigmoid(MLP(mean_L(x)) + MLP(max_L(x))) per batch row."""
    nseg = TL // SW
    inv_L = 1.0 / L

    def kernel(x_ref, w1_ref, w2_ref, ca_ref, sum_sc, max_sc):
        l = pl.program_id(1)

        @pl.when(l == 0)
        def _init():
            sum_sc[...] = jnp.zeros_like(sum_sc)
            max_sc[...] = jnp.full_like(max_sc, -jnp.inf)

        # Per-tile path is VPU-only: lane-partial (C, SW) accumulators; the single
        # cross-lane (XLU) reduce is deferred to the finalize step.
        for i in range(nseg):
            xs = x_ref[0, :, i * SW:(i + 1) * SW].astype(jnp.float32)      # (C, SW)
            if need_mask:
                pos = l * TL + i * SW + lax.broadcasted_iota(jnp.int32, (1, SW), 1)
                valid = pos < L
                x_sum = jnp.where(valid, xs, 0.0)
                x_max = jnp.where(valid, xs, -jnp.inf)
            else:
                x_sum = xs
                x_max = xs
            sum_sc[...] = sum_sc[...] + x_sum
            max_sc[...] = jnp.maximum(max_sc[...], x_max)

        @pl.when(l == pl.num_programs(1) - 1)
        def _finalize():
            mean_c = jnp.sum(sum_sc[...], axis=-1, keepdims=True) * inv_L  # (C, 1)
            max_c = jnp.max(max_sc[...], axis=-1, keepdims=True)           # (C, 1)
            v = jnp.concatenate([mean_c, max_c], axis=-1)                  # (C, 2)
            w1 = w1_ref[...]                                               # (Cr, C)
            w2 = w2_ref[...]                                               # (C, Cr)
            h = jnp.maximum(jnp.dot(w1, v, preferred_element_type=jnp.float32), 0.0)
            z = jnp.dot(w2, h, preferred_element_type=jnp.float32)         # (C, 2)
            ca = jax.nn.sigmoid(z[:, 0:1] + z[:, 1:2])                     # (C, 1)
            ca_ref[...] = ca.reshape(1, C, 1)

    return kernel


def _make_spatial_stats_kernel(C, TL, SW, L, need_mask):
    """Pass 2: per-b shifted one-pass moments (k, sum(s-k), sum((s-k)^2)) of s."""
    nseg = TL // SW
    inv_C = 1.0 / C
    inv_SW = 1.0 / SW

    def kernel(x_ref, ca_ref, wsa_ref, k_ref, sd_ref, sd2_ref, k_sc, sd_sc, sd2_sc):
        l = pl.program_id(1)

        @pl.when(l == 0)
        def _init():
            sd_sc[...] = jnp.zeros_like(sd_sc)
            sd2_sc[...] = jnp.zeros_like(sd2_sc)

        ca = ca_ref[0]                       # (C, 1) f32
        w_max = wsa_ref[0]
        w_mean = wsa_ref[1]

        d_acc = jnp.zeros(sd_sc.shape, jnp.float32)     # (1, SW) lane partials
        d2_acc = jnp.zeros(sd2_sc.shape, jnp.float32)
        for i in range(nseg):
            x1 = x_ref[0, :, i * SW:(i + 1) * SW].astype(jnp.float32) * ca  # (C, SW)
            mean_s = jnp.sum(x1, axis=0, keepdims=True) * inv_C             # (1, SW)
            max_s = jnp.max(x1, axis=0, keepdims=True)                      # (1, SW)
            s = w_max * max_s + w_mean * mean_s                             # (1, SW)
            if i == 0:
                # Shift for a numerically stable one-pass variance: K_b = mean of the
                # very first segment of this batch row (first tile is always full).
                @pl.when(l == 0)
                def _set_shift():
                    k_sc[...] = jnp.sum(s, keepdims=True) * inv_SW
            d = s - k_sc[...]
            if need_mask:
                pos = l * TL + i * SW + lax.broadcasted_iota(jnp.int32, (1, SW), 1)
                d = jnp.where(pos < L, d, 0.0)
            d_acc = d_acc + d
            d2_acc = d2_acc + d * d
        sd_sc[...] = sd_sc[...] + d_acc
        sd2_sc[...] = sd2_sc[...] + d2_acc

        @pl.when(l == pl.num_programs(1) - 1)
        def _finalize():
            k_ref[...] = k_sc[...].reshape(1, 1, 1)
            sd_ref[...] = jnp.sum(sd_sc[...], keepdims=True).reshape(1, 1, 1)
            sd2_ref[...] = jnp.sum(sd2_sc[...], keepdims=True).reshape(1, 1, 1)

    return kernel


def _make_apply_kernel(C, TL, SW):
    """Pass 3: o = (x*ca) * sigmoid(relu(s*scale + shift)), lane-dense output tiles."""
    nseg = TL // SW
    inv_C = 1.0 / C

    def kernel(x_ref, ca_ref, wsa_ref, bn_ref, o_ref):
        ca = ca_ref[0]                       # (C, 1)
        w_max = wsa_ref[0]
        w_mean = wsa_ref[1]
        scale = bn_ref[0]
        shift = bn_ref[1]
        for i in range(nseg):
            sl = slice(i * SW, (i + 1) * SW)
            x1 = x_ref[0, :, sl].astype(jnp.float32) * ca                   # (C, SW)
            mean_s = jnp.sum(x1, axis=0, keepdims=True) * inv_C             # (1, SW)
            max_s = jnp.max(x1, axis=0, keepdims=True)
            s = w_max * max_s + w_mean * mean_s                             # (1, SW)
            sa = jax.nn.sigmoid(jnp.maximum(s * scale + shift, 0.0))        # (1, SW)
            o_ref[0, :, sl] = (x1 * sa).astype(o_ref.dtype)
            # OOB lanes of a ragged last tile hold garbage but are dropped on writeback.

    return kernel


@functools.partial(jax.jit, static_argnames=("max_block_bytes",))
def cbam_attention(x, w1, w2, w_sa, bn_gamma_beta, max_block_bytes=None):
    """CBAM forward (NCL layout), matching the torch module (training-mode BatchNorm).

    x             : (B, C, L)  f32 or bf16
    w1            : (C//ratio, C)  ChannelAttention mlp[0] Conv1d weight (squeezed)
    w2            : (C, C//ratio)  ChannelAttention mlp[2] Conv1d weight (squeezed)
    w_sa          : (2,)           SpatialAttention conv1 weight [w_max, w_mean]
    bn_gamma_beta : (2,)           BatchNorm1d(1) [gamma, beta]
    """
    B, C, L = x.shape
    Cr = w1.shape[0]
    itemsize = x.dtype.itemsize

    vmem_cap = _tpu_vmem_capacity_bytes()
    vmem_limit = int(min(0.75 * vmem_cap, 96 * 1024 * 1024))   # 48 MiB on v7x, 96 on v5e/v6e
    target = _DEFAULT_BLOCK_BYTES if max_block_bytes is None else int(max_block_bytes)
    TL, SW, need_mask = _choose_tiles(L, C, itemsize, target)
    n_l = pl.cdiv(L, TL)

    w1 = jnp.asarray(w1, jnp.float32)
    w2 = jnp.asarray(w2, jnp.float32)
    w_sa = jnp.asarray(w_sa, jnp.float32)
    bn_gamma_beta = jnp.asarray(bn_gamma_beta, jnp.float32)

    reduce_params = pltpu.CompilerParams(
        dimension_semantics=("parallel", "arbitrary"),
        vmem_limit_bytes=vmem_limit)

    # ---- Pass 1: channel attention weights ca (B, C, 1) ----
    ca = pl.pallas_call(
        _make_channel_kernel(C, TL, SW, L, need_mask),
        out_shape=jax.ShapeDtypeStruct((B, C, 1), jnp.float32),
        grid=(B, n_l),
        in_specs=[
            pl.BlockSpec((1, C, TL), lambda b, l: (b, 0, l)),
            pl.BlockSpec((Cr, C), lambda b, l: (0, 0)),
            pl.BlockSpec((C, Cr), lambda b, l: (0, 0)),
        ],
        out_specs=pl.BlockSpec((1, C, 1), lambda b, l: (b, 0, 0)),
        scratch_shapes=[pltpu.VMEM((C, SW), jnp.float32),
                        pltpu.VMEM((C, SW), jnp.float32)],
        compiler_params=reduce_params,
        cost_estimate=pl.CostEstimate(
            flops=int(2 * B * C * L + 8 * B * C * Cr),
            transcendentals=int(B * C),
            bytes_accessed=int(B * C * L * itemsize + 8 * C * Cr + 4 * B * C)),
    )(x, w1, w2)

    # ---- Pass 2: per-b shifted moments of the spatial pre-activation ----
    k_p, sd_p, sd2_p = pl.pallas_call(
        _make_spatial_stats_kernel(C, TL, SW, L, need_mask),
        out_shape=(jax.ShapeDtypeStruct((B, 1, 1), jnp.float32),
                   jax.ShapeDtypeStruct((B, 1, 1), jnp.float32),
                   jax.ShapeDtypeStruct((B, 1, 1), jnp.float32)),
        grid=(B, n_l),
        in_specs=[
            pl.BlockSpec((1, C, TL), lambda b, l: (b, 0, l)),
            pl.BlockSpec((1, C, 1), lambda b, l: (b, 0, 0)),
            pl.BlockSpec(memory_space=pltpu.MemorySpace.SMEM),
        ],
        out_specs=(pl.BlockSpec((1, 1, 1), lambda b, l: (b, 0, 0)),
                   pl.BlockSpec((1, 1, 1), lambda b, l: (b, 0, 0)),
                   pl.BlockSpec((1, 1, 1), lambda b, l: (b, 0, 0))),
        scratch_shapes=[pltpu.VMEM((1, 1), jnp.float32),
                        pltpu.VMEM((1, SW), jnp.float32),
                        pltpu.VMEM((1, SW), jnp.float32)],
        compiler_params=reduce_params,
        cost_estimate=pl.CostEstimate(
            flops=int(6 * B * C * L),
            transcendentals=0,
            bytes_accessed=int(B * C * L * itemsize + 4 * B * C)),
    )(x, ca, w_sa)

    # ---- Tiny XLA epilogue: combine per-b moments, fold BatchNorm into 2 scalars ----
    kb = k_p[:, 0, 0]
    sdb = sd_p[:, 0, 0]
    sd2b = sd2_p[:, 0, 0]
    Lf = jnp.float32(L)
    mean_b = kb + sdb / Lf                                   # per-b mean of s
    m2_b = jnp.maximum(sd2b - (sdb * sdb) / Lf, 0.0)         # per-b sum of sq. deviations
    mu = jnp.mean(mean_b)
    m2 = jnp.sum(m2_b) + Lf * jnp.sum((mean_b - mu) ** 2)
    var = jnp.maximum(m2 / (Lf * B), 0.0)                    # biased batch variance
    scale = bn_gamma_beta[0] * lax.rsqrt(var + _BN_EPS)
    shift = bn_gamma_beta[1] - mu * scale
    bn_ss = jnp.stack([scale, shift]).astype(jnp.float32)    # (2,)

    # ---- Pass 3: tiled, pipelined elementwise apply (megacore-parallel) ----
    out = pl.pallas_call(
        _make_apply_kernel(C, TL, SW),
        out_shape=jax.ShapeDtypeStruct((B, C, L), x.dtype),
        grid=(B, n_l),
        in_specs=[
            pl.BlockSpec((1, C, TL), lambda b, l: (b, 0, l)),
            pl.BlockSpec((1, C, 1), lambda b, l: (b, 0, 0)),
            pl.BlockSpec(memory_space=pltpu.MemorySpace.SMEM),
            pl.BlockSpec(memory_space=pltpu.MemorySpace.SMEM),
        ],
        out_specs=pl.BlockSpec((1, C, TL), lambda b, l: (b, 0, l)),
        compiler_params=pltpu.CompilerParams(
            dimension_semantics=("parallel", "parallel"),
            vmem_limit_bytes=vmem_limit),
        cost_estimate=pl.CostEstimate(
            flops=int(7 * B * C * L),
            transcendentals=int(B * L),
            bytes_accessed=int(2 * B * C * L * itemsize + 4 * B * C)),
    )(x, ca, w_sa, bn_ss)
    return out


def _reference(x, w1, w2, w_sa, bn_gb):
    """Pure-JAX reference of the torch module (training-mode BatchNorm)."""
    xf = x.astype(jnp.float32)
    w1 = w1.astype(jnp.float32)
    w2 = w2.astype(jnp.float32)
    mean_c = jnp.mean(xf, axis=-1)
    max_c = jnp.max(xf, axis=-1)
    mlp = lambda v: jnp.maximum(v @ w1.T, 0.0) @ w2.T
    ca = jax.nn.sigmoid(mlp(mean_c) + mlp(max_c))
    x1 = xf * ca[:, :, None]
    mean_s = jnp.mean(x1, axis=1)
    max_s = jnp.max(x1, axis=1)
    s = w_sa[0] * max_s + w_sa[1] * mean_s
    mu = jnp.mean(s)
    var = jnp.mean((s - mu) ** 2)
    s_hat = (s - mu) * lax.rsqrt(var + _BN_EPS) * bn_gb[0] + bn_gb[1]
    sa = jax.nn.sigmoid(jnp.maximum(s_hat, 0.0))
    return (x1 * sa[:, None, :]).astype(x.dtype)


if __name__ == "__main__":
    B, C, ratio = 2, 16, 8
    Cr = C // ratio

    key = jax.random.PRNGKey(0)
    k1, k2, k3, kx = jax.random.split(key, 4)
    w1 = jax.random.normal(k1, (Cr, C), jnp.float32) * 0.2    # Conv1d(C, C//8, 1).weight
    w2 = jax.random.normal(k2, (C, Cr), jnp.float32) * 0.2    # Conv1d(C//8, C, 1).weight
    w_sa = jax.random.normal(k3, (2,), jnp.float32) * 0.5     # Conv1d(2, 1, 1).weight
    bn_gb = jnp.array([1.0, 0.0], jnp.float32)                # BatchNorm1d(1) init

    # (name, dtype, L, forced max_block_bytes, tolerance)
    cases = [
        ("f32 aligned, default tiles", jnp.float32, 2048, None, 1e-4),
        ("f32 ragged L, multi-tile", jnp.float32, 1000, 16 * 1024, 1e-4),
        ("bf16 aligned, multi-tile", jnp.bfloat16, 1024, 8 * 1024, 2e-2),
    ]
    for name, dt, L, mbb, tol in cases:
        xk = jax.random.normal(jax.random.fold_in(kx, L), (B, C, L), jnp.float32).astype(dt)
        y = cbam_attention(xk, w1, w2, w_sa, bn_gb, max_block_bytes=mbb)
        jax.block_until_ready(y)
        assert y.shape == xk.shape and y.dtype == xk.dtype, name
        y_ref = _reference(xk, w1, w2, w_sa, bn_gb)
        a = y.astype(jnp.float32)
        b = y_ref.astype(jnp.float32)
        if not bool(jnp.allclose(a, b, rtol=tol, atol=tol)):
            raise AssertionError(f"{name}: max abs err {float(jnp.max(jnp.abs(a - b)))}")

    print("KERNEL_OK")
</pallas_src>

<mosaic_0001>
module attributes {stable_mosaic.version = 11 : i64} {
  func.func @kernel(%arg0: i32, %arg1: i32, %arg2: memref<1x16x2048xf32, #tpu.memory_space<vmem>>, %arg3: memref<2x16xf32, #tpu.memory_space<vmem>>, %arg4: memref<16x2xf32, #tpu.memory_space<vmem>>, %arg5: memref<1x16x1xf32, #tpu.memory_space<vmem>>, %arg6: memref<16x512xf32, #tpu.memory_space<vmem>>, %arg7: memref<16x512xf32, #tpu.memory_space<vmem>>) attributes {dimension_semantics = [#tpu.dimension_semantics<parallel>, #tpu.dimension_semantics<arbitrary>], iteration_bounds = array<i64: 2, 1>, scalar_prefetch = 0 : i64, scratch_operands = 2 : i64, tpu.core_type = #tpu.core_type<tc>, window_params = [{transform_indices = @transform_0, window_bounds = array<i64: 1, 16, 2048>}, {pipeline_mode = #tpu.pipeline_mode<synchronous>, transform_indices = @transform_1, window_bounds = array<i64: 2, 16>}, {pipeline_mode = #tpu.pipeline_mode<synchronous>, transform_indices = @transform_2, window_bounds = array<i64: 16, 2>}, {transform_indices = @transform_3, window_bounds = array<i64: 1, 16, 1>}]} {
    %c0_i32 = arith.constant 0 : i32
    %0 = arith.cmpi eq, %arg1, %c0_i32 : i32
    %1 = arith.extui %0 : i1 to i32
    %c0_i32_0 = arith.constant 0 : i32
    %2 = arith.cmpi ne, %1, %c0_i32_0 : i32
    scf.if %2 {
      %cst = arith.constant 0.000000e+00 : f32
      %38 = vector.broadcast %cst : f32 to vector<16x512xf32>
      %c0_43 = arith.constant 0 : index
      %c0_44 = arith.constant 0 : index
      %39 = vector.load %arg6[%c0_43, %c0_44] : memref<16x512xf32, #tpu.memory_space<vmem>>, vector<16x512xf32>
      tpu.vector_store %arg6[%c0_43, %c0_44], %38 {strides = array<i32>} : memref<16x512xf32, #tpu.memory_space<vmem>>, vector<16x512xf32>,
      %cst_45 = arith.constant 0xFF800000 : f32
      %40 = vector.broadcast %cst_45 : f32 to vector<16x512xf32>
      %c0_46 = arith.constant 0 : index
      %c0_47 = arith.constant 0 : index
      %41 = vector.load %arg7[%c0_46, %c0_47] : memref<16x512xf32, #tpu.memory_space<vmem>>, vector<16x512xf32>
      tpu.vector_store %arg7[%c0_46, %c0_47], %40 {strides = array<i32>} : memref<16x512xf32, #tpu.memory_space<vmem>>, vector<16x512xf32>,
    } else {
    }
    %c0 = arith.constant 0 : index
    %c0_1 = arith.constant 0 : index
    %c0_2 = arith.constant 0 : index
    %3 = vector.load %arg2[%c0, %c0_1, %c0_2] : memref<1x16x2048xf32, #tpu.memory_space<vmem>>, vector<1x16x512xf32>
    %4 = vector.shape_cast %3 : vector<1x16x512xf32> to vector<16x512xf32>
    %c0_3 = arith.constant 0 : index
    %c0_4 = arith.constant 0 : index
    %5 = vector.load %arg6[%c0_3, %c0_4] : memref<16x512xf32, #tpu.memory_space<vmem>>, vector<16x512xf32>
    %6 = arith.addf %5, %4 : vector<16x512xf32>
    %c0_5 = arith.constant 0 : index
    %c0_6 = arith.constant 0 : index
    %7 = vector.load %arg6[%c0_5, %c0_6] : memref<16x512xf32, #tpu.memory_space<vmem>>, vector<16x512xf32>
    tpu.vector_store %arg6[%c0_5, %c0_6], %6 {strides = array<i32>} : memref<16x512xf32, #tpu.memory_space<vmem>>, vector<16x512xf32>,
    %c0_7 = arith.constant 0 : index
    %c0_8 = arith.constant 0 : index
    %8 = vector.load %arg7[%c0_7, %c0_8] : memref<16x512xf32, #tpu.memory_space<vmem>>, vector<16x512xf32>
    %9 = arith.maximumf %8, %4 : vector<16x512xf32>
    %c0_9 = arith.constant 0 : index
    %c0_10 = arith.constant 0 : index
    %10 = vector.load %arg7[%c0_9, %c0_10] : memref<16x512xf32, #tpu.memory_space<vmem>>, vector<16x512xf32>
    tpu.vector_store %arg7[%c0_9, %c0_10], %9 {strides = array<i32>} : memref<16x512xf32, #tpu.memory_space<vmem>>, vector<16x512xf32>,
    %c0_11 = arith.constant 0 : index
    %c0_12 = arith.constant 0 : index
    %c512 = arith.constant 512 : index
    %11 = vector.load %arg2[%c0_11, %c0_12, %c512] : memref<1x16x2048xf32, #tpu.memory_space<vmem>>, vector<1x16x512xf32>
    %12 = vector.shape_cast %11 : vector<1x16x512xf32> to vector<16x512xf32>
    %c0_13 = arith.constant 0 : index
    %c0_14 = arith.constant 0 : index
    %13 = vector.load %arg6[%c0_13, %c0_14] : memref<16x512xf32, #tpu.memory_space<vmem>>, vector<16x512xf32>
    %14 = arith.addf %13, %12 : vector<16x512xf32>
    %c0_15 = arith.constant 0 : index
    %c0_16 = arith.constant 0 : index
    %15 = vector.load %arg6[%c0_15, %c0_16] : memref<16x512xf32, #tpu.memory_space<vmem>>, vector<16x512xf32>
    tpu.vector_store %arg6[%c0_15, %c0_16], %14 {strides = array<i32>} : memref<16x512xf32, #tpu.memory_space<vmem>>, vector<16x512xf32>,
    %c0_17 = arith.constant 0 : index
    %c0_18 = arith.constant 0 : index
    %16 = vector.load %arg7[%c0_17, %c0_18] : memref<16x512xf32, #tpu.memory_space<vmem>>, vector<16x512xf32>
    %17 = arith.maximumf %16, %12 : vector<16x512xf32>
    %c0_19 = arith.constant 0 : index
    %c0_20 = arith.constant 0 : index
    %18 = vector.load %arg7[%c0_19, %c0_20] : memref<16x512xf32, #tpu.memory_space<vmem>>, vector<16x512xf32>
    tpu.vector_store %arg7[%c0_19, %c0_20], %17 {strides = array<i32>} : memref<16x512xf32, #tpu.memory_space<vmem>>, vector<16x512xf32>,
    %c0_21 = arith.constant 0 : index
    %c0_22 = arith.constant 0 : index
    %c1024 = arith.constant 1024 : index
    %19 = vector.load %arg2[%c0_21, %c0_22, %c1024] : memref<1x16x2048xf32, #tpu.memory_space<vmem>>, vector<1x16x512xf32>
    %20 = vector.shape_cast %19 : vector<1x16x512xf32> to vector<16x512xf32>
    %c0_23 = arith.constant 0 : index
    %c0_24 = arith.constant 0 : index
    %21 = vector.load %arg6[%c0_23, %c0_24] : memref<16x512xf32, #tpu.memory_space<vmem>>, vector<16x512xf32>
    %22 = arith.addf %21, %20 : vector<16x512xf32>
    %c0_25 = arith.constant 0 : index
    %c0_26 = arith.constant 0 : index
    %23 = vector.load %arg6[%c0_25, %c0_26] : memref<16x512xf32, #tpu.memory_space<vmem>>, vector<16x512xf32>
    tpu.vector_store %arg6[%c0_25, %c0_26], %22 {strides = array<i32>} : memref<16x512xf32, #tpu.memory_space<vmem>>, vector<16x512xf32>,
    %c0_27 = arith.constant 0 : index
    %c0_28 = arith.constant 0 : index
    %24 = vector.load %arg7[%c0_27, %c0_28] : memref<16x512xf32, #tpu.memory_space<vmem>>, vector<16x512xf32>
    %25 = arith.maximumf %24, %20 : vector<16x512xf32>
    %c0_29 = arith.constant 0 : index
    %c0_30 = arith.constant 0 : index
    %26 = vector.load %arg7[%c0_29, %c0_30] : memref<16x512xf32, #tpu.memory_space<vmem>>, vector<16x512xf32>
    tpu.vector_store %arg7[%c0_29, %c0_30], %25 {strides = array<i32>} : memref<16x512xf32, #tpu.memory_space<vmem>>, vector<16x512xf32>,
    %c0_31 = arith.constant 0 : index
    %c0_32 = arith.constant 0 : index
    %c1536 = arith.constant 1536 : index
    %27 = vector.load %arg2[%c0_31, %c0_32, %c1536] : memref<1x16x2048xf32, #tpu.memory_space<vmem>>, vector<1x16x512xf32>
    %28 = vector.shape_cast %27 : vector<1x16x512xf32> to vector<16x512xf32>
    %c0_33 = arith.constant 0 : index
    %c0_34 = arith.constant 0 : index
    %29 = vector.load %arg6[%c0_33, %c0_34] : memref<16x512xf32, #tpu.memory_space<vmem>>, vector<16x512xf32>
    %30 = arith.addf %29, %28 : vector<16x512xf32>
    %c0_35 = arith.constant 0 : index
    %c0_36 = arith.constant 0 : index
    %31 = vector.load %arg6[%c0_35, %c0_36] : memref<16x512xf32, #tpu.memory_space<vmem>>, vector<16x512xf32>
    tpu.vector_store %arg6[%c0_35, %c0_36], %30 {strides = array<i32>} : memref<16x512xf32, #tpu.memory_space<vmem>>, vector<16x512xf32>,
    %c0_37 = arith.constant 0 : index
    %c0_38 = arith.constant 0 : index
    %32 = vector.load %arg7[%c0_37, %c0_38] : memref<16x512xf32, #tpu.memory_space<vmem>>, vector<16x512xf32>
    %33 = arith.maximumf %32, %28 : vector<16x512xf32>
    %c0_39 = arith.constant 0 : index
    %c0_40 = arith.constant 0 : index
    %34 = vector.load %arg7[%c0_39, %c0_40] : memref<16x512xf32, #tpu.memory_space<vmem>>, vector<16x512xf32>
    tpu.vector_store %arg7[%c0_39, %c0_40], %33 {strides = array<i32>} : memref<16x512xf32, #tpu.memory_space<vmem>>, vector<16x512xf32>,
    %c0_i32_41 = arith.constant 0 : i32
    %35 = arith.cmpi eq, %arg1, %c0_i32_41 : i32
    %36 = arith.extui %35 : i1 to i32
    %c0_i32_42 = arith.constant 0 : i32
    %37 = arith.cmpi ne, %36, %c0_i32_42 : i32
    scf.if %37 {
      %c0_43 = arith.constant 0 : index
      %c0_44 = arith.constant 0 : index
      %38 = vector.load %arg6[%c0_43, %c0_44] : memref<16x512xf32, #tpu.memory_space<vmem>>, vector<16x512xf32>
      %cst = arith.constant dense<0.000000e+00> : vector<16xf32>
      %39 = vector.multi_reduction <add>, %38, %cst [1] : vector<16x512xf32> to vector<16xf32>
      %40 = vector.shape_cast %39 : vector<16xf32> to vector<16x1xf32>
      %cst_45 = arith.constant 4.8828125E-4 : f32
      %41 = vector.broadcast %cst_45 : f32 to vector<16x1xf32>
      %42 = arith.mulf %40, %41 : vector<16x1xf32>
      %c0_46 = arith.constant 0 : index
      %c0_47 = arith.constant 0 : index
      %43 = vector.load %arg7[%c0_46, %c0_47] : memref<16x512xf32, #tpu.memory_space<vmem>>, vector<16x512xf32>
      %cst_48 = arith.constant dense<0xFF800000> : vector<16xf32>
      %44 = vector.multi_reduction <maximumf>, %43, %cst_48 [1] : vector<16x512xf32> to vector<16xf32>
      %45 = vector.shape_cast %44 : vector<16xf32> to vector<16x1xf32>
      %46 = tpu.concatenate %42, %45 in 1 : vector<16x1xf32>, vector<16x1xf32> -> vector<16x2xf32>
      %c0_49 = arith.constant 0 : index
      %c0_50 = arith.constant 0 : index
      %47 = vector.load %arg3[%c0_49, %c0_50] : memref<2x16xf32, #tpu.memory_space<vmem>>, vector<2x16xf32>
      %c0_51 = arith.constant 0 : index
      %c0_52 = arith.constant 0 : index
      %48 = vector.load %arg4[%c0_51, %c0_52] : memref<16x2xf32, #tpu.memory_space<vmem>>, vector<16x2xf32>
      %cst_53 = arith.constant dense<0.000000e+00> : vector<2x2xf32>
      %49 = tpu.matmul %47, %46, %cst_53 {dimension_numbers = #tpu.dot_dimension_numbers<[1], [0], [0], [1], [0, 0, 1, 1], [], []>} : vector<2x16xf32>, vector<16x2xf32>, vector<2x2xf32> -> vector<2x2xf32>
      %cst_54 = arith.constant 0.000000e+00 : f32
      %50 = vector.broadcast %cst_54 : f32 to vector<2x2xf32>
      %51 = arith.maximumf %49, %50 : vector<2x2xf32>
      %cst_55 = arith.constant dense<0.000000e+00> : vector<16x2xf32>
      %52 = tpu.matmul %48, %51, %cst_55 {dimension_numbers = #tpu.dot_dimension_numbers<[1], [0], [0], [1], [0, 0, 1, 1], [], []>} : vector<16x2xf32>, vector<2x2xf32>, vector<16x2xf32> -> vector<16x2xf32>
      %53 = vector.extract_strided_slice %52 {offsets = [0, 0], sizes = [16, 1], strides = [1, 1]} : vector<16x2xf32> to vector<16x1xf32>
      %54 = vector.extract_strided_slice %52 {offsets = [0, 1], sizes = [16, 1], strides = [1, 1]} : vector<16x2xf32> to vector<16x1xf32>
      %55 = arith.addf %53, %54 : vector<16x1xf32>
      %56 = arith.negf %55 : vector<16x1xf32>
      %57 = math.exp %56 : vector<16x1xf32>
      %cst_56 = arith.constant 1.000000e+00 : f32
      %58 = vector.broadcast %cst_56 : f32 to vector<16x1xf32>
      %59 = arith.addf %58, %57 : vector<16x1xf32>
      %60 = arith.divf %58, %59 : vector<16x1xf32>
      %61 = vector.shape_cast %60 : vector<16x1xf32> to vector<1x16x1xf32>
      %c0_57 = arith.constant 0 : index
      %c0_58 = arith.constant 0 : index
      %c0_59 = arith.constant 0 : index
      %62 = vector.load %arg5[%c0_57, %c0_58, %c0_59] : memref<1x16x1xf32, #tpu.memory_space<vmem>>, vector<1x16x1xf32>
      tpu.vector_store %arg5[%c0_57, %c0_58, %c0_59], %61 {strides = array<i32>} : memref<1x16x1xf32, #tpu.memory_space<vmem>>, vector<1x16x1xf32>,
    } else {
    }
    return
  }
  func.func @transform_0(%arg0: i32, %arg1: i32) -> (i32, i32, i32) {
    %c0_i32 = arith.constant 0 : i32
    %c0_i32_0 = arith.constant 0 : i32
    return %arg0, %c0_i32, %arg1 : i32, i32, i32
  }
  func.func @transform_1(%arg0: i32, %arg1: i32) -> (i32, i32) {
    %c0_i32 = arith.constant 0 : i32
    %c0_i32_0 = arith.constant 0 : i32
    %c0_i32_1 = arith.constant 0 : i32
    return %c0_i32, %c0_i32_0 : i32, i32
  }
  func.func @transform_2(%arg0: i32, %arg1: i32) -> (i32, i32) {
    %c0_i32 = arith.constant 0 : i32
    %c0_i32_0 = arith.constant 0 : i32
    %c0_i32_1 = arith.constant 0 : i32
    return %c0_i32, %c0_i32_0 : i32, i32
  }
  func.func @transform_3(%arg0: i32, %arg1: i32) -> (i32, i32, i32) {
    %c0_i32 = arith.constant 0 : i32
    %c0_i32_0 = arith.constant 0 : i32
    %c0_i32_1 = arith.constant 0 : i32
    return %arg0, %c0_i32, %c0_i32_0 : i32, i32, i32
  }
}

module attributes {stable_mosaic.version = 11 : i64} {
  func.func @kernel(%arg0: i32, %arg1: i32, %arg2: memref<1x16x2048xf32, #tpu.memory_space<vmem>>, %arg3: memref<1x16x1xf32, #tpu.memory_space<vmem>>, %arg4: memref<2xf32, #tpu.memory_space<smem>>, %arg5: memref<1x1x1xf32, #tpu.memory_space<vmem>>, %arg6: memref<1x1x1xf32, #tpu.memory_space<vmem>>, %arg7: memref<1x1x1xf32, #tpu.memory_space<vmem>>, %arg8: memref<1x1xf32, #tpu.memory_space<vmem>>, %arg9: memref<1x512xf32, #tpu.memory_space<vmem>>, %arg10: memref<1x512xf32, #tpu.memory_space<vmem>>) attributes {dimension_semantics = [#tpu.dimension_semantics<parallel>, #tpu.dimension_semantics<arbitrary>], iteration_bounds = array<i64: 2, 1>, scalar_prefetch = 0 : i64, scratch_operands = 3 : i64, tpu.core_type = #tpu.core_type<tc>, window_params = [{transform_indices = @transform_0, window_bounds = array<i64: 1, 16, 2048>}, {transform_indices = @transform_1, window_bounds = array<i64: 1, 16, 1>}, {transform_indices = @transform_2, window_bounds = array<i64: 2>}, {transform_indices = @transform_3, window_bounds = array<i64: 1, 1, 1>}, {transform_indices = @transform_4, window_bounds = array<i64: 1, 1, 1>}, {transform_indices = @transform_5, window_bounds = array<i64: 1, 1, 1>}]} {
    %c0_i32 = arith.constant 0 : i32
    %0 = arith.cmpi eq, %arg1, %c0_i32 : i32
    %1 = arith.extui %0 : i1 to i32
    %c0_i32_0 = arith.constant 0 : i32
    %2 = arith.cmpi ne, %1, %c0_i32_0 : i32
    scf.if %2 {
      %cst_46 = arith.constant 0.000000e+00 : f32
      %105 = vector.broadcast %cst_46 : f32 to vector<1x512xf32>
      %c0_47 = arith.constant 0 : index
      %c0_48 = arith.constant 0 : index
      %106 = vector.load %arg9[%c0_47, %c0_48] : memref<1x512xf32, #tpu.memory_space<vmem>>, vector<1x512xf32>
      tpu.vector_store %arg9[%c0_47, %c0_48], %105 {strides = array<i32>} : memref<1x512xf32, #tpu.memory_space<vmem>>, vector<1x512xf32>,
      %cst_49 = arith.constant 0.000000e+00 : f32
      %107 = vector.broadcast %cst_49 : f32 to vector<1x512xf32>
      %c0_50 = arith.constant 0 : index
      %c0_51 = arith.constant 0 : index
      %108 = vector.load %arg10[%c0_50, %c0_51] : memref<1x512xf32, #tpu.memory_space<vmem>>, vector<1x512xf32>
      tpu.vector_store %arg10[%c0_50, %c0_51], %107 {strides = array<i32>} : memref<1x512xf32, #tpu.memory_space<vmem>>, vector<1x512xf32>,
    } else {
    }
    %c0 = arith.constant 0 : index
    %c0_1 = arith.constant 0 : index
    %c0_2 = arith.constant 0 : index
    %3 = vector.load %arg3[%c0, %c0_1, %c0_2] : memref<1x16x1xf32, #tpu.memory_space<vmem>>, vector<1x16x1xf32>
    %4 = vector.shape_cast %3 : vector<1x16x1xf32> to vector<16x1xf32>
    %c0_3 = arith.constant 0 : index
    %5 = memref.load %arg4[%c0_3] : memref<2xf32, #tpu.memory_space<smem>>
    %c1 = arith.constant 1 : index
    %6 = memref.load %arg4[%c1] : memref<2xf32, #tpu.memory_space<smem>>
    %cst = arith.constant 0.000000e+00 : f32
    %7 = vector.broadcast %cst : f32 to vector<1x512xf32>
    %cst_4 = arith.constant 0.000000e+00 : f32
    %8 = vector.broadcast %cst_4 : f32 to vector<1x512xf32>
    %c0_5 = arith.constant 0 : index
    %c0_6 = arith.constant 0 : index
    %c0_7 = arith.constant 0 : index
    %9 = vector.load %arg2[%c0_5, %c0_6, %c0_7] : memref<1x16x2048xf32, #tpu.memory_space<vmem>>, vector<1x16x512xf32>
    %10 = vector.shape_cast %9 : vector<1x16x512xf32> to vector<16x512xf32>
    %11 = vector.broadcast %4 : vector<16x1xf32> to vector<16x512xf32>
    %12 = arith.mulf %10, %11 : vector<16x512xf32>
    %cst_8 = arith.constant dense<0.000000e+00> : vector<512xf32>
    %13 = vector.multi_reduction <add>, %12, %cst_8 [0] : vector<16x512xf32> to vector<512xf32>
    %14 = vector.shape_cast %13 : vector<512xf32> to vector<1x512xf32>
    %cst_9 = arith.constant 6.250000e-02 : f32
    %15 = vector.broadcast %cst_9 : f32 to vector<1x512xf32>
    %16 = arith.mulf %14, %15 : vector<1x512xf32>
    %cst_10 = arith.constant dense<0xFF800000> : vector<512xf32>
    %17 = vector.multi_reduction <maximumf>, %12, %cst_10 [0] : vector<16x512xf32> to vector<512xf32>
    %18 = vector.shape_cast %17 : vector<512xf32> to vector<1x512xf32>
    %19 = vector.broadcast %5 : f32 to vector<1x512xf32>
    %20 = arith.mulf %19, %18 : vector<1x512xf32>
    %21 = vector.broadcast %6 : f32 to vector<1x512xf32>
    %22 = arith.mulf %21, %16 : vector<1x512xf32>
    %23 = arith.addf %20, %22 : vector<1x512xf32>
    %c0_i32_11 = arith.constant 0 : i32
    %24 = arith.cmpi eq, %arg1, %c0_i32_11 : i32
    %25 = arith.extui %24 : i1 to i32
    %c0_i32_12 = arith.constant 0 : i32
    %26 = arith.cmpi ne, %25, %c0_i32_12 : i32
    scf.if %26 {
      %105 = vector.shape_cast %23 : vector<1x512xf32> to vector<1x1x512xf32>
      %cst_46 = arith.constant dense<0.000000e+00> : vector<1xf32>
      %106 = vector.multi_reduction <add>, %105, %cst_46 [1, 2] : vector<1x1x512xf32> to vector<1xf32>
      %107 = vector.shape_cast %106 : vector<1xf32> to vector<1x1x1xf32>
      %108 = vector.extract %107[0, 0, 0] : f32 from vector<1x1x1xf32>
      %109 = vector.broadcast %108 : f32 to vector<1x1xf32>
      %cst_47 = arith.constant 0.001953125 : f32
      %110 = vector.broadcast %cst_47 : f32 to vector<1x1xf32>
      %111 = arith.mulf %109, %110 : vector<1x1xf32>
      %c0_48 = arith.constant 0 : index
      %c0_49 = arith.constant 0 : index
      %112 = vector.load %arg8[%c0_48, %c0_49] : memref<1x1xf32, #tpu.memory_space<vmem>>, vector<1x1xf32>
      tpu.vector_store %arg8[%c0_48, %c0_49], %111 {strides = array<i32>} : memref<1x1xf32, #tpu.memory_space<vmem>>, vector<1x1xf32>,
    } else {
    }
    %c0_13 = arith.constant 0 : index
    %c0_14 = arith.constant 0 : index
    %27 = vector.load %arg8[%c0_13, %c0_14] : memref<1x1xf32, #tpu.memory_space<vmem>>, vector<1x1xf32>
    %28 = vector.broadcast %27 : vector<1x1xf32> to vector<1x512xf32>
    %29 = arith.subf %23, %28 : vector<1x512xf32>
    %30 = arith.addf %7, %29 : vector<1x512xf32>
    %31 = arith.mulf %29, %29 : vector<1x512xf32>
    %32 = arith.addf %8, %31 : vector<1x512xf32>
    %c0_15 = arith.constant 0 : index
    %c0_16 = arith.constant 0 : index
    %c512 = arith.constant 512 : index
    %33 = vector.load %arg2[%c0_15, %c0_16, %c512] : memref<1x16x2048xf32, #tpu.memory_space<vmem>>, vector<1x16x512xf32>
    %34 = vector.shape_cast %33 : vector<1x16x512xf32> to vector<16x512xf32>
    %35 = vector.broadcast %4 : vector<16x1xf32> to vector<16x512xf32>
    %36 = arith.mulf %34, %35 : vector<16x512xf32>
    %cst_17 = arith.constant dense<0.000000e+00> : vector<512xf32>
    %37 = vector.multi_reduction <add>, %36, %cst_17 [0] : vector<16x512xf32> to vector<512xf32>
    %38 = vector.shape_cast %37 : vector<512xf32> to vector<1x512xf32>
    %cst_18 = arith.constant 6.250000e-02 : f32
    %39 = vector.broadcast %cst_18 : f32 to vector<1x512xf32>
    %40 = arith.mulf %38, %39 : vector<1x512xf32>
    %cst_19 = arith.constant dense<0xFF800000> : vector<512xf32>
    %41 = vector.multi_reduction <maximumf>, %36, %cst_19 [0] : vector<16x512xf32> to vector<512xf32>
    %42 = vector.shape_cast %41 : vector<512xf32> to vector<1x512xf32>
    %43 = vector.broadcast %5 : f32 to vector<1x512xf32>
    %44 = arith.mulf %43, %42 : vector<1x512xf32>
    %45 = vector.broadcast %6 : f32 to vector<1x512xf32>
    %46 = arith.mulf %45, %40 : vector<1x512xf32>
    %47 = arith.addf %44, %46 : vector<1x512xf32>
    %c0_20 = arith.constant 0 : index
    %c0_21 = arith.constant 0 : index
    %48 = vector.load %arg8[%c0_20, %c0_21] : memref<1x1xf32, #tpu.memory_space<vmem>>, vector<1x1xf32>
    %49 = vector.broadcast %48 : vector<1x1xf32> to vector<1x512xf32>
    %50 = arith.subf %47, %49 : vector<1x512xf32>
    %51 = arith.addf %30, %50 : vector<1x512xf32>
    %52 = arith.mulf %50, %50 : vector<1x512xf32>
    %53 = arith.addf %32, %52 : vector<1x512xf32>
    %c0_22 = arith.constant 0 : index
    %c0_23 = arith.constant 0 : index
    %c1024 = arith.constant 1024 : index
    %54 = vector.load %arg2[%c0_22, %c0_23, %c1024] : memref<1x16x2048xf32, #tpu.memory_space<vmem>>, vector<1x16x512xf32>
    %55 = vector.shape_cast %54 : vector<1x16x512xf32> to vector<16x512xf32>
    %56 = vector.broadcast %4 : vector<16x1xf32> to vector<16x512xf32>
    %57 = arith.mulf %55, %56 : vector<16x512xf32>
    %cst_24 = arith.constant dense<0.000000e+00> : vector<512xf32>
    %58 = vector.multi_reduction <add>, %57, %cst_24 [0] : vector<16x512xf32> to vector<512xf32>
    %59 = vector.shape_cast %58 : vector<512xf32> to vector<1x512xf32>
    %cst_25 = arith.constant 6.250000e-02 : f32
    %60 = vector.broadcast %cst_25 : f32 to vector<1x512xf32>
    %61 = arith.mulf %59, %60 : vector<1x512xf32>
    %cst_26 = arith.constant dense<0xFF800000> : vector<512xf32>
    %62 = vector.multi_reduction <maximumf>, %57, %cst_26 [0] : vector<16x512xf32> to vector<512xf32>
    %63 = vector.shape_cast %62 : vector<512xf32> to vector<1x512xf32>
    %64 = vector.broadcast %5 : f32 to vector<1x512xf32>
    %65 = arith.mulf %64, %63 : vector<1x512xf32>
    %66 = vector.broadcast %6 : f32 to vector<1x512xf32>
    %67 = arith.mulf %66, %61 : vector<1x512xf32>
    %68 = arith.addf %65, %67 : vector<1x512xf32>
    %c0_27 = arith.constant 0 : index
    %c0_28 = arith.constant 0 : index
    %69 = vector.load %arg8[%c0_27, %c0_28] : memref<1x1xf32, #tpu.memory_space<vmem>>, vector<1x1xf32>
    %70 = vector.broadcast %69 : vector<1x1xf32> to vector<1x512xf32>
    %71 = arith.subf %68, %70 : vector<1x512xf32>
    %72 = arith.addf %51, %71 : vector<1x512xf32>
    %73 = arith.mulf %71, %71 : vector<1x512xf32>
    %74 = arith.addf %53, %73 : vector<1x512xf32>
    %c0_29 = arith.constant 0 : index
    %c0_30 = arith.constant 0 : index
    %c1536 = arith.constant 1536 : index
    %75 = vector.load %arg2[%c0_29, %c0_30, %c1536] : memref<1x16x2048xf32, #tpu.memory_space<vmem>>, vector<1x16x512xf32>
    %76 = vector.shape_cast %75 : vector<1x16x512xf32> to vector<16x512xf32>
    %77 = vector.broadcast %4 : vector<16x1xf32> to vector<16x512xf32>
    %78 = arith.mulf %76, %77 : vector<16x512xf32>
    %cst_31 = arith.constant dense<0.000000e+00> : vector<512xf32>
    %79 = vector.multi_reduction <add>, %78, %cst_31 [0] : vector<16x512xf32> to vector<512xf32>
    %80 = vector.shape_cast %79 : vector<512xf32> to vector<1x512xf32>
    %cst_32 = arith.constant 6.250000e-02 : f32
    %81 = vector.broadcast %cst_32 : f32 to vector<1x512xf32>
    %82 = arith.mulf %80, %81 : vector<1x512xf32>
    %cst_33 = arith.constant dense<0xFF800000> : vector<512xf32>
    %83 = vector.multi_reduction <maximumf>, %78, %cst_33 [0] : vector<16x512xf32> to vector<512xf32>
    %84 = vector.shape_cast %83 : vector<512xf32> to vector<1x512xf32>
    %85 = vector.broadcast %5 : f32 to vector<1x512xf32>
    %86 = arith.mulf %85, %84 : vector<1x512xf32>
    %87 = vector.broadcast %6 : f32 to vector<1x512xf32>
    %88 = arith.mulf %87, %82 : vector<1x512xf32>
    %89 = arith.addf %86, %88 : vector<1x512xf32>
    %c0_34 = arith.constant 0 : index
    %c0_35 = arith.constant 0 : index
    %90 = vector.load %arg8[%c0_34, %c0_35] : memref<1x1xf32, #tpu.memory_space<vmem>>, vector<1x1xf32>
    %91 = vector.broadcast %90 : vector<1x1xf32> to vector<1x512xf32>
    %92 = arith.subf %89, %91 : vector<1x512xf32>
    %93 = arith.addf %72, %92 : vector<1x512xf32>
    %94 = arith.mulf %92, %92 : vector<1x512xf32>
    %95 = arith.addf %74, %94 : vector<1x512xf32>
    %c0_36 = arith.constant 0 : index
    %c0_37 = arith.constant 0 : index
    %96 = vector.load %arg9[%c0_36, %c0_37] : memref<1x512xf32, #tpu.memory_space<vmem>>, vector<1x512xf32>
    %97 = arith.addf %96, %93 : vector<1x512xf32>
    %c0_38 = arith.constant 0 : index
    %c0_39 = arith.constant 0 : index
    %98 = vector.load %arg9[%c0_38, %c0_39] : memref<1x512xf32, #tpu.memory_space<vmem>>, vector<1x512xf32>
    tpu.vector_store %arg9[%c0_38, %c0_39], %97 {strides = array<i32>} : memref<1x512xf32, #tpu.memory_space<vmem>>, vector<1x512xf32>,
    %c0_40 = arith.constant 0 : index
    %c0_41 = arith.constant 0 : index
    %99 = vector.load %arg10[%c0_40, %c0_41] : memref<1x512xf32, #tpu.memory_space<vmem>>, vector<1x512xf32>
    %100 = arith.addf %99, %95 : vector<1x512xf32>
    %c0_42 = arith.constant 0 : index
    %c0_43 = arith.constant 0 : index
    %101 = vector.load %arg10[%c0_42, %c0_43] : memref<1x512xf32, #tpu.memory_space<vmem>>, vector<1x512xf32>
    tpu.vector_store %arg10[%c0_42, %c0_43], %100 {strides = array<i32>} : memref<1x512xf32, #tpu.memory_space<vmem>>, vector<1x512xf32>,
    %c0_i32_44 = arith.constant 0 : i32
    %102 = arith.cmpi eq, %arg1, %c0_i32_44 : i32
    %103 = arith.extui %102 : i1 to i32
    %c0_i32_45 = arith.constant 0 : i32
    %104 = arith.cmpi ne, %103, %c0_i32_45 : i32
    scf.if %104 {
      %c0_46 = arith.constant 0 : index
      %c0_47 = arith.constant 0 : index
      %105 = vector.load %arg8[%c0_46, %c0_47] : memref<1x1xf32, #tpu.memory_space<vmem>>, vector<1x1xf32>
      %106 = vector.shape_cast %105 : vector<1x1xf32> to vector<1x1x1xf32>
      %c0_48 = arith.constant 0 : index
      %c0_49 = arith.constant 0 : index
      %c0_50 = arith.constant 0 : index
      %107 = vector.load %arg5[%c0_48, %c0_49, %c0_50] : memref<1x1x1xf32, #tpu.memory_space<vmem>>, vector<1x1x1xf32>
      tpu.vector_store %arg5[%c0_48, %c0_49, %c0_50], %106 {strides = array<i32>} : memref<1x1x1xf32, #tpu.memory_space<vmem>>, vector<1x1x1xf32>,
      %c0_51 = arith.constant 0 : index
      %c0_52 = arith.constant 0 : index
      %108 = vector.load %arg9[%c0_51, %c0_52] : memref<1x512xf32, #tpu.memory_space<vmem>>, vector<1x512xf32>
      %109 = vector.shape_cast %108 : vector<1x512xf32> to vector<1x1x512xf32>
      %cst_53 = arith.constant dense<0.000000e+00> : vector<1xf32>
      %110 = vector.multi_reduction <add>, %109, %cst_53 [1, 2] : vector<1x1x512xf32> to vector<1xf32>
      %111 = vector.shape_cast %110 : vector<1xf32> to vector<1x1x1xf32>
      %112 = vector.extract %111[0, 0, 0] : f32 from vector<1x1x1xf32>
      %113 = vector.broadcast %112 : f32 to vector<1x1xf32>
      %114 = vector.shape_cast %113 : vector<1x1xf32> to vector<1x1x1xf32>
      %c0_54 = arith.constant 0 : index
      %c0_55 = arith.constant 0 : index
      %c0_56 = arith.constant 0 : index
      %115 = vector.load %arg6[%c0_54, %c0_55, %c0_56] : memref<1x1x1xf32, #tpu.memory_space<vmem>>, vector<1x1x1xf32>
      tpu.vector_store %arg6[%c0_54, %c0_55, %c0_56], %114 {strides = array<i32>} : memref<1x1x1xf32, #tpu.memory_space<vmem>>, vector<1x1x1xf32>,
      %c0_57 = arith.constant 0 : index
      %c0_58 = arith.constant 0 : index
      %116 = vector.load %arg10[%c0_57, %c0_58] : memref<1x512xf32, #tpu.memory_space<vmem>>, vector<1x512xf32>
      %117 = vector.shape_cast %116 : vector<1x512xf32> to vector<1x1x512xf32>
      %cst_59 = arith.constant dense<0.000000e+00> : vector<1xf32>
      %118 = vector.multi_reduction <add>, %117, %cst_59 [1, 2] : vector<1x1x512xf32> to vector<1xf32>
      %119 = vector.shape_cast %118 : vector<1xf32> to vector<1x1x1xf32>
      %120 = vector.extract %119[0, 0, 0] : f32 from vector<1x1x1xf32>
      %121 = vector.broadcast %120 : f32 to vector<1x1xf32>
      %122 = vector.shape_cast %121 : vector<1x1xf32> to vector<1x1x1xf32>
      %c0_60 = arith.constant 0 : index
      %c0_61 = arith.constant 0 : index
      %c0_62 = arith.constant 0 : index
      %123 = vector.load %arg7[%c0_60, %c0_61, %c0_62] : memref<1x1x1xf32, #tpu.memory_space<vmem>>, vector<1x1x1xf32>
      tpu.vector_store %arg7[%c0_60, %c0_61, %c0_62], %122 {strides = array<i32>} : memref<1x1x1xf32, #tpu.memory_space<vmem>>, vector<1x1x1xf32>,
    } else {
    }
    return
  }
  func.func @transform_0(%arg0: i32, %arg1: i32) -> (i32, i32, i32) {
    %c0_i32 = arith.constant 0 : i32
    %c0_i32_0 = arith.constant 0 : i32
    return %arg0, %c0_i32, %arg1 : i32, i32, i32
  }
  func.func @transform_1(%arg0: i32, %arg1: i32) -> (i32, i32, i32) {
    %c0_i32 = arith.constant 0 : i32
    %c0_i32_0 = arith.constant 0 : i32
    %c0_i32_1 = arith.constant 0 : i32
    return %arg0, %c0_i32, %c0_i32_0 : i32, i32, i32
  }
  func.func @transform_2(%arg0: i32, %arg1: i32) -> i32 {
    %c0_i32 = arith.constant 0 : i32
    %c0_i32_0 = arith.constant 0 : i32
    return %c0_i32 : i32
  }
  func.func @transform_3(%arg0: i32, %arg1: i32) -> (i32, i32, i32) {
    %c0_i32 = arith.constant 0 : i32
    %c0_i32_0 = arith.constant 0 : i32
    %c0_i32_1 = arith.constant 0 : i32
    return %arg0, %c0_i32, %c0_i32_0 : i32, i32, i32
  }
  func.func @transform_4(%arg0: i32, %arg1: i32) -> (i32, i32, i32) {
    %c0_i32 = arith.constant 0 : i32
    %c0_i32_0 = arith.constant 0 : i32
    %c0_i32_1 = arith.constant 0 : i32
    return %arg0, %c0_i32, %c0_i32_0 : i32, i32, i32
  }
  func.func @transform_5(%arg0: i32, %arg1: i32) -> (i32, i32, i32) {
    %c0_i32 = arith.constant 0 : i32
    %c0_i32_0 = arith.constant 0 : i32
    %c0_i32_1 = arith.constant 0 : i32
    return %arg0, %c0_i32, %c0_i32_0 : i32, i32, i32
  }
}

module attributes {stable_mosaic.version = 11 : i64} {
  func.func @kernel(%arg0: i32, %arg1: i32, %arg2: memref<1x16x2048xf32, #tpu.memory_space<vmem>>, %arg3: memref<1x16x1xf32, #tpu.memory_space<vmem>>, %arg4: memref<2xf32, #tpu.memory_space<smem>>, %arg5: memref<2xf32, #tpu.memory_space<smem>>, %arg6: memref<1x16x2048xf32, #tpu.memory_space<vmem>>) attributes {dimension_semantics = [#tpu.dimension_semantics<parallel>, #tpu.dimension_semantics<parallel>], iteration_bounds = array<i64: 2, 1>, scalar_prefetch = 0 : i64, scratch_operands = 0 : i64, tpu.core_type = #tpu.core_type<tc>, window_params = [{transform_indices = @transform_0, window_bounds = array<i64: 1, 16, 2048>}, {transform_indices = @transform_1, window_bounds = array<i64: 1, 16, 1>}, {transform_indices = @transform_2, window_bounds = array<i64: 2>}, {transform_indices = @transform_3, window_bounds = array<i64: 2>}, {transform_indices = @transform_4, window_bounds = array<i64: 1, 16, 2048>}]} {
    %c0 = arith.constant 0 : index
    %c0_0 = arith.constant 0 : index
    %c0_1 = arith.constant 0 : index
    %0 = vector.load %arg3[%c0, %c0_0, %c0_1] : memref<1x16x1xf32, #tpu.memory_space<vmem>>, vector<1x16x1xf32>
    %1 = vector.shape_cast %0 : vector<1x16x1xf32> to vector<16x1xf32>
    %c0_2 = arith.constant 0 : index
    %2 = memref.load %arg4[%c0_2] : memref<2xf32, #tpu.memory_space<smem>>
    %c1 = arith.constant 1 : index
    %3 = memref.load %arg4[%c1] : memref<2xf32, #tpu.memory_space<smem>>
    %c0_3 = arith.constant 0 : index
    %4 = memref.load %arg5[%c0_3] : memref<2xf32, #tpu.memory_space<smem>>
    %c1_4 = arith.constant 1 : index
    %5 = memref.load %arg5[%c1_4] : memref<2xf32, #tpu.memory_space<smem>>
    %c0_5 = arith.constant 0 : index
    %c0_6 = arith.constant 0 : index
    %c0_7 = arith.constant 0 : index
    %6 = vector.load %arg2[%c0_5, %c0_6, %c0_7] : memref<1x16x2048xf32, #tpu.memory_space<vmem>>, vector<1x16x512xf32>
    %7 = vector.shape_cast %6 : vector<1x16x512xf32> to vector<16x512xf32>
    %8 = vector.broadcast %1 : vector<16x1xf32> to vector<16x512xf32>
    %9 = arith.mulf %7, %8 : vector<16x512xf32>
    %cst = arith.constant dense<0.000000e+00> : vector<512xf32>
    %10 = vector.multi_reduction <add>, %9, %cst [0] : vector<16x512xf32> to vector<512xf32>
    %11 = vector.shape_cast %10 : vector<512xf32> to vector<1x512xf32>
    %cst_8 = arith.constant 6.250000e-02 : f32
    %12 = vector.broadcast %cst_8 : f32 to vector<1x512xf32>
    %13 = arith.mulf %11, %12 : vector<1x512xf32>
    %cst_9 = arith.constant dense<0xFF800000> : vector<512xf32>
    %14 = vector.multi_reduction <maximumf>, %9, %cst_9 [0] : vector<16x512xf32> to vector<512xf32>
    %15 = vector.shape_cast %14 : vector<512xf32> to vector<1x512xf32>
    %16 = vector.broadcast %2 : f32 to vector<1x512xf32>
    %17 = arith.mulf %16, %15 : vector<1x512xf32>
    %18 = vector.broadcast %3 : f32 to vector<1x512xf32>
    %19 = arith.mulf %18, %13 : vector<1x512xf32>
    %20 = arith.addf %17, %19 : vector<1x512xf32>
    %21 = vector.broadcast %4 : f32 to vector<1x512xf32>
    %22 = arith.mulf %20, %21 : vector<1x512xf32>
    %23 = vector.broadcast %5 : f32 to vector<1x512xf32>
    %24 = arith.addf %22, %23 : vector<1x512xf32>
    %cst_10 = arith.constant 0.000000e+00 : f32
    %25 = vector.broadcast %cst_10 : f32 to vector<1x512xf32>
    %26 = arith.maximumf %24, %25 : vector<1x512xf32>
    %27 = arith.negf %26 : vector<1x512xf32>
    %28 = math.exp %27 : vector<1x512xf32>
    %cst_11 = arith.constant 1.000000e+00 : f32
    %29 = vector.broadcast %cst_11 : f32 to vector<1x512xf32>
    %30 = arith.addf %29, %28 : vector<1x512xf32>
    %31 = arith.divf %29, %30 : vector<1x512xf32>
    %32 = vector.broadcast %31 : vector<1x512xf32> to vector<16x512xf32>
    %33 = arith.mulf %9, %32 : vector<16x512xf32>
    %c0_12 = arith.constant 0 : index
    %c0_13 = arith.constant 0 : index
    %c0_14 = arith.constant 0 : index
    %34 = vector.load %arg6[%c0_12, %c0_13, %c0_14] : memref<1x16x2048xf32, #tpu.memory_space<vmem>>, vector<1x16x512xf32>
    %35 = vector.shape_cast %34 : vector<1x16x512xf32> to vector<16x512xf32>
    %36 = vector.shape_cast %33 : vector<16x512xf32> to vector<1x16x512xf32>
    tpu.vector_store %arg6[%c0_12, %c0_13, %c0_14], %36 {strides = array<i32>} : memref<1x16x2048xf32, #tpu.memory_space<vmem>>, vector<1x16x512xf32>,
    %c0_15 = arith.constant 0 : index
    %c0_16 = arith.constant 0 : index
    %c512 = arith.constant 512 : index
    %37 = vector.load %arg2[%c0_15, %c0_16, %c512] : memref<1x16x2048xf32, #tpu.memory_space<vmem>>, vector<1x16x512xf32>
    %38 = vector.shape_cast %37 : vector<1x16x512xf32> to vector<16x512xf32>
    %39 = vector.broadcast %1 : vector<16x1xf32> to vector<16x512xf32>
    %40 = arith.mulf %38, %39 : vector<16x512xf32>
    %cst_17 = arith.constant dense<0.000000e+00> : vector<512xf32>
    %41 = vector.multi_reduction <add>, %40, %cst_17 [0] : vector<16x512xf32> to vector<512xf32>
    %42 = vector.shape_cast %41 : vector<512xf32> to vector<1x512xf32>
    %cst_18 = arith.constant 6.250000e-02 : f32
    %43 = vector.broadcast %cst_18 : f32 to vector<1x512xf32>
    %44 = arith.mulf %42, %43 : vector<1x512xf32>
    %cst_19 = arith.constant dense<0xFF800000> : vector<512xf32>
    %45 = vector.multi_reduction <maximumf>, %40, %cst_19 [0] : vector<16x512xf32> to vector<512xf32>
    %46 = vector.shape_cast %45 : vector<512xf32> to vector<1x512xf32>
    %47 = vector.broadcast %2 : f32 to vector<1x512xf32>
    %48 = arith.mulf %47, %46 : vector<1x512xf32>
    %49 = vector.broadcast %3 : f32 to vector<1x512xf32>
    %50 = arith.mulf %49, %44 : vector<1x512xf32>
    %51 = arith.addf %48, %50 : vector<1x512xf32>
    %52 = vector.broadcast %4 : f32 to vector<1x512xf32>
    %53 = arith.mulf %51, %52 : vector<1x512xf32>
    %54 = vector.broadcast %5 : f32 to vector<1x512xf32>
    %55 = arith.addf %53, %54 : vector<1x512xf32>
    %cst_20 = arith.constant 0.000000e+00 : f32
    %56 = vector.broadcast %cst_20 : f32 to vector<1x512xf32>
    %57 = arith.maximumf %55, %56 : vector<1x512xf32>
    %58 = arith.negf %57 : vector<1x512xf32>
    %59 = math.exp %58 : vector<1x512xf32>
    %cst_21 = arith.constant 1.000000e+00 : f32
    %60 = vector.broadcast %cst_21 : f32 to vector<1x512xf32>
    %61 = arith.addf %60, %59 : vector<1x512xf32>
    %62 = arith.divf %60, %61 : vector<1x512xf32>
    %63 = vector.broadcast %62 : vector<1x512xf32> to vector<16x512xf32>
    %64 = arith.mulf %40, %63 : vector<16x512xf32>
    %c0_22 = arith.constant 0 : index
    %c0_23 = arith.constant 0 : index
    %c512_24 = arith.constant 512 : index
    %65 = vector.load %arg6[%c0_22, %c0_23, %c512_24] : memref<1x16x2048xf32, #tpu.memory_space<vmem>>, vector<1x16x512xf32>
    %66 = vector.shape_cast %65 : vector<1x16x512xf32> to vector<16x512xf32>
    %67 = vector.shape_cast %64 : vector<16x512xf32> to vector<1x16x512xf32>
    tpu.vector_store %arg6[%c0_22, %c0_23, %c512_24], %67 {strides = array<i32>} : memref<1x16x2048xf32, #tpu.memory_space<vmem>>, vector<1x16x512xf32>,
    %c0_25 = arith.constant 0 : index
    %c0_26 = arith.constant 0 : index
    %c1024 = arith.constant 1024 : index
    %68 = vector.load %arg2[%c0_25, %c0_26, %c1024] : memref<1x16x2048xf32, #tpu.memory_space<vmem>>, vector<1x16x512xf32>
    %69 = vector.shape_cast %68 : vector<1x16x512xf32> to vector<16x512xf32>
    %70 = vector.broadcast %1 : vector<16x1xf32> to vector<16x512xf32>
    %71 = arith.mulf %69, %70 : vector<16x512xf32>
    %cst_27 = arith.constant dense<0.000000e+00> : vector<512xf32>
    %72 = vector.multi_reduction <add>, %71, %cst_27 [0] : vector<16x512xf32> to vector<512xf32>
    %73 = vector.shape_cast %72 : vector<512xf32> to vector<1x512xf32>
    %cst_28 = arith.constant 6.250000e-02 : f32
    %74 = vector.broadcast %cst_28 : f32 to vector<1x512xf32>
    %75 = arith.mulf %73, %74 : vector<1x512xf32>
    %cst_29 = arith.constant dense<0xFF800000> : vector<512xf32>
    %76 = vector.multi_reduction <maximumf>, %71, %cst_29 [0] : vector<16x512xf32> to vector<512xf32>
    %77 = vector.shape_cast %76 : vector<512xf32> to vector<1x512xf32>
    %78 = vector.broadcast %2 : f32 to vector<1x512xf32>
    %79 = arith.mulf %78, %77 : vector<1x512xf32>
    %80 = vector.broadcast %3 : f32 to vector<1x512xf32>
    %81 = arith.mulf %80, %75 : vector<1x512xf32>
    %82 = arith.addf %79, %81 : vector<1x512xf32>
    %83 = vector.broadcast %4 : f32 to vector<1x512xf32>
    %84 = arith.mulf %82, %83 : vector<1x512xf32>
    %85 = vector.broadcast %5 : f32 to vector<1x512xf32>
    %86 = arith.addf %84, %85 : vector<1x512xf32>
    %cst_30 = arith.constant 0.000000e+00 : f32
    %87 = vector.broadcast %cst_30 : f32 to vector<1x512xf32>
    %88 = arith.maximumf %86, %87 : vector<1x512xf32>
    %89 = arith.negf %88 : vector<1x512xf32>
    %90 = math.exp %89 : vector<1x512xf32>
    %cst_31 = arith.constant 1.000000e+00 : f32
    %91 = vector.broadcast %cst_31 : f32 to vector<1x512xf32>
    %92 = arith.addf %91, %90 : vector<1x512xf32>
    %93 = arith.divf %91, %92 : vector<1x512xf32>
    %94 = vector.broadcast %93 : vector<1x512xf32> to vector<16x512xf32>
    %95 = arith.mulf %71, %94 : vector<16x512xf32>
    %c0_32 = arith.constant 0 : index
    %c0_33 = arith.constant 0 : index
    %c1024_34 = arith.constant 1024 : index
    %96 = vector.load %arg6[%c0_32, %c0_33, %c1024_34] : memref<1x16x2048xf32, #tpu.memory_space<vmem>>, vector<1x16x512xf32>
    %97 = vector.shape_cast %96 : vector<1x16x512xf32> to vector<16x512xf32>
    %98 = vector.shape_cast %95 : vector<16x512xf32> to vector<1x16x512xf32>
    tpu.vector_store %arg6[%c0_32, %c0_33, %c1024_34], %98 {strides = array<i32>} : memref<1x16x2048xf32, #tpu.memory_space<vmem>>, vector<1x16x512xf32>,
    %c0_35 = arith.constant 0 : index
    %c0_36 = arith.constant 0 : index
    %c1536 = arith.constant 1536 : index
    %99 = vector.load %arg2[%c0_35, %c0_36, %c1536] : memref<1x16x2048xf32, #tpu.memory_space<vmem>>, vector<1x16x512xf32>
    %100 = vector.shape_cast %99 : vector<1x16x512xf32> to vector<16x512xf32>
    %101 = vector.broadcast %1 : vector<16x1xf32> to vector<16x512xf32>
    %102 = arith.mulf %100, %101 : vector<16x512xf32>
    %cst_37 = arith.constant dense<0.000000e+00> : vector<512xf32>
    %103 = vector.multi_reduction <add>, %102, %cst_37 [0] : vector<16x512xf32> to vector<512xf32>
    %104 = vector.shape_cast %103 : vector<512xf32> to vector<1x512xf32>
    %cst_38 = arith.constant 6.250000e-02 : f32
    %105 = vector.broadcast %cst_38 : f32 to vector<1x512xf32>
    %106 = arith.mulf %104, %105 : vector<1x512xf32>
    %cst_39 = arith.constant dense<0xFF800000> : vector<512xf32>
    %107 = vector.multi_reduction <maximumf>, %102, %cst_39 [0] : vector<16x512xf32> to vector<512xf32>
    %108 = vector.shape_cast %107 : vector<512xf32> to vector<1x512xf32>
    %109 = vector.broadcast %2 : f32 to vector<1x512xf32>
    %110 = arith.mulf %109, %108 : vector<1x512xf32>
    %111 = vector.broadcast %3 : f32 to vector<1x512xf32>
    %112 = arith.mulf %111, %106 : vector<1x512xf32>
    %113 = arith.addf %110, %112 : vector<1x512xf32>
    %114 = vector.broadcast %4 : f32 to vector<1x512xf32>
    %115 = arith.mulf %113, %114 : vector<1x512xf32>
    %116 = vector.broadcast %5 : f32 to vector<1x512xf32>
    %117 = arith.addf %115, %116 : vector<1x512xf32>
    %cst_40 = arith.constant 0.000000e+00 : f32
    %118 = vector.broadcast %cst_40 : f32 to vector<1x512xf32>
    %119 = arith.maximumf %117, %118 : vector<1x512xf32>
    %120 = arith.negf %119 : vector<1x512xf32>
    %121 = math.exp %120 : vector<1x512xf32>
    %cst_41 = arith.constant 1.000000e+00 : f32
    %122 = vector.broadcast %cst_41 : f32 to vector<1x512xf32>
    %123 = arith.addf %122, %121 : vector<1x512xf32>
    %124 = arith.divf %122, %123 : vector<1x512xf32>
    %125 = vector.broadcast %124 : vector<1x512xf32> to vector<16x512xf32>
    %126 = arith.mulf %102, %125 : vector<16x512xf32>
    %c0_42 = arith.constant 0 : index
    %c0_43 = arith.constant 0 : index
    %c1536_44 = arith.constant 1536 : index
    %127 = vector.load %arg6[%c0_42, %c0_43, %c1536_44] : memref<1x16x2048xf32, #tpu.memory_space<vmem>>, vector<1x16x512xf32>
    %128 = vector.shape_cast %127 : vector<1x16x512xf32> to vector<16x512xf32>
    %129 = vector.shape_cast %126 : vector<16x512xf32> to vector<1x16x512xf32>
    tpu.vector_store %arg6[%c0_42, %c0_43, %c1536_44], %129 {strides = array<i32>} : memref<1x16x2048xf32, #tpu.memory_space<vmem>>, vector<1x16x512xf32>,
    return
  }
  func.func @transform_0(%arg0: i32, %arg1: i32) -> (i32, i32, i32) {
    %c0_i32 = arith.constant 0 : i32
    %c0_i32_0 = arith.constant 0 : i32
    return %arg0, %c0_i32, %arg1 : i32, i32, i32
  }
  func.func @transform_1(%arg0: i32, %arg1: i32) -> (i32, i32, i32) {
    %c0_i32 = arith.constant 0 : i32
    %c0_i32_0 = arith.constant 0 : i32
    %c0_i32_1 = arith.constant 0 : i32
    return %arg0, %c0_i32, %c0_i32_0 : i32, i32, i32
  }
  func.func @transform_2(%arg0: i32, %arg1: i32) -> i32 {
    %c0_i32 = arith.constant 0 : i32
    %c0_i32_0 = arith.constant 0 : i32
    return %c0_i32 : i32
  }
  func.func @transform_3(%arg0: i32, %arg1: i32) -> i32 {
    %c0_i32 = arith.constant 0 : i32
    %c0_i32_0 = arith.constant 0 : i32
    return %c0_i32 : i32
  }
  func.func @transform_4(%arg0: i32, %arg1: i32) -> (i32, i32, i32) {
    %c0_i32 = arith.constant 0 : i32
    %c0_i32_0 = arith.constant 0 : i32
    return %arg0, %c0_i32, %arg1 : i32, i32, i32
  }
}

</mosaic_0001>

<llo_original>
// kernel: cbam_attention.4
$region0: #{cbam_attention.4}
  #allocation0 [shape = 'u32[]', space=smem, size = 0x4, offset = 0x4, fixed_abs, tag = 'smem constant byte address 0x4 - core index']
  #allocation1 [shape = 'u32[144,128]{1,0:T(1,128)}', space=vmem, size = 0x12000, scoped, tag = 'internal scratch']
  #allocation2 [shape = 'f32[1,1]{1,0:T(1,128)}', space=vmem, size = 0x200, scoped, tag = 'scratch operand']
  #allocation3 [shape = 'f32[1,512]{1,0:T(1,128)}', space=vmem, size = 0x800, scoped, tag = 'scratch operand']
  #allocation4 [shape = 'f32[1,512]{1,0:T(1,128)}', space=vmem, size = 0x800, scoped, tag = 'scratch operand']
  %s0 = inlined_call_operand.vmem [shape: f32[2,16,2048], index: 0, kind: input, shape index: {}]
  %s1 = inlined_call_operand.vmem [shape: f32[2,16,1], index: 1, kind: input, shape index: {}]
  %s2 = inlined_call_operand.vmem [shape: f32[2], index: 2, kind: input, shape index: {}]
  %s3 = inlined_call_operand.vmem [shape: f32[2,1,1], index: 3, kind: output, shape index: {0}]
  %s4 = inlined_call_operand.vmem [shape: f32[2,1,1], index: 4, kind: output, shape index: {1}]
  %s5 = inlined_call_operand.vmem [shape: f32[2,1,1], index: 5, kind: output, shape index: {2}]
  %6 = xla_tuple %s3, %s4, %s5
  %s7 = sld [smem:[#allocation0]]
  $region77: #{cbam_attention.4} parent=0
    _
  %s9 = ssub.s32 1, %s7
  %s10 = scalar_select 0, %s9, %s7
  $region1: #{cbam_attention.4} parent=0
    #allocation5 [shape = 'u8[512]{0}', space=smem, size = 0x200, scoped, tag = 'input window, operand 2, single buffered']
    #allocation6 [shape = 's32[2]{0}', space=sflag, size = 0x8, scoped, tag = 'scoped memory for cbam_attention.4']
    %11 = vsyncpa [#allocation6], 0
    loop: start=0, step=1, limit=4
    $region2: #{cbam_attention.4} parent=1 // loop_pre_header
      _
    $region3: #{cbam_attention.4} parent=1 // loop_header
      %s13 = sphi 0, %s17
      %p14 = scmp.ge.s32.totalorder %s13, 4
      %s20 = sphi 0, %s32
      %s21 = sphi 0, %s28
      %s22 = sphi 0, %s20
      %s23 = sphi 0, %s21
      %s24 = sphi 0, %s22
      %s25 = sphi 0, %s23
      %s37 = sphi 0, %s39
      %s40 = sphi 0, %s37
      %s41 = sphi 0, %s40
      %s57 = sphi 0, %s41
      %s63 = sphi 0, %s65
      %s66 = sphi 0, %s63
      %s67 = sphi 0, %s66
      %s83 = sphi 0, %s67
      %s87 = sphi 0, %s87
      %s89 = sphi 0, %s87
      %s90 = sphi 0, %s89
      %s104 = sphi 0, %s90
      %s110 = sphi 0, %s112
      %s113 = sphi 0, %s110
      %s114 = sphi 0, %s113
      %s130 = sphi 0, %s114
      %s136 = sphi 0, %s138
      %s139 = sphi 0, %s136
      %s140 = sphi 0, %s139
      %s156 = sphi 0, %s140
      %s162 = sphi 0, %s164
      %s165 = sphi 0, %s162
      %s166 = sphi 0, %s165
      %s182 = sphi 0, %s166
    $region4: #{cbam_attention.4} parent=1 // loop_header_branch
      %16 = sbr.rel (%p14) target = $region8
    $region5: #{cbam_attention.4} parent=1 // loop_body
      %s18 = ssub.s32 %s13, 1
      %s19 = ssub.s32 %s13, 2
      %s26 = sadd.s32 1, %s21
      %p27 = scmp.ge.s32.totalorder %s26, 1
      %s28 = scalar_select %p27, 0, %s26
      %s29 = sadd.s32 1, %s20
      %s30 = scalar_select %p27, %s29, %s20
      %p31 = scmp.ge.s32.totalorder %s30, 2
      %s32 = scalar_select %p31, 0, %s30
      %s33 = ssub.s32 %s20, %s32
      %s34 = ssub.s32 %s21, %s28
      %s35 = sor.u32 %s33, %s34
      %p36 = scmp.eq.s32.totalorder %s35, 0
      %s38 = sadd.s32 %s37, 1
      %s39 = scalar_select %p36, %s37, %s38
      %p42 = pneg %p36
      %p43 = scmp.eq.s32.totalorder %s13, 1
      %p44 = por %p42, %p43
      %p45 = scmp.ne.s32.totalorder %s37, %s40
      %p46 = scmp.eq.s32.totalorder %s13, 0
      %p47 = por %p45, %p46
      %p48 = scmp.ne.s32.totalorder %s37, %s40
      %p49 = scmp.eq.s32.totalorder %s18, 1
      %p50 = por %p48, %p49
      %p51 = scmp.ne.s32.totalorder %s40, %s41
      %p52 = scmp.eq.s32.totalorder %s18, 0
      %p53 = por %p51, %p52
      %p54 = scmp.ne.s32.totalorder %s40, %s41
      %p55 = scmp.eq.s32.totalorder %s19, 1
      %p56 = por %p54, %p55
      %p58 = scmp.ne.s32.totalorder %s41, %s57
      %p59 = scmp.eq.s32.totalorder %s19, 0
      %p60 = por %p58, %p59
      %s61 = ssub.s32 %s20, %s32
      %p62 = scmp.eq.s32.totalorder %s61, 0
      %s64 = sadd.s32 %s63, 1
      %s65 = scalar_select %p62, %s63, %s64
      %p68 = pneg %p62
      %p69 = scmp.eq.s32.totalorder %s13, 1
      %p70 = por %p68, %p69
      %p71 = scmp.ne.s32.totalorder %s63, %s66
      %p72 = scmp.eq.s32.totalorder %s13, 0
      %p73 = por %p71, %p72
      %p74 = scmp.ne.s32.totalorder %s63, %s66
      %p75 = scmp.eq.s32.totalorder %s18, 1
      %p76 = por %p74, %p75
      %p77 = scmp.ne.s32.totalorder %s66, %s67
      %p78 = scmp.eq.s32.totalorder %s18, 0
      %p79 = por %p77, %p78
      %p80 = scmp.ne.s32.totalorder %s66, %s67
      %p81 = scmp.eq.s32.totalorder %s19, 1
      %p82 = por %p80, %p81
      %p84 = scmp.ne.s32.totalorder %s67, %s83
      %p85 = scmp.eq.s32.totalorder %s19, 0
      %p86 = por %p84, %p85
      %s88 = sadd.s32 %s87, 1
      %p91 = scmp.eq.s32.totalorder %s13, 1
      %p92 = scmp.ne.s32.totalorder %s87, %s89
      %p93 = scmp.eq.s32.totalorder %s13, 0
      %p94 = por %p92, %p93
      %p95 = scmp.ne.s32.totalorder %s87, %s89
      %p96 = scmp.eq.s32.totalorder %s18, 1
      %p97 = por %p95, %p96
      %p98 = scmp.ne.s32.totalorder %s89, %s90
      %p99 = scmp.eq.s32.totalorder %s18, 0
      %p100 = por %p98, %p99
      %p101 = scmp.ne.s32.totalorder %s89, %s90
      %p102 = scmp.eq.s32.totalorder %s19, 1
      %p103 = por %p101, %p102
      %p105 = scmp.ne.s32.totalorder %s90, %s104
      %p106 = scmp.eq.s32.totalorder %s19, 0
      %p107 = por %p105, %p106
      %s108 = ssub.s32 %s20, %s32
      %p109 = scmp.eq.s32.totalorder %s108, 0
      %s111 = sadd.s32 %s110, 1
      %s112 = scalar_select %p109, %s110, %s111
      %p115 = pneg %p109
      %p116 = scmp.eq.s32.totalorder %s13, 1
      %p117 = por %p115, %p116
      %p118 = scmp.ne.s32.totalorder %s110, %s113
      %p119 = scmp.eq.s32.totalorder %s13, 0
      %p120 = por %p118, %p119
      %p121 = scmp.ne.s32.totalorder %s110, %s113
      %p122 = scmp.eq.s32.totalorder %s18, 1
      %p123 = por %p121, %p122
      %p124 = scmp.ne.s32.totalorder %s113, %s114
      %p125 = scmp.eq.s32.totalorder %s18, 0
      %p126 = por %p124, %p125
      %p127 = scmp.ne.s32.totalorder %s113, %s114
      %p128 = scmp.eq.s32.totalorder %s19, 1
      %p129 = por %p127, %p128
      %p131 = scmp.ne.s32.totalorder %s114, %s130
      %p132 = scmp.eq.s32.totalorder %s19, 0
      %p133 = por %p131, %p132
      %s134 = ssub.s32 %s20, %s32
      %p135 = scmp.eq.s32.totalorder %s134, 0
      %s137 = sadd.s32 %s136, 1
      %s138 = scalar_select %p135, %s136, %s137
      %p141 = pneg %p135
      %p142 = scmp.eq.s32.totalorder %s13, 1
      %p143 = por %p141, %p142
      %p144 = scmp.ne.s32.totalorder %s136, %s139
      %p145 = scmp.eq.s32.totalorder %s13, 0
      %p146 = por %p144, %p145
      %p147 = scmp.ne.s32.totalorder %s136, %s139
      %p148 = scmp.eq.s32.totalorder %s18, 1
      %p149 = por %p147, %p148
      %p150 = scmp.ne.s32.totalorder %s139, %s140
      %p151 = scmp.eq.s32.totalorder %s18, 0
      %p152 = por %p150, %p151
      %p153 = scmp.ne.s32.totalorder %s139, %s140
      %p154 = scmp.eq.s32.totalorder %s19, 1
      %p155 = por %p153, %p154
      %p157 = scmp.ne.s32.totalorder %s140, %s156
      %p158 = scmp.eq.s32.totalorder %s19, 0
      %p159 = por %p157, %p158
      %s160 = ssub.s32 %s20, %s32
      %p161 = scmp.eq.s32.totalorder %s160, 0
      %s163 = sadd.s32 %s162, 1
      %s164 = scalar_select %p161, %s162, %s163
      %p167 = pneg %p161
      %p168 = scmp.eq.s32.totalorder %s13, 1
      %p169 = por %p167, %p168
      %p170 = scmp.ne.s32.totalorder %s162, %s165
      %p171 = scmp.eq.s32.totalorder %s13, 0
      %p172 = por %p170, %p171
      %p173 = scmp.ne.s32.totalorder %s162, %s165
      %p174 = scmp.eq.s32.totalorder %s18, 1
      %p175 = por %p173, %p174
      %p176 = scmp.ne.s32.totalorder %s165, %s166
      %p177 = scmp.eq.s32.totalorder %s18, 0
      %p178 = por %p176, %p177
      %p179 = scmp.ne.s32.totalorder %s165, %s166
      %p180 = scmp.eq.s32.totalorder %s19, 1
      %p181 = por %p179, %p180
      %p183 = scmp.ne.s32.totalorder %s166, %s182
      %p184 = scmp.eq.s32.totalorder %s19, 0
      %p185 = por %p183, %p184
      %p186 = scmp.le.s32.totalorder 1, %s13
      %p187 = scmp.lt.s32.totalorder %s13, 3
      %p188 = pnand %p186, %p187
      %p189 = pneg %p188
      // Predicated region
      $region9: #{cbam_attention.4} parent=5 // pred_check
        _
      $region10: #{cbam_attention.4} parent=5 // pred_check_branch
        %191 = sbr.rel (%p188) target = $region12
      $region11: #{cbam_attention.4} parent=5 // pred_region
        %s192 = ssub.s32 %s13, 1
        // Predicated region
        $region13: #{cbam_attention.4} parent=11 // pred_check
          %p193 = pneg %p100
        $region14: #{cbam_attention.4} parent=11 // pred_check_branch
          %195 = sbr.rel (%p193) target = $region16
        $region15: #{cbam_attention.4} parent=11 // pred_region
          %s197 = ssub.s32 16, 16
          %198 = vsyncadd [#allocation6], %s197
          %s200 = sshll.u32 %s2, 4
          %s201 = int_to_ptr.vmem [resolvable:$true] %s200
          %203 = dma.vmem_to_smem %s201, 16, [#allocation5], [#allocation6]
        $region16: #{cbam_attention.4} parent=11 // pred_fallthru
          _
      $region12: #{cbam_attention.4} parent=5 // pred_fallthru
        _
      %p204 = scmp.lt.s32.totalorder %s13, 2
      // Predicated region
      $region17: #{cbam_attention.4} parent=5 // pred_check
        %p205 = pneg %p204
      $region18: #{cbam_attention.4} parent=5 // pred_check_branch
        %207 = sbr.rel (%p205) target = $region20
      $region19: #{cbam_attention.4} parent=5 // pred_region
        // Predicated region
        $region21: #{cbam_attention.4} parent=19 // pred_check
          %p208 = pneg %p47
        $region22: #{cbam_attention.4} parent=19 // pred_check_branch
          %210 = sbr.rel (%p208) target = $region24
        $region23: #{cbam_attention.4} parent=19 // pred_region
          %s211 = smul.u32 16, %s21
          %p212 = scmp.lt.s32.totalorder %s20, 1
          %s213 = scalar_select %p212, %s20, 1
          %p214 = scmp.lt.s32.totalorder %s211, 15
          %s215 = scalar_select %p214, %s211, 15
          %s216 = smul.addr %s213, 32
          %s217 = sadd.s32 %s215, %s216
          %s218 = smul.addr %s217, 8
          %s219 = scalar_lea.vmem %s0, %s218
          %s220 = smul.u32 16, %s21
        $region24: #{cbam_attention.4} parent=19 // pred_fallthru
          _
        // Predicated region
        $region25: #{cbam_attention.4} parent=19 // pred_check
          %p221 = pneg %p73
        $region26: #{cbam_attention.4} parent=19 // pred_check_branch
          %223 = sbr.rel (%p221) target = $region28
        $region27: #{cbam_attention.4} parent=19 // pred_region
          %p224 = scmp.lt.s32.totalorder %s20, 1
          %s225 = scalar_select %p224, %s20, 1
          %s226 = smul.addr %s225, 2
          %s227 = smul.addr %s226, 8
          %s228 = scalar_lea.vmem %s1, %s227
        $region28: #{cbam_attention.4} parent=19 // pred_fallthru
          _
      $region20: #{cbam_attention.4} parent=5 // pred_fallthru
        _
      %p229 = scmp.le.s32.totalorder 1, %s13
      %p230 = scmp.lt.s32.totalorder %s13, 3
      %p231 = pnand %p229, %p230
      %p232 = pneg %p231
      // Predicated region
      $region29: #{cbam_attention.4} parent=5 // pred_check
        _
      $region30: #{cbam_attention.4} parent=5 // pred_check_branch
        %234 = sbr.rel (%p231) target = $region32
      $region31: #{cbam_attention.4} parent=5 // pred_region
        %s235 = ssub.s32 %s13, 1
        // Predicated region
        $region33: #{cbam_attention.4} parent=31 // pred_check
          %p236 = pneg %p100
        $region34: #{cbam_attention.4} parent=31 // pred_check_branch
          %238 = sbr.rel (%p236) target = $region36
        $region35: #{cbam_attention.4} parent=31 // pred_region
          %239 = dma.done [#allocation6], 16
        $region36: #{cbam_attention.4} parent=31 // pred_fallthru
          _
        %240 = sfence
        %s241 = smul.u32 16, %s23
        %p242 = scmp.lt.s32.totalorder %s22, 1
        %s243 = scalar_select %p242, %s22, 1
        %p244 = scmp.lt.s32.totalorder %s241, 15
        %s245 = scalar_select %p244, %s241, 15
        %s246 = smul.addr %s243, 32
        %s247 = sadd.s32 %s245, %s246
        %s248 = smul.addr %s247, 8
        %s249 = scalar_lea.vmem %s0, %s248
        %p250 = pneg %p53
        %p251 = pneg %p50
        %p252 = scmp.lt.s32.totalorder %s22, 1
        %s253 = scalar_select %p252, %s22, 1
        %s254 = smul.addr %s253, 2
        %s255 = smul.addr %s254, 8
        %s256 = scalar_lea.vmem %s1, %s255
        %p257 = pneg %p79
        %p258 = pneg %p76
        %p259 = pneg %p100
        %p260 = pneg %p97
        %p261 = pneg %p126
        %p262 = pneg %p123
        %p263 = scmp.lt.s32.totalorder %s22, 1
        %s264 = scalar_select %p263, %s22, 1
        %s265 = scalar_lea.vmem %s3, %s264
        %p266 = pneg %p152
        %p267 = pneg %p149
        %p268 = scmp.lt.s32.totalorder %s22, 1
        %s269 = scalar_select %p268, %s22, 1
        %s270 = scalar_lea.vmem %s4, %s269
        %p271 = pneg %p178
        %p272 = pneg %p175
        %p273 = scmp.lt.s32.totalorder %s22, 1
        %s274 = scalar_select %p273, %s22, 1
        %s275 = scalar_lea.vmem %s5, %s274
        %s276 = smul.u32 16, %s23
        %p277 = scmp.lt.s32.totalorder %s22, 1
        %s278 = scalar_select %p277, %s22, 1
        %p279 = scmp.lt.s32.totalorder %s276, 15
        %s280 = scalar_select %p279, %s276, 15
        %s281 = smul.addr %s278, 32
        %s282 = sadd.s32 %s280, %s281
        %s283 = smul.addr %s282, 8
        %s284 = scalar_lea.vmem %s0, %s283
        %s285 = smul.u32 16, %s23
        %p286 = scmp.lt.s32.totalorder %s22, 1
        %s287 = scalar_select %p286, %s22, 1
        %s288 = smul.addr %s287, 2
        %s289 = smul.addr %s288, 8
        %s290 = scalar_lea.vmem %s1, %s289
        %p291 = scmp.lt.s32.totalorder %s22, 1
        %s292 = scalar_select %p291, %s22, 1
        %s293 = scalar_lea.vmem %s3, %s292
        %p294 = scmp.lt.s32.totalorder %s22, 1
        %s295 = scalar_select %p294, %s22, 1
        %s296 = scalar_lea.vmem %s4, %s295
        %p297 = scmp.lt.s32.totalorder %s22, 1
        %s298 = scalar_select %p297, %s22, 1
        %s299 = scalar_lea.vmem %s5, %s298
        %p300 = scmp.eq.s32.totalorder %s23, 0
        // Predicated region
        $region37: #{cbam_attention.4} parent=31 // pred_check
          %p301 = pneg %p300
        $region38: #{cbam_attention.4} parent=31 // pred_check_branch
          %303 = sbr.rel (%p301) target = $region40
        $region39: #{cbam_attention.4} parent=31 // pred_region
          %v304 = vlaneseq
          %vm305 = vcmp.ge.s32.totalorder %v304, 0
          %vm306 = vcmp.lt.s32.totalorder %v304, 512
          %vm307 = vmand %vm305, %vm306
          %308 = vst.msk [vmem:[#allocation3] sm:$0xf] %vm307, 0.0
          %309 = vst.msk [vmem:[#allocation4] sm:$0xf] %vm307, 0.0
        $region40: #{cbam_attention.4} parent=31 // pred_fallthru
          _
        %v310 = vld [vmem:[%s290] sm:$0xff]
        %v311 = vld [vmem:[%s290 + $0x8] sm:$0xff]
        %s312 = sld [smem:[#allocation5]]
        %s313 = sld [smem:[#allocation5 + $0x1]]
        %v314 = vld [vmem:[%s284] sm:$0xff]
        %v315 = vld [vmem:[%s284 + $0x8] sm:$0xff]
        %v316 = vld [vmem:[%s284 + $0x10] sm:$0xff]
        %v317 = vld [vmem:[%s284 + $0x18] sm:$0xff]
        %v318 = vld [vmem:[%s284 + $0x80] sm:$0xff]
        %v319 = vld [vmem:[%s284 + $0x88] sm:$0xff]
        %v320 = vld [vmem:[%s284 + $0x90] sm:$0xff]
        %v321 = vld [vmem:[%s284 + $0x98] sm:$0xff]
        %323 = vset.pattern.permute.xlu0 0
        %324 = vperm.xlu0 %323, %v310
        %v325 = vpop.permute.xlu0 %324
        %328 = vset.pattern.permute.xlu0 0
        %329 = vperm.xlu0 %328, %v311
        %v330 = vpop.permute.xlu0 %329
        %v332 = vmul.f32 %v314, %v325
        %v333 = vmul.f32 %v315, %v325
        %v334 = vmul.f32 %v316, %v325
        %v335 = vmul.f32 %v317, %v325
        %v336 = vmul.f32 %v318, %v330
        %v337 = vmul.f32 %v319, %v330
        %v338 = vmul.f32 %v320, %v330
        %v339 = vmul.f32 %v321, %v330
        %v340 = vadd.f32 %v332, %v336
        %v341 = vrot.slane %v340, 4
        %v342 = vadd.f32 %v340, %v341
        %v343 = vrot.slane %v342, 2
        %v344 = vadd.f32 %v342, %v343
        %v345 = vrot.slane %v344, 1
        %v346 = vadd.f32 %v344, %v345
        %v347 = vadd.f32 %v333, %v337
        %v348 = vrot.slane %v347, 4
        %v349 = vadd.f32 %v347, %v348
        %v350 = vrot.slane %v349, 2
        %v351 = vadd.f32 %v349, %v350
        %v352 = vrot.slane %v351, 1
        %v353 = vadd.f32 %v351, %v352
        %v354 = vadd.f32 %v334, %v338
        %v355 = vrot.slane %v354, 4
        %v356 = vadd.f32 %v354, %v355
        %v357 = vrot.slane %v356, 2
        %v358 = vadd.f32 %v356, %v357
        %v359 = vrot.slane %v358, 1
        %v360 = vadd.f32 %v358, %v359
        %v361 = vadd.f32 %v335, %v339
        %v362 = vrot.slane %v361, 4
        %v363 = vadd.f32 %v361, %v362
        %v364 = vrot.slane %v363, 2
        %v365 = vadd.f32 %v363, %v364
        %v366 = vrot.slane %v365, 1
        %v367 = vadd.f32 %v365, %v366
        %v368 = vmul.f32 %v346, 0.0625
        %v369 = vmul.f32 %v353, 0.0625
        %v370 = vmul.f32 %v360, 0.0625
        %v371 = vmul.f32 %v367, 0.0625
        %v372 = vmax.f32 %v332, %v336
        %v373 = vrot.slane %v372, 4
        %v374 = vmax.f32 %v372, %v373
        %v375 = vrot.slane %v374, 2
        %v376 = vmax.f32 %v374, %v375
        %v377 = vrot.slane %v376, 1
        %v378 = vmax.f32 %v376, %v377
        %v379 = vmax.f32 %v333, %v337
        %v380 = vrot.slane %v379, 4
        %v381 = vmax.f32 %v379, %v380
        %v382 = vrot.slane %v381, 2
        %v383 = vmax.f32 %v381, %v382
        %v384 = vrot.slane %v383, 1
        %v385 = vmax.f32 %v383, %v384
        %v386 = vmax.f32 %v334, %v338
        %v387 = vrot.slane %v386, 4
        %v388 = vmax.f32 %v386, %v387
        %v389 = vrot.slane %v388, 2
        %v390 = vmax.f32 %v388, %v389
        %v391 = vrot.slane %v390, 1
        %v392 = vmax.f32 %v390, %v391
        %v393 = vmax.f32 %v335, %v339
        %v394 = vrot.slane %v393, 4
        %v395 = vmax.f32 %v393, %v394
        %v396 = vrot.slane %v395, 2
        %v397 = vmax.f32 %v395, %v396
        %v398 = vrot.slane %v397, 1
        %v399 = vmax.f32 %v397, %v398
        %v400 = vstv %s312
        %v401 = vmul.f32 %v400, %v378
        %v402 = vmul.f32 %v400, %v385
        %v403 = vmul.f32 %v400, %v392
        %v404 = vmul.f32 %v400, %v399
        %v405 = vstv %s313
        %v406 = vmul.f32 %v405, %v368
        %v407 = vmul.f32 %v405, %v369
        %v408 = vmul.f32 %v405, %v370
        %v409 = vmul.f32 %v405, %v371
        %v410 = vadd.f32 %v401, %v406
        %v411 = vadd.f32 %v402, %v407
        %v412 = vadd.f32 %v403, %v408
        %v413 = vadd.f32 %v404, %v409
        // Predicated region
        $region41: #{cbam_attention.4} parent=31 // pred_check
          %p414 = pneg %p300
        $region42: #{cbam_attention.4} parent=31 // pred_check_branch
          %416 = sbr.rel (%p414) target = $region44
        $region43: #{cbam_attention.4} parent=31 // pred_region
          %vm417 = vcmask 1040384
          %v418 = vsel %vm417, %v410, 0.0
          %v419 = vsel %vm417, %v411, 0.0
          %v420 = vadd.f32 %v418, %v419
          %v421 = vsel %vm417, %v412, 0.0
          %v422 = vadd.f32 %v420, %v421
          %v423 = vsel %vm417, %v413, 0.0
          %v424 = vadd.f32 %v422, %v423
          %425 = vadd.xlane.f32.xlu0 %v424
          %v426 = vpop.xlane.xlu0 %425
          %v427 = vrot.slane %v426, 4
          %v428 = vadd.f32 %v426, %v427
          %v429 = vrot.slane %v428, 2
          %v430 = vadd.f32 %v428, %v429
          %v431 = vrot.slane %v430, 1
          %v432 = vadd.f32 %v430, %v431
          %s433 = vtos %v432
          %v434 = vstv %s433
          %v435 = vmul.f32 %v434, 0.001953125
          %vm436 = vcmask 0
          %437 = vst.msk [vmem:[#allocation2] sm:$0x1] %vm436, %v435
        $region44: #{cbam_attention.4} parent=31 // pred_fallthru
          _
        %v438 = vld [vmem:[#allocation2] sm:$0x1]
        %440 = vset.pattern.permute.xlu0 0
        %441 = vperm.xlu0 %440, %v438
        %v442 = vpop.permute.xlu0 %441
        %v444 = vlaneseq
        %v445 = vshrl.u32 %v444, 7
        %v446 = vsub.s32 0, %v445
        %v447 = vrot.slane %v442, %v446
        %v448 = vsub.f32 %v410, %v447
        %v449 = vsub.f32 %v411, %v447
        %v450 = vsub.f32 %v412, %v447
        %v451 = vsub.f32 %v413, %v447
        %v452 = vadd.f32 %v448, 0.0
        %v453 = vadd.f32 %v449, 0.0
        %v454 = vadd.f32 %v450, 0.0
        %v455 = vadd.f32 %v451, 0.0
        %v456 = vmul.f32 %v448, %v448
        %v457 = vmul.f32 %v449, %v449
        %v458 = vmul.f32 %v450, %v450
        %v459 = vmul.f32 %v451, %v451
        %v460 = vadd.f32 %v456, 0.0
        %v461 = vadd.f32 %v457, 0.0
        %v462 = vadd.f32 %v458, 0.0
        %v463 = vadd.f32 %v459, 0.0
        %v464 = vld [vmem:[%s284 + $0x20] sm:$0xff]
        %v465 = vld [vmem:[%s284 + $0x28] sm:$0xff]
        %v466 = vld [vmem:[%s284 + $0x30] sm:$0xff]
        %v467 = vld [vmem:[%s284 + $0x38] sm:$0xff]
        %v468 = vld [vmem:[%s284 + $0xa0] sm:$0xff]
        %v469 = vld [vmem:[%s284 + $0xa8] sm:$0xff]
        %v470 = vld [vmem:[%s284 + $0xb0] sm:$0xff]
        %v471 = vld [vmem:[%s284 + $0xb8] sm:$0xff]
        %v472 = vmul.f32 %v464, %v325
        %v473 = vmul.f32 %v465, %v325
        %v474 = vmul.f32 %v466, %v325
        %v475 = vmul.f32 %v467, %v325
        %v476 = vmul.f32 %v468, %v330
        %v477 = vmul.f32 %v469, %v330
        %v478 = vmul.f32 %v470, %v330
        %v479 = vmul.f32 %v471, %v330
        %v480 = vadd.f32 %v472, %v476
        %v481 = vrot.slane %v480, 4
        %v482 = vadd.f32 %v480, %v481
        %v483 = vrot.slane %v482, 2
        %v484 = vadd.f32 %v482, %v483
        %v485 = vrot.slane %v484, 1
        %v486 = vadd.f32 %v484, %v485
        %v487 = vadd.f32 %v473, %v477
        %v488 = vrot.slane %v487, 4
        %v489 = vadd.f32 %v487, %v488
        %v490 = vrot.slane %v489, 2
        %v491 = vadd.f32 %v489, %v490
        %v492 = vrot.slane %v491, 1
        %v493 = vadd.f32 %v491, %v492
        %v494 = vadd.f32 %v474, %v478
        %v495 = vrot.slane %v494, 4
        %v496 = vadd.f32 %v494, %v495
        %v497 = vrot.slane %v496, 2
        %v498 = vadd.f32 %v496, %v497
        %v499 = vrot.slane %v498, 1
        %v500 = vadd.f32 %v498, %v499
        %v501 = vadd.f32 %v475, %v479
        %v502 = vrot.slane %v501, 4
        %v503 = vadd.f32 %v501, %v502
        %v504 = vrot.slane %v503, 2
        %v505 = vadd.f32 %v503, %v504
        %v506 = vrot.slane %v505, 1
        %v507 = vadd.f32 %v505, %v506
        %v508 = vmul.f32 %v486, 0.0625
        %v509 = vmul.f32 %v493, 0.0625
        %v510 = vmul.f32 %v500, 0.0625
        %v511 = vmul.f32 %v507, 0.0625
        %v512 = vmax.f32 %v472, %v476
        %v513 = vrot.slane %v512, 4
        %v514 = vmax.f32 %v512, %v513
        %v515 = vrot.slane %v514, 2
        %v516 = vmax.f32 %v514, %v515
        %v517 = vrot.slane %v516, 1
        %v518 = vmax.f32 %v516, %v517
        %v519 = vmax.f32 %v473, %v477
        %v520 = vrot.slane %v519, 4
        %v521 = vmax.f32 %v519, %v520
        %v522 = vrot.slane %v521, 2
        %v523 = vmax.f32 %v521, %v522
        %v524 = vrot.slane %v523, 1
        %v525 = vmax.f32 %v523, %v524
        %v526 = vmax.f32 %v474, %v478
        %v527 = vrot.slane %v526, 4
        %v528 = vmax.f32 %v526, %v527
        %v529 = vrot.slane %v528, 2
        %v530 = vmax.f32 %v528, %v529
        %v531 = vrot.slane %v530, 1
        %v532 = vmax.f32 %v530, %v531
        %v533 = vmax.f32 %v475, %v479
        %v534 = vrot.slane %v533, 4
        %v535 = vmax.f32 %v533, %v534
        %v536 = vrot.slane %v535, 2
        %v537 = vmax.f32 %v535, %v536
        %v538 = vrot.slane %v537, 1
        %v539 = vmax.f32 %v537, %v538
        %v540 = vmul.f32 %v400, %v518
        %v541 = vmul.f32 %v400, %v525
        %v542 = vmul.f32 %v400, %v532
        %v543 = vmul.f32 %v400, %v539
        %v544 = vmul.f32 %v405, %v508
        %v545 = vmul.f32 %v405, %v509
        %v546 = vmul.f32 %v405, %v510
        %v547 = vmul.f32 %v405, %v511
        %v548 = vadd.f32 %v540, %v544
        %v549 = vadd.f32 %v541, %v545
        %v550 = vadd.f32 %v542, %v546
        %v551 = vadd.f32 %v543, %v547
        %v552 = vsub.f32 %v548, %v447
        %v553 = vsub.f32 %v549, %v447
        %v554 = vsub.f32 %v550, %v447
        %v555 = vsub.f32 %v551, %v447
        %v556 = vadd.f32 %v452, %v552
        %v557 = vadd.f32 %v453, %v553
        %v558 = vadd.f32 %v454, %v554
        %v559 = vadd.f32 %v455, %v555
        %v560 = vmul.f32 %v552, %v552
        %v561 = vmul.f32 %v553, %v553
        %v562 = vmul.f32 %v554, %v554
        %v563 = vmul.f32 %v555, %v555
        %v564 = vadd.f32 %v460, %v560
        %v565 = vadd.f32 %v461, %v561
        %v566 = vadd.f32 %v462, %v562
        %v567 = vadd.f32 %v463, %v563
        %v568 = vld [vmem:[%s284 + $0x40] sm:$0xff]
        %v569 = vld [vmem:[%s284 + $0x48] sm:$0xff]
        %v570 = vld [vmem:[%s284 + $0x50] sm:$0xff]
        %v571 = vld [vmem:[%s284 + $0x58] sm:$0xff]
        %v572 = vld [vmem:[%s284 + $0xc0] sm:$0xff]
        %v573 = vld [vmem:[%s284 + $0xc8] sm:$0xff]
        %v574 = vld [vmem:[%s284 + $0xd0] sm:$0xff]
        %v575 = vld [vmem:[%s284 + $0xd8] sm:$0xff]
        %v576 = vmul.f32 %v568, %v325
        %v577 = vmul.f32 %v569, %v325
        %v578 = vmul.f32 %v570, %v325
        %v579 = vmul.f32 %v571, %v325
        %v580 = vmul.f32 %v572, %v330
        %v581 = vmul.f32 %v573, %v330
        %v582 = vmul.f32 %v574, %v330
        %v583 = vmul.f32 %v575, %v330
        %v584 = vadd.f32 %v576, %v580
        %v585 = vrot.slane %v584, 4
        %v586 = vadd.f32 %v584, %v585
        %v587 = vrot.slane %v586, 2
        %v588 = vadd.f32 %v586, %v587
        %v589 = vrot.slane %v588, 1
        %v590 = vadd.f32 %v588, %v589
        %v591 = vadd.f32 %v577, %v581
        %v592 = vrot.slane %v591, 4
        %v593 = vadd.f32 %v591, %v592
        %v594 = vrot.slane %v593, 2
        %v595 = vadd.f32 %v593, %v594
        %v596 = vrot.slane %v595, 1
        %v597 = vadd.f32 %v595, %v596
        %v598 = vadd.f32 %v578, %v582
        %v599 = vrot.slane %v598, 4
        %v600 = vadd.f32 %v598, %v599
        %v601 = vrot.slane %v600, 2
        %v602 = vadd.f32 %v600, %v601
        %v603 = vrot.slane %v602, 1
        %v604 = vadd.f32 %v602, %v603
        %v605 = vadd.f32 %v579, %v583
        %v606 = vrot.slane %v605, 4
        %v607 = vadd.f32 %v605, %v606
        %v608 = vrot.slane %v607, 2
        %v609 = vadd.f32 %v607, %v608
        %v610 = vrot.slane %v609, 1
        %v611 = vadd.f32 %v609, %v610
        %v612 = vmul.f32 %v590, 0.0625
        %v613 = vmul.f32 %v597, 0.0625
        %v614 = vmul.f32 %v604, 0.0625
        %v615 = vmul.f32 %v611, 0.0625
        %v616 = vmax.f32 %v576, %v580
        %v617 = vrot.slane %v616, 4
        %v618 = vmax.f32 %v616, %v617
        %v619 = vrot.slane %v618, 2
        %v620 = vmax.f32 %v618, %v619
        %v621 = vrot.slane %v620, 1
        %v622 = vmax.f32 %v620, %v621
        %v623 = vmax.f32 %v577, %v581
        %v624 = vrot.slane %v623, 4
        %v625 = vmax.f32 %v623, %v624
        %v626 = vrot.slane %v625, 2
        %v627 = vmax.f32 %v625, %v626
        %v628 = vrot.slane %v627, 1
        %v629 = vmax.f32 %v627, %v628
        %v630 = vmax.f32 %v578, %v582
        %v631 = vrot.slane %v630, 4
        %v632 = vmax.f32 %v630, %v631
        %v633 = vrot.slane %v632, 2
        %v634 = vmax.f32 %v632, %v633
        %v635 = vrot.slane %v634, 1
        %v636 = vmax.f32 %v634, %v635
        %v637 = vmax.f32 %v579, %v583
        %v638 = vrot.slane %v637, 4
        %v639 = vmax.f32 %v637, %v638
        %v640 = vrot.slane %v639, 2
        %v641 = vmax.f32 %v639, %v640
        %v642 = vrot.slane %v641, 1
        %v643 = vmax.f32 %v641, %v642
        %v644 = vmul.f32 %v400, %v622
        %v645 = vmul.f32 %v400, %v629
        %v646 = vmul.f32 %v400, %v636
        %v647 = vmul.f32 %v400, %v643
        %v648 = vmul.f32 %v405, %v612
        %v649 = vmul.f32 %v405, %v613
        %v650 = vmul.f32 %v405, %v614
        %v651 = vmul.f32 %v405, %v615
        %v652 = vadd.f32 %v644, %v648
        %v653 = vadd.f32 %v645, %v649
        %v654 = vadd.f32 %v646, %v650
        %v655 = vadd.f32 %v647, %v651
        %v656 = vsub.f32 %v652, %v447
        %v657 = vsub.f32 %v653, %v447
        %v658 = vsub.f32 %v654, %v447
        %v659 = vsub.f32 %v655, %v447
        %v660 = vadd.f32 %v556, %v656
        %v661 = vadd.f32 %v557, %v657
        %v662 = vadd.f32 %v558, %v658
        %v663 = vadd.f32 %v559, %v659
        %v664 = vmul.f32 %v656, %v656
        %v665 = vmul.f32 %v657, %v657
        %v666 = vmul.f32 %v658, %v658
        %v667 = vmul.f32 %v659, %v659
        %v668 = vadd.f32 %v564, %v664
        %v669 = vadd.f32 %v565, %v665
        %v670 = vadd.f32 %v566, %v666
        %v671 = vadd.f32 %v567, %v667
        %v672 = vld [vmem:[%s284 + $0x60] sm:$0xff]
        %v673 = vld [vmem:[%s284 + $0x68] sm:$0xff]
        %v674 = vld [vmem:[%s284 + $0x70] sm:$0xff]
        %v675 = vld [vmem:[%s284 + $0x78] sm:$0xff]
        %v676 = vld [vmem:[%s284 + $0xe0] sm:$0xff]
        %v677 = vld [vmem:[%s284 + $0xe8] sm:$0xff]
        %v678 = vld [vmem:[%s284 + $0xf0] sm:$0xff]
        %v679 = vld [vmem:[%s284 + $0xf8] sm:$0xff]
        %v680 = vmul.f32 %v672, %v325
        %v681 = vmul.f32 %v673, %v325
        %v682 = vmul.f32 %v674, %v325
        %v683 = vmul.f32 %v675, %v325
        %v684 = vmul.f32 %v676, %v330
        %v685 = vmul.f32 %v677, %v330
        %v686 = vmul.f32 %v678, %v330
        %v687 = vmul.f32 %v679, %v330
        %v688 = vadd.f32 %v680, %v684
        %v689 = vrot.slane %v688, 4
        %v690 = vadd.f32 %v688, %v689
        %v691 = vrot.slane %v690, 2
        %v692 = vadd.f32 %v690, %v691
        %v693 = vrot.slane %v692, 1
        %v694 = vadd.f32 %v692, %v693
        %v695 = vadd.f32 %v681, %v685
        %v696 = vrot.slane %v695, 4
        %v697 = vadd.f32 %v695, %v696
        %v698 = vrot.slane %v697, 2
        %v699 = vadd.f32 %v697, %v698
        %v700 = vrot.slane %v699, 1
        %v701 = vadd.f32 %v699, %v700
        %v702 = vadd.f32 %v682, %v686
        %v703 = vrot.slane %v702, 4
        %v704 = vadd.f32 %v702, %v703
        %v705 = vrot.slane %v704, 2
        %v706 = vadd.f32 %v704, %v705
        %v707 = vrot.slane %v706, 1
        %v708 = vadd.f32 %v706, %v707
        %v709 = vadd.f32 %v683, %v687
        %v710 = vrot.slane %v709, 4
        %v711 = vadd.f32 %v709, %v710
        %v712 = vrot.slane %v711, 2
        %v713 = vadd.f32 %v711, %v712
        %v714 = vrot.slane %v713, 1
        %v715 = vadd.f32 %v713, %v714
        %v716 = vmul.f32 %v694, 0.0625
        %v717 = vmul.f32 %v701, 0.0625
        %v718 = vmul.f32 %v708, 0.0625
        %v719 = vmul.f32 %v715, 0.0625
        %v720 = vmax.f32 %v680, %v684
        %v721 = vrot.slane %v720, 4
        %v722 = vmax.f32 %v720, %v721
        %v723 = vrot.slane %v722, 2
        %v724 = vmax.f32 %v722, %v723
        %v725 = vrot.slane %v724, 1
        %v726 = vmax.f32 %v724, %v725
        %v727 = vmax.f32 %v681, %v685
        %v728 = vrot.slane %v727, 4
        %v729 = vmax.f32 %v727, %v728
        %v730 = vrot.slane %v729, 2
        %v731 = vmax.f32 %v729, %v730
        %v732 = vrot.slane %v731, 1
        %v733 = vmax.f32 %v731, %v732
        %v734 = vmax.f32 %v682, %v686
        %v735 = vrot.slane %v734, 4
        %v736 = vmax.f32 %v734, %v735
        %v737 = vrot.slane %v736, 2
        %v738 = vmax.f32 %v736, %v737
        %v739 = vrot.slane %v738, 1
        %v740 = vmax.f32 %v738, %v739
        %v741 = vmax.f32 %v683, %v687
        %v742 = vrot.slane %v741, 4
        %v743 = vmax.f32 %v741, %v742
        %v744 = vrot.slane %v743, 2
        %v745 = vmax.f32 %v743, %v744
        %v746 = vrot.slane %v745, 1
        %v747 = vmax.f32 %v745, %v746
        %v748 = vmul.f32 %v400, %v726
        %v749 = vmul.f32 %v400, %v733
        %v750 = vmul.f32 %v400, %v740
        %v751 = vmul.f32 %v400, %v747
        %v752 = vmul.f32 %v405, %v716
        %v753 = vmul.f32 %v405, %v717
        %v754 = vmul.f32 %v405, %v718
        %v755 = vmul.f32 %v405, %v719
        %v756 = vadd.f32 %v748, %v752
        %v757 = vadd.f32 %v749, %v753
        %v758 = vadd.f32 %v750, %v754
        %v759 = vadd.f32 %v751, %v755
        %v760 = vsub.f32 %v756, %v447
        %v761 = vsub.f32 %v757, %v447
        %v762 = vsub.f32 %v758, %v447
        %v763 = vsub.f32 %v759, %v447
        %v764 = vadd.f32 %v660, %v760
        %v765 = vadd.f32 %v661, %v761
        %v766 = vadd.f32 %v662, %v762
        %v767 = vadd.f32 %v663, %v763
        %v768 = vmul.f32 %v760, %v760
        %v769 = vmul.f32 %v761, %v761
        %v770 = vmul.f32 %v762, %v762
        %v771 = vmul.f32 %v763, %v763
        %v772 = vadd.f32 %v668, %v768
        %v773 = vadd.f32 %v669, %v769
        %v774 = vadd.f32 %v670, %v770
        %v775 = vadd.f32 %v671, %v771
        %v776 = vld [vmem:[#allocation3] sm:$0xf]
        %v781 = vcombine.low %v764, %v765
        %v782 = vcombine.low %v766, %v767
        %v784 = vunpack.c.l.s4 1966171168
        %v785 = vunpack.c.0.s8 %v784
        %v786 = vlaneseq
        %v787 = vshrl.u32 %v786, 7
        %v788 = vsub.s32 %v785, %v787
        %v789 = vrot.slane %v781, %v788
        %v791 = vunpack.c.l.s4 1966171168
        %v792 = vunpack.c.0.s8 %v791
        %v793 = vlaneseq
        %v794 = vshrl.u32 %v793, 7
        %v795 = vsub.s32 %v792, %v794
        %v796 = vrot.slane %v782, %v795
        %v797 = vcombine.low %v789, %v796
        %v799 = vunpack.c.l.s4 1966171168
        %v800 = vunpack.c.0.s8 %v799
        %v801 = vlaneseq
        %v802 = vshrl.u32 %v801, 7
        %v803 = vsub.s32 %v800, %v802
        %v804 = vrot.slane %v797, %v803
        %v806 = vadd.f32 %v776, %v804
        %v807 = vlaneseq
        %vm808 = vcmp.ge.s32.totalorder %v807, 0
        %vm809 = vcmp.lt.s32.totalorder %v807, 512
        %vm810 = vmand %vm808, %vm809
        %811 = vst.msk [vmem:[#allocation3] sm:$0xf] %vm810, %v806
        %v812 = vld [vmem:[#allocation4] sm:$0xf]
        %v817 = vcombine.low %v772, %v773
        %v818 = vcombine.low %v774, %v775
        %v820 = vunpack.c.l.s4 1966171168
        %v821 = vunpack.c.0.s8 %v820
        %v822 = vlaneseq
        %v823 = vshrl.u32 %v822, 7
        %v824 = vsub.s32 %v821, %v823
        %v825 = vrot.slane %v817, %v824
        %v827 = vunpack.c.l.s4 1966171168
        %v828 = vunpack.c.0.s8 %v827
        %v829 = vlaneseq
        %v830 = vshrl.u32 %v829, 7
        %v831 = vsub.s32 %v828, %v830
        %v832 = vrot.slane %v818, %v831
        %v833 = vcombine.low %v825, %v832
        %v835 = vunpack.c.l.s4 1966171168
        %v836 = vunpack.c.0.s8 %v835
        %v837 = vlaneseq
        %v838 = vshrl.u32 %v837, 7
        %v839 = vsub.s32 %v836, %v838
        %v840 = vrot.slane %v833, %v839
        %v842 = vadd.f32 %v812, %v840
        %843 = vst.msk [vmem:[#allocation4] sm:$0xf] %vm810, %v842
        // Predicated region
        $region45: #{cbam_attention.4} parent=31 // pred_check
          %p844 = pneg %p300
        $region46: #{cbam_attention.4} parent=31 // pred_check_branch
          %846 = sbr.rel (%p844) target = $region48
        $region47: #{cbam_attention.4} parent=31 // pred_region
          %v847 = vld [vmem:[#allocation2] sm:$0x1]
          %vm848 = vcmask 0
          %849 = vst.msk [vmem:[%s293] sm:$0x1] %vm848, %v847
          %v850 = vld [vmem:[#allocation3] sm:$0xf]
          %v852 = vlaneseq
          %v853 = vshrl.u32 %v852, 7
          %v854 = vsub.s32 0, %v853
          %v855 = vrot.slane %v850, %v854
          %v856 = vlaneseq
          %v857 = vshrl.u32 %v856, 7
          %v858 = vsub.s32 1, %v857
          %v859 = vrot.slane %v850, %v858
          %v860 = vlaneseq
          %v861 = vshrl.u32 %v860, 7
          %v862 = vsub.s32 2, %v861
          %v863 = vrot.slane %v850, %v862
          %v864 = vlaneseq
          %v865 = vshrl.u32 %v864, 7
          %v866 = vsub.s32 3, %v865
          %v867 = vrot.slane %v850, %v866
          %vm872 = vcmask 1040384
          %v873 = vsel %vm872, %v855, 0.0
          %v874 = vsel %vm872, %v859, 0.0
          %v875 = vadd.f32 %v873, %v874
          %v876 = vsel %vm872, %v863, 0.0
          %v877 = vadd.f32 %v875, %v876
          %v878 = vsel %vm872, %v867, 0.0
          %v879 = vadd.f32 %v877, %v878
          %880 = vadd.xlane.f32.xlu0 %v879
          %v881 = vpop.xlane.xlu0 %880
          %v882 = vrot.slane %v881, 4
          %v883 = vadd.f32 %v881, %v882
          %v884 = vrot.slane %v883, 2
          %v885 = vadd.f32 %v883, %v884
          %v886 = vrot.slane %v885, 1
          %v887 = vadd.f32 %v885, %v886
          %s888 = vtos %v887
          %v889 = vstv %s888
          %890 = vst.msk [vmem:[%s296] sm:$0x1] %vm848, %v889
          %v891 = vld [vmem:[#allocation4] sm:$0xf]
          %v893 = vlaneseq
          %v894 = vshrl.u32 %v893, 7
          %v895 = vsub.s32 0, %v894
          %v896 = vrot.slane %v891, %v895
          %v897 = vlaneseq
          %v898 = vshrl.u32 %v897, 7
          %v899 = vsub.s32 1, %v898
          %v900 = vrot.slane %v891, %v899
          %v901 = vlaneseq
          %v902 = vshrl.u32 %v901, 7
          %v903 = vsub.s32 2, %v902
          %v904 = vrot.slane %v891, %v903
          %v905 = vlaneseq
          %v906 = vshrl.u32 %v905, 7
          %v907 = vsub.s32 3, %v906
          %v908 = vrot.slane %v891, %v907
          %v913 = vsel %vm872, %v896, 0.0
          %v914 = vsel %vm872, %v900, 0.0
          %v915 = vadd.f32 %v913, %v914
          %v916 = vsel %vm872, %v904, 0.0
          %v917 = vadd.f32 %v915, %v916
          %v918 = vsel %vm872, %v908, 0.0
          %v919 = vadd.f32 %v917, %v918
          %920 = vadd.xlane.f32.xlu0 %v919
          %v921 = vpop.xlane.xlu0 %920
          %v922 = vrot.slane %v921, 4
          %v923 = vadd.f32 %v921, %v922
          %v924 = vrot.slane %v923, 2
          %v925 = vadd.f32 %v923, %v924
          %v926 = vrot.slane %v925, 1
          %v927 = vadd.f32 %v925, %v926
          %s928 = vtos %v927
          %v929 = vstv %s928
          %930 = vst.msk [vmem:[%s299] sm:$0x1] %vm848, %v929
        $region48: #{cbam_attention.4} parent=31 // pred_fallthru
          _
        %p931 = scmp.lt.s32.totalorder %s22, 1
        %s932 = scalar_select %p931, %s22, 1
        %s933 = scalar_lea.vmem %s3, %s932
        %p934 = scmp.lt.s32.totalorder %s22, 1
        %s935 = scalar_select %p934, %s22, 1
        %s936 = scalar_lea.vmem %s4, %s935
        %p937 = scmp.lt.s32.totalorder %s22, 1
        %s938 = scalar_select %p937, %s22, 1
        %s939 = scalar_lea.vmem %s5, %s938
        // Predicated region
        $region49: #{cbam_attention.4} parent=31 // pred_check
          %p940 = pneg %p123
        $region50: #{cbam_attention.4} parent=31 // pred_check_branch
          %942 = sbr.rel (%p940) target = $region52
        $region51: #{cbam_attention.4} parent=31 // pred_region
          _
        $region52: #{cbam_attention.4} parent=31 // pred_fallthru
          _
        // Predicated region
        $region53: #{cbam_attention.4} parent=31 // pred_check
          %p943 = pneg %p149
        $region54: #{cbam_attention.4} parent=31 // pred_check_branch
          %945 = sbr.rel (%p943) target = $region56
        $region55: #{cbam_attention.4} parent=31 // pred_region
          _
        $region56: #{cbam_attention.4} parent=31 // pred_fallthru
          _
        // Predicated region
        $region57: #{cbam_attention.4} parent=31 // pred_check
          %p946 = pneg %p175
        $region58: #{cbam_attention.4} parent=31 // pred_check_branch
          %948 = sbr.rel (%p946) target = $region60
        $region59: #{cbam_attention.4} parent=31 // pred_region
          _
        $region60: #{cbam_attention.4} parent=31 // pred_fallthru
          _
      $region32: #{cbam_attention.4} parent=5 // pred_fallthru
        _
      %p949 = scmp.le.s32.totalorder 2, %s13
      // Predicated region
      $region61: #{cbam_attention.4} parent=5 // pred_check
        %p950 = pneg %p949
      $region62: #{cbam_attention.4} parent=5 // pred_check_branch
        %952 = sbr.rel (%p950) target = $region64
      $region63: #{cbam_attention.4} parent=5 // pred_region
        %s953 = ssub.s32 %s13, 2
        // Predicated region
        $region65: #{cbam_attention.4} parent=63 // pred_check
          %p954 = pneg %p129
        $region66: #{cbam_attention.4} parent=63 // pred_check_branch
          %956 = sbr.rel (%p954) target = $region68
        $region67: #{cbam_attention.4} parent=63 // pred_region
          %p957 = scmp.lt.s32.totalorder %s24, 1
          %s958 = scalar_select %p957, %s24, 1
          %s959 = scalar_lea.vmem %s3, %s958
        $region68: #{cbam_attention.4} parent=63 // pred_fallthru
          _
        // Predicated region
        $region69: #{cbam_attention.4} parent=63 // pred_check
          %p960 = pneg %p155
        $region70: #{cbam_attention.4} parent=63 // pred_check_branch
          %962 = sbr.rel (%p960) target = $region72
        $region71: #{cbam_attention.4} parent=63 // pred_region
          %p963 = scmp.lt.s32.totalorder %s24, 1
          %s964 = scalar_select %p963, %s24, 1
          %s965 = scalar_lea.vmem %s4, %s964
        $region72: #{cbam_attention.4} parent=63 // pred_fallthru
          _
        // Predicated region
        $region73: #{cbam_attention.4} parent=63 // pred_check
          %p966 = pneg %p181
        $region74: #{cbam_attention.4} parent=63 // pred_check_branch
          %968 = sbr.rel (%p966) target = $region76
        $region75: #{cbam_attention.4} parent=63 // pred_region
          %p969 = scmp.lt.s32.totalorder %s24, 1
          %s970 = scalar_select %p969, %s24, 1
          %s971 = scalar_lea.vmem %s5, %s970
        $region76: #{cbam_attention.4} parent=63 // pred_fallthru
          _
      $region64: #{cbam_attention.4} parent=5 // pred_fallthru
        _
    $region6: #{cbam_attention.4} parent=1 // loop_footer
      %s17 = sadd.s32 1, %s13
    $region7: #{cbam_attention.4} parent=1 // loop_footer_branch
      %12 = sbr.rel target = $region3
    $region8: #{cbam_attention.4} parent=1 // loop_exit
      _
    %972 = vsyncpa [#allocation6], 1
    %s973 = scalar_lea.sflag [#allocation6], 1
    %974 = vsyncpa %s973, 1

// kernel: cbam_attention.3
$region0: #{cbam_attention.3}
  #allocation0 [shape = 'u32[]', space=smem, size = 0x4, offset = 0x4, fixed_abs, tag = 'smem constant byte address 0x4 - core index']
  #allocation1 [shape = 'u32[144,128]{1,0:T(1,128)}', space=vmem, size = 0x12000, scoped, tag = 'internal scratch']
  #allocation2 [shape = 'f32[16,512]{1,0:T(8,128)}', space=vmem, size = 0x8000, scoped, tag = 'scratch operand']
  #allocation3 [shape = 'f32[16,512]{1,0:T(8,128)}', space=vmem, size = 0x8000, scoped, tag = 'scratch operand']
  %s0 = inlined_call_operand.hbm [shape: f32[2,16,2048], index: 0, kind: input, shape index: {}]
  %s1 = inlined_call_operand.hbm [shape: f32[2,16], index: 1, kind: input, shape index: {}]
  %s2 = inlined_call_operand.vmem [shape: f32[16,2], index: 2, kind: input, shape index: {}]
  %s3 = inlined_call_operand.vmem [shape: f32[2,16,1], index: 3, kind: output, shape index: {}]
  %s4 = sld [smem:[#allocation0]]
  $region61: #{cbam_attention.3} parent=0
    _
  %s6 = ssub.s32 1, %s4
  %s7 = scalar_select 0, %s6, %s4
  $region1: #{cbam_attention.3} parent=0
    #allocation4 [shape = 'u8[262144]{0}', space=vmem, size = 0x40000, scoped, tag = 'input window, operand 0']
    #allocation5 [shape = 's32[2]{0}', space=sflag, size = 0x8, scoped, tag = 'scoped memory for cbam_attention.3']
    #allocation6 [shape = 'u8[1024]{0}', space=vmem, size = 0x400, scoped, tag = 'input window, operand 1, single buffered']
    #allocation7 [shape = 's32[1]{0}', space=sflag, size = 0x4, scoped, tag = 'scoped memory for cbam_attention.3']
    %8 = vsyncpa [#allocation5], 0
    %s9 = scalar_lea.sflag [#allocation5], 1
    %10 = vsyncpa %s9, 0
    %11 = vsyncpa [#allocation7], 0
    loop: start=0, step=1, limit=4
    $region2: #{cbam_attention.3} parent=1 // loop_pre_header
      _
    $region3: #{cbam_attention.3} parent=1 // loop_header
      %s13 = sphi 0, %s17
      %p14 = scmp.ge.s32.totalorder %s13, 4
      %s20 = sphi 0, %s32
      %s21 = sphi 0, %s28
      %s22 = sphi 0, %s20
      %s23 = sphi 0, %s21
      %s24 = sphi 0, %s22
      %s25 = sphi 0, %s23
      %s37 = sphi 0, %s39
      %s40 = sphi 0, %s37
      %s41 = sphi 0, %s40
      %s57 = sphi 0, %s41
      %s61 = sphi 0, %s61
      %s63 = sphi 0, %s61
      %s64 = sphi 0, %s63
      %s78 = sphi 0, %s64
      %s82 = sphi 0, %s82
      %s84 = sphi 0, %s82
      %s85 = sphi 0, %s84
      %s99 = sphi 0, %s85
      %s105 = sphi 0, %s107
      %s108 = sphi 0, %s105
      %s109 = sphi 0, %s108
      %s125 = sphi 0, %s109
    $region4: #{cbam_attention.3} parent=1 // loop_header_branch
      %16 = sbr.rel (%p14) target = $region8
    $region5: #{cbam_attention.3} parent=1 // loop_body
      %s18 = ssub.s32 %s13, 1
      %s19 = ssub.s32 %s13, 2
      %s26 = sadd.s32 1, %s21
      %p27 = scmp.ge.s32.totalorder %s26, 1
      %s28 = scalar_select %p27, 0, %s26
      %s29 = sadd.s32 1, %s20
      %s30 = scalar_select %p27, %s29, %s20
      %p31 = scmp.ge.s32.totalorder %s30, 2
      %s32 = scalar_select %p31, 0, %s30
      %s33 = ssub.s32 %s20, %s32
      %s34 = ssub.s32 %s21, %s28
      %s35 = sor.u32 %s33, %s34
      %p36 = scmp.eq.s32.totalorder %s35, 0
      %s38 = sadd.s32 %s37, 1
      %s39 = scalar_select %p36, %s37, %s38
      %p42 = pneg %p36
      %p43 = scmp.eq.s32.totalorder %s13, 1
      %p44 = por %p42, %p43
      %p45 = scmp.ne.s32.totalorder %s37, %s40
      %p46 = scmp.eq.s32.totalorder %s13, 0
      %p47 = por %p45, %p46
      %p48 = scmp.ne.s32.totalorder %s37, %s40
      %p49 = scmp.eq.s32.totalorder %s18, 1
      %p50 = por %p48, %p49
      %p51 = scmp.ne.s32.totalorder %s40, %s41
      %p52 = scmp.eq.s32.totalorder %s18, 0
      %p53 = por %p51, %p52
      %p54 = scmp.ne.s32.totalorder %s40, %s41
      %p55 = scmp.eq.s32.totalorder %s19, 1
      %p56 = por %p54, %p55
      %p58 = scmp.ne.s32.totalorder %s41, %s57
      %p59 = scmp.eq.s32.totalorder %s19, 0
      %p60 = por %p58, %p59
      %s62 = sadd.s32 %s61, 1
      %p65 = scmp.eq.s32.totalorder %s13, 1
      %p66 = scmp.ne.s32.totalorder %s61, %s63
      %p67 = scmp.eq.s32.totalorder %s13, 0
      %p68 = por %p66, %p67
      %p69 = scmp.ne.s32.totalorder %s61, %s63
      %p70 = scmp.eq.s32.totalorder %s18, 1
      %p71 = por %p69, %p70
      %p72 = scmp.ne.s32.totalorder %s63, %s64
      %p73 = scmp.eq.s32.totalorder %s18, 0
      %p74 = por %p72, %p73
      %p75 = scmp.ne.s32.totalorder %s63, %s64
      %p76 = scmp.eq.s32.totalorder %s19, 1
      %p77 = por %p75, %p76
      %p79 = scmp.ne.s32.totalorder %s64, %s78
      %p80 = scmp.eq.s32.totalorder %s19, 0
      %p81 = por %p79, %p80
      %s83 = sadd.s32 %s82, 1
      %p86 = scmp.eq.s32.totalorder %s13, 1
      %p87 = scmp.ne.s32.totalorder %s82, %s84
      %p88 = scmp.eq.s32.totalorder %s13, 0
      %p89 = por %p87, %p88
      %p90 = scmp.ne.s32.totalorder %s82, %s84
      %p91 = scmp.eq.s32.totalorder %s18, 1
      %p92 = por %p90, %p91
      %p93 = scmp.ne.s32.totalorder %s84, %s85
      %p94 = scmp.eq.s32.totalorder %s18, 0
      %p95 = por %p93, %p94
      %p96 = scmp.ne.s32.totalorder %s84, %s85
      %p97 = scmp.eq.s32.totalorder %s19, 1
      %p98 = por %p96, %p97
      %p100 = scmp.ne.s32.totalorder %s85, %s99
      %p101 = scmp.eq.s32.totalorder %s19, 0
      %p102 = por %p100, %p101
      %s103 = ssub.s32 %s20, %s32
      %p104 = scmp.eq.s32.totalorder %s103, 0
      %s106 = sadd.s32 %s105, 1
      %s107 = scalar_select %p104, %s105, %s106
      %p110 = pneg %p104
      %p111 = scmp.eq.s32.totalorder %s13, 1
      %p112 = por %p110, %p111
      %p113 = scmp.ne.s32.totalorder %s105, %s108
      %p114 = scmp.eq.s32.totalorder %s13, 0
      %p115 = por %p113, %p114
      %p116 = scmp.ne.s32.totalorder %s105, %s108
      %p117 = scmp.eq.s32.totalorder %s18, 1
      %p118 = por %p116, %p117
      %p119 = scmp.ne.s32.totalorder %s108, %s109
      %p120 = scmp.eq.s32.totalorder %s18, 0
      %p121 = por %p119, %p120
      %p122 = scmp.ne.s32.totalorder %s108, %s109
      %p123 = scmp.eq.s32.totalorder %s19, 1
      %p124 = por %p122, %p123
      %p126 = scmp.ne.s32.totalorder %s109, %s125
      %p127 = scmp.eq.s32.totalorder %s19, 0
      %p128 = por %p126, %p127
      %p129 = scmp.le.s32.totalorder 1, %s13
      %p130 = scmp.lt.s32.totalorder %s13, 3
      %p131 = pnand %p129, %p130
      %p132 = pneg %p131
      // Predicated region
      $region9: #{cbam_attention.3} parent=5 // pred_check
        _
      $region10: #{cbam_attention.3} parent=5 // pred_check_branch
        %134 = sbr.rel (%p131) target = $region12
      $region11: #{cbam_attention.3} parent=5 // pred_region
        %s135 = ssub.s32 %s13, 1
        // Predicated region
        $region13: #{cbam_attention.3} parent=11 // pred_check
          %p136 = pneg %p74
        $region14: #{cbam_attention.3} parent=11 // pred_check_branch
          %138 = sbr.rel (%p136) target = $region16
        $region15: #{cbam_attention.3} parent=11 // pred_region
          %s140 = ssub.s32 32, 32
          %141 = vsyncadd [#allocation7], %s140
          %s143 = sshll.u32 [#allocation6], 4
          %s144 = int_to_ptr.vmem [resolvable:$true] %s143
          %146 = dma.hbm_to_vmem [thread:$0]  %s1, 32, %s144, [#allocation7]
        $region16: #{cbam_attention.3} parent=11 // pred_fallthru
          _
        // Predicated region
        $region17: #{cbam_attention.3} parent=11 // pred_check
          %p147 = pneg %p95
        $region18: #{cbam_attention.3} parent=11 // pred_check_branch
          %149 = sbr.rel (%p147) target = $region20
        $region19: #{cbam_attention.3} parent=11 // pred_region
          _
        $region20: #{cbam_attention.3} parent=11 // pred_fallthru
          _
      $region12: #{cbam_attention.3} parent=5 // pred_fallthru
        _
      %p150 = scmp.lt.s32.totalorder %s13, 2
      // Predicated region
      $region21: #{cbam_attention.3} parent=5 // pred_check
        %p151 = pneg %p150
      $region22: #{cbam_attention.3} parent=5 // pred_check_branch
        %153 = sbr.rel (%p151) target = $region24
      $region23: #{cbam_attention.3} parent=5 // pred_region
        // Predicated region
        $region25: #{cbam_attention.3} parent=23 // pred_check
          %p154 = pneg %p47
        $region26: #{cbam_attention.3} parent=23 // pred_check_branch
          %156 = sbr.rel (%p154) target = $region28
        $region27: #{cbam_attention.3} parent=23 // pred_region
          %s157 = sand.u32 %s37, 1
          %s158 = scalar_lea.sflag [#allocation5], %s157
          %s159 = sand.u32 %s37, 1
          %s160 = smul.addr %s159, 256
          %s161 = scalar_lea.vmem [#allocation4], %s160
          %s162 = smul.u32 16, %s21
          %s164 = ssub.s32 4096, 4096
          %165 = vsyncadd %s158, %s164
          %s166 = smul.addr %s20, 32
          %s167 = sadd.s32 %s162, %s166
          %s168 = smul.addr %s167, 128
          %s169 = scalar_lea.hbm %s0, %s168
          %s170 = sshll.u32 %s161, 4
          %s171 = int_to_ptr.vmem [resolvable:$true] %s170
          %176 = dma.hbm_to_vmem [thread:$0]  %s169, 4096, %s171, %s158, 2048, 2048, 128
        $region28: #{cbam_attention.3} parent=23 // pred_fallthru
          _
      $region24: #{cbam_attention.3} parent=5 // pred_fallthru
        _
      %p177 = scmp.le.s32.totalorder 1, %s13
      %p178 = scmp.lt.s32.totalorder %s13, 3
      %p179 = pnand %p177, %p178
      %p180 = pneg %p179
      // Predicated region
      $region29: #{cbam_attention.3} parent=5 // pred_check
        _
      $region30: #{cbam_attention.3} parent=5 // pred_check_branch
        %182 = sbr.rel (%p179) target = $region32
      $region31: #{cbam_attention.3} parent=5 // pred_region
        %s183 = ssub.s32 %s13, 1
        %s184 = sand.u32 %s40, 1
        %s185 = scalar_lea.sflag [#allocation5], %s184
        %s186 = sand.u32 %s40, 1
        %s187 = smul.addr %s186, 256
        %s188 = scalar_lea.vmem [#allocation4], %s187
        // Predicated region
        $region33: #{cbam_attention.3} parent=31 // pred_check
          %p189 = pneg %p53
        $region34: #{cbam_attention.3} parent=31 // pred_check_branch
          %191 = sbr.rel (%p189) target = $region36
        $region35: #{cbam_attention.3} parent=31 // pred_region
          %192 = dma.done %s185, 4096
        $region36: #{cbam_attention.3} parent=31 // pred_fallthru
          _
        // Predicated region
        $region37: #{cbam_attention.3} parent=31 // pred_check
          %p193 = pneg %p74
        $region38: #{cbam_attention.3} parent=31 // pred_check_branch
          %195 = sbr.rel (%p193) target = $region40
        $region39: #{cbam_attention.3} parent=31 // pred_region
          %196 = dma.done [#allocation7], 32
        $region40: #{cbam_attention.3} parent=31 // pred_fallthru
          _
        %s197 = sand.u32 %s40, 1
        %s198 = scalar_lea.sflag [#allocation5], %s197
        %s199 = sand.u32 %s40, 1
        %s200 = smul.addr %s199, 256
        %s201 = scalar_lea.vmem [#allocation4], %s200
        %p202 = pneg %p53
        %p203 = pneg %p50
        %p204 = pneg %p74
        %p205 = pneg %p71
        %p206 = pneg %p95
        %p207 = pneg %p92
        %p208 = pneg %p121
        %p209 = pneg %p118
        %p210 = scmp.lt.s32.totalorder %s22, 1
        %s211 = scalar_select %p210, %s22, 1
        %s212 = smul.addr %s211, 2
        %s213 = smul.addr %s212, 8
        %s214 = scalar_lea.vmem %s3, %s213
        %s215 = smul.u32 16, %s23
        %p216 = scmp.lt.s32.totalorder %s22, 1
        %s217 = scalar_select %p216, %s22, 1
        %s218 = smul.addr %s217, 2
        %s219 = smul.addr %s218, 8
        %s220 = scalar_lea.vmem %s3, %s219
        %p221 = scmp.eq.s32.totalorder %s23, 0
        // Predicated region
        $region41: #{cbam_attention.3} parent=31 // pred_check
          %p222 = pneg %p221
        $region42: #{cbam_attention.3} parent=31 // pred_check_branch
          %224 = sbr.rel (%p222) target = $region44
        $region43: #{cbam_attention.3} parent=31 // pred_region
          %225 = vst [vmem:[#allocation2] sm:$0xff] 0.0
          %226 = vst [vmem:[#allocation2 + $0x8] sm:$0xff] 0.0
          %227 = vst [vmem:[#allocation2 + $0x10] sm:$0xff] 0.0
          %228 = vst [vmem:[#allocation2 + $0x18] sm:$0xff] 0.0
          %229 = vst [vmem:[#allocation2 + $0x20] sm:$0xff] 0.0
          %230 = vst [vmem:[#allocation2 + $0x28] sm:$0xff] 0.0
          %231 = vst [vmem:[#allocation2 + $0x30] sm:$0xff] 0.0
          %232 = vst [vmem:[#allocation2 + $0x38] sm:$0xff] 0.0
          %233 = vst [vmem:[#allocation3] sm:$0xff] -inf
          %234 = vst [vmem:[#allocation3 + $0x8] sm:$0xff] -inf
          %235 = vst [vmem:[#allocation3 + $0x10] sm:$0xff] -inf
          %236 = vst [vmem:[#allocation3 + $0x18] sm:$0xff] -inf
          %237 = vst [vmem:[#allocation3 + $0x20] sm:$0xff] -inf
          %238 = vst [vmem:[#allocation3 + $0x28] sm:$0xff] -inf
          %239 = vst [vmem:[#allocation3 + $0x30] sm:$0xff] -inf
          %240 = vst [vmem:[#allocation3 + $0x38] sm:$0xff] -inf
        $region44: #{cbam_attention.3} parent=31 // pred_fallthru
          _
        %v241 = vld [vmem:[%s188] sm:$0xff]
        %v242 = vld [vmem:[%s188 + $0x8] sm:$0xff]
        %v243 = vld [vmem:[%s188 + $0x10] sm:$0xff]
        %v244 = vld [vmem:[%s188 + $0x18] sm:$0xff]
        %v245 = vld [vmem:[%s188 + $0x80] sm:$0xff]
        %v246 = vld [vmem:[%s188 + $0x88] sm:$0xff]
        %v247 = vld [vmem:[%s188 + $0x90] sm:$0xff]
        %v248 = vld [vmem:[%s188 + $0x98] sm:$0xff]
        %v249 = vld [vmem:[#allocation2] sm:$0xff]
        %v250 = vld [vmem:[#allocation2 + $0x8] sm:$0xff]
        %v251 = vld [vmem:[#allocation2 + $0x10] sm:$0xff]
        %v252 = vld [vmem:[#allocation2 + $0x18] sm:$0xff]
        %v253 = vld [vmem:[#allocation2 + $0x20] sm:$0xff]
        %v254 = vld [vmem:[#allocation2 + $0x28] sm:$0xff]
        %v255 = vld [vmem:[#allocation2 + $0x30] sm:$0xff]
        %v256 = vld [vmem:[#allocation2 + $0x38] sm:$0xff]
        %v257 = vadd.f32 %v249, %v241
        %v258 = vadd.f32 %v250, %v242
        %v259 = vadd.f32 %v251, %v243
        %v260 = vadd.f32 %v252, %v244
        %v261 = vadd.f32 %v253, %v245
        %v262 = vadd.f32 %v254, %v246
        %v263 = vadd.f32 %v255, %v247
        %v264 = vadd.f32 %v256, %v248
        %265 = vst [vmem:[#allocation2] sm:$0xff] %v257
        %266 = vst [vmem:[#allocation2 + $0x8] sm:$0xff] %v258
        %267 = vst [vmem:[#allocation2 + $0x10] sm:$0xff] %v259
        %268 = vst [vmem:[#allocation2 + $0x18] sm:$0xff] %v260
        %269 = vst [vmem:[#allocation2 + $0x20] sm:$0xff] %v261
        %270 = vst [vmem:[#allocation2 + $0x28] sm:$0xff] %v262
        %271 = vst [vmem:[#allocation2 + $0x30] sm:$0xff] %v263
        %272 = vst [vmem:[#allocation2 + $0x38] sm:$0xff] %v264
        %v273 = vld [vmem:[#allocation3] sm:$0xff]
        %v274 = vld [vmem:[#allocation3 + $0x8] sm:$0xff]
        %v275 = vld [vmem:[#allocation3 + $0x10] sm:$0xff]
        %v276 = vld [vmem:[#allocation3 + $0x18] sm:$0xff]
        %v277 = vld [vmem:[#allocation3 + $0x20] sm:$0xff]
        %v278 = vld [vmem:[#allocation3 + $0x28] sm:$0xff]
        %v279 = vld [vmem:[#allocation3 + $0x30] sm:$0xff]
        %v280 = vld [vmem:[#allocation3 + $0x38] sm:$0xff]
        %v281 = vmax.f32 %v273, %v241
        %v282 = vmax.f32 %v274, %v242
        %v283 = vmax.f32 %v275, %v243
        %v284 = vmax.f32 %v276, %v244
        %v285 = vmax.f32 %v277, %v245
        %v286 = vmax.f32 %v278, %v246
        %v287 = vmax.f32 %v279, %v247
        %v288 = vmax.f32 %v280, %v248
        %289 = vst [vmem:[#allocation3] sm:$0xff] %v281
        %290 = vst [vmem:[#allocation3 + $0x8] sm:$0xff] %v282
        %291 = vst [vmem:[#allocation3 + $0x10] sm:$0xff] %v283
        %292 = vst [vmem:[#allocation3 + $0x18] sm:$0xff] %v284
        %293 = vst [vmem:[#allocation3 + $0x20] sm:$0xff] %v285
        %294 = vst [vmem:[#allocation3 + $0x28] sm:$0xff] %v286
        %295 = vst [vmem:[#allocation3 + $0x30] sm:$0xff] %v287
        %296 = vst [vmem:[#allocation3 + $0x38] sm:$0xff] %v288
        %v297 = vld [vmem:[%s188 + $0x20] sm:$0xff]
        %v298 = vld [vmem:[%s188 + $0x28] sm:$0xff]
        %v299 = vld [vmem:[%s188 + $0x30] sm:$0xff]
        %v300 = vld [vmem:[%s188 + $0x38] sm:$0xff]
        %v301 = vld [vmem:[%s188 + $0xa0] sm:$0xff]
        %v302 = vld [vmem:[%s188 + $0xa8] sm:$0xff]
        %v303 = vld [vmem:[%s188 + $0xb0] sm:$0xff]
        %v304 = vld [vmem:[%s188 + $0xb8] sm:$0xff]
        %v305 = vld [vmem:[#allocation2] sm:$0xff]
        %v306 = vld [vmem:[#allocation2 + $0x8] sm:$0xff]
        %v307 = vld [vmem:[#allocation2 + $0x10] sm:$0xff]
        %v308 = vld [vmem:[#allocation2 + $0x18] sm:$0xff]
        %v309 = vld [vmem:[#allocation2 + $0x20] sm:$0xff]
        %v310 = vld [vmem:[#allocation2 + $0x28] sm:$0xff]
        %v311 = vld [vmem:[#allocation2 + $0x30] sm:$0xff]
        %v312 = vld [vmem:[#allocation2 + $0x38] sm:$0xff]
        %v313 = vadd.f32 %v305, %v297
        %v314 = vadd.f32 %v306, %v298
        %v315 = vadd.f32 %v307, %v299
        %v316 = vadd.f32 %v308, %v300
        %v317 = vadd.f32 %v309, %v301
        %v318 = vadd.f32 %v310, %v302
        %v319 = vadd.f32 %v311, %v303
        %v320 = vadd.f32 %v312, %v304
        %321 = vst [vmem:[#allocation2] sm:$0xff] %v313
        %322 = vst [vmem:[#allocation2 + $0x8] sm:$0xff] %v314
        %323 = vst [vmem:[#allocation2 + $0x10] sm:$0xff] %v315
        %324 = vst [vmem:[#allocation2 + $0x18] sm:$0xff] %v316
        %325 = vst [vmem:[#allocation2 + $0x20] sm:$0xff] %v317
        %326 = vst [vmem:[#allocation2 + $0x28] sm:$0xff] %v318
        %327 = vst [vmem:[#allocation2 + $0x30] sm:$0xff] %v319
        %328 = vst [vmem:[#allocation2 + $0x38] sm:$0xff] %v320
        %v329 = vld [vmem:[#allocation3] sm:$0xff]
        %v330 = vld [vmem:[#allocation3 + $0x8] sm:$0xff]
        %v331 = vld [vmem:[#allocation3 + $0x10] sm:$0xff]
        %v332 = vld [vmem:[#allocation3 + $0x18] sm:$0xff]
        %v333 = vld [vmem:[#allocation3 + $0x20] sm:$0xff]
        %v334 = vld [vmem:[#allocation3 + $0x28] sm:$0xff]
        %v335 = vld [vmem:[#allocation3 + $0x30] sm:$0xff]
        %v336 = vld [vmem:[#allocation3 + $0x38] sm:$0xff]
        %v337 = vmax.f32 %v329, %v297
        %v338 = vmax.f32 %v330, %v298
        %v339 = vmax.f32 %v331, %v299
        %v340 = vmax.f32 %v332, %v300
        %v341 = vmax.f32 %v333, %v301
        %v342 = vmax.f32 %v334, %v302
        %v343 = vmax.f32 %v335, %v303
        %v344 = vmax.f32 %v336, %v304
        %345 = vst [vmem:[#allocation3] sm:$0xff] %v337
        %346 = vst [vmem:[#allocation3 + $0x8] sm:$0xff] %v338
        %347 = vst [vmem:[#allocation3 + $0x10] sm:$0xff] %v339
        %348 = vst [vmem:[#allocation3 + $0x18] sm:$0xff] %v340
        %349 = vst [vmem:[#allocation3 + $0x20] sm:$0xff] %v341
        %350 = vst [vmem:[#allocation3 + $0x28] sm:$0xff] %v342
        %351 = vst [vmem:[#allocation3 + $0x30] sm:$0xff] %v343
        %352 = vst [vmem:[#allocation3 + $0x38] sm:$0xff] %v344
        %v353 = vld [vmem:[%s188 + $0x40] sm:$0xff]
        %v354 = vld [vmem:[%s188 + $0x48] sm:$0xff]
        %v355 = vld [vmem:[%s188 + $0x50] sm:$0xff]
        %v356 = vld [vmem:[%s188 + $0x58] sm:$0xff]
        %v357 = vld [vmem:[%s188 + $0xc0] sm:$0xff]
        %v358 = vld [vmem:[%s188 + $0xc8] sm:$0xff]
        %v359 = vld [vmem:[%s188 + $0xd0] sm:$0xff]
        %v360 = vld [vmem:[%s188 + $0xd8] sm:$0xff]
        %v361 = vld [vmem:[#allocation2] sm:$0xff]
        %v362 = vld [vmem:[#allocation2 + $0x8] sm:$0xff]
        %v363 = vld [vmem:[#allocation2 + $0x10] sm:$0xff]
        %v364 = vld [vmem:[#allocation2 + $0x18] sm:$0xff]
        %v365 = vld [vmem:[#allocation2 + $0x20] sm:$0xff]
        %v366 = vld [vmem:[#allocation2 + $0x28] sm:$0xff]
        %v367 = vld [vmem:[#allocation2 + $0x30] sm:$0xff]
        %v368 = vld [vmem:[#allocation2 + $0x38] sm:$0xff]
        %v369 = vadd.f32 %v361, %v353
        %v370 = vadd.f32 %v362, %v354
        %v371 = vadd.f32 %v363, %v355
        %v372 = vadd.f32 %v364, %v356
        %v373 = vadd.f32 %v365, %v357
        %v374 = vadd.f32 %v366, %v358
        %v375 = vadd.f32 %v367, %v359
        %v376 = vadd.f32 %v368, %v360
        %377 = vst [vmem:[#allocation2] sm:$0xff] %v369
        %378 = vst [vmem:[#allocation2 + $0x8] sm:$0xff] %v370
        %379 = vst [vmem:[#allocation2 + $0x10] sm:$0xff] %v371
        %380 = vst [vmem:[#allocation2 + $0x18] sm:$0xff] %v372
        %381 = vst [vmem:[#allocation2 + $0x20] sm:$0xff] %v373
        %382 = vst [vmem:[#allocation2 + $0x28] sm:$0xff] %v374
        %383 = vst [vmem:[#allocation2 + $0x30] sm:$0xff] %v375
        %384 = vst [vmem:[#allocation2 + $0x38] sm:$0xff] %v376
        %v385 = vld [vmem:[#allocation3] sm:$0xff]
        %v386 = vld [vmem:[#allocation3 + $0x8] sm:$0xff]
        %v387 = vld [vmem:[#allocation3 + $0x10] sm:$0xff]
        %v388 = vld [vmem:[#allocation3 + $0x18] sm:$0xff]
        %v389 = vld [vmem:[#allocation3 + $0x20] sm:$0xff]
        %v390 = vld [vmem:[#allocation3 + $0x28] sm:$0xff]
        %v391 = vld [vmem:[#allocation3 + $0x30] sm:$0xff]
        %v392 = vld [vmem:[#allocation3 + $0x38] sm:$0xff]
        %v393 = vmax.f32 %v385, %v353
        %v394 = vmax.f32 %v386, %v354
        %v395 = vmax.f32 %v387, %v355
        %v396 = vmax.f32 %v388, %v356
        %v397 = vmax.f32 %v389, %v357
        %v398 = vmax.f32 %v390, %v358
        %v399 = vmax.f32 %v391, %v359
        %v400 = vmax.f32 %v392, %v360
        %401 = vst [vmem:[#allocation3] sm:$0xff] %v393
        %402 = vst [vmem:[#allocation3 + $0x8] sm:$0xff] %v394
        %403 = vst [vmem:[#allocation3 + $0x10] sm:$0xff] %v395
        %404 = vst [vmem:[#allocation3 + $0x18] sm:$0xff] %v396
        %405 = vst [vmem:[#allocation3 + $0x20] sm:$0xff] %v397
        %406 = vst [vmem:[#allocation3 + $0x28] sm:$0xff] %v398
        %407 = vst [vmem:[#allocation3 + $0x30] sm:$0xff] %v399
        %408 = vst [vmem:[#allocation3 + $0x38] sm:$0xff] %v400
        %v409 = vld [vmem:[%s188 + $0x60] sm:$0xff]
        %v410 = vld [vmem:[%s188 + $0x68] sm:$0xff]
        %v411 = vld [vmem:[%s188 + $0x70] sm:$0xff]
        %v412 = vld [vmem:[%s188 + $0x78] sm:$0xff]
        %v413 = vld [vmem:[%s188 + $0xe0] sm:$0xff]
        %v414 = vld [vmem:[%s188 + $0xe8] sm:$0xff]
        %v415 = vld [vmem:[%s188 + $0xf0] sm:$0xff]
        %v416 = vld [vmem:[%s188 + $0xf8] sm:$0xff]
        %v417 = vld [vmem:[#allocation2] sm:$0xff]
        %v418 = vld [vmem:[#allocation2 + $0x8] sm:$0xff]
        %v419 = vld [vmem:[#allocation2 + $0x10] sm:$0xff]
        %v420 = vld [vmem:[#allocation2 + $0x18] sm:$0xff]
        %v421 = vld [vmem:[#allocation2 + $0x20] sm:$0xff]
        %v422 = vld [vmem:[#allocation2 + $0x28] sm:$0xff]
        %v423 = vld [vmem:[#allocation2 + $0x30] sm:$0xff]
        %v424 = vld [vmem:[#allocation2 + $0x38] sm:$0xff]
        %v425 = vadd.f32 %v417, %v409
        %v426 = vadd.f32 %v418, %v410
        %v427 = vadd.f32 %v419, %v411
        %v428 = vadd.f32 %v420, %v412
        %v429 = vadd.f32 %v421, %v413
        %v430 = vadd.f32 %v422, %v414
        %v431 = vadd.f32 %v423, %v415
        %v432 = vadd.f32 %v424, %v416
        %433 = vst [vmem:[#allocation2] sm:$0xff] %v425
        %434 = vst [vmem:[#allocation2 + $0x8] sm:$0xff] %v426
        %435 = vst [vmem:[#allocation2 + $0x10] sm:$0xff] %v427
        %436 = vst [vmem:[#allocation2 + $0x18] sm:$0xff] %v428
        %437 = vst [vmem:[#allocation2 + $0x20] sm:$0xff] %v429
        %438 = vst [vmem:[#allocation2 + $0x28] sm:$0xff] %v430
        %439 = vst [vmem:[#allocation2 + $0x30] sm:$0xff] %v431
        %440 = vst [vmem:[#allocation2 + $0x38] sm:$0xff] %v432
        %v441 = vld [vmem:[#allocation3] sm:$0xff]
        %v442 = vld [vmem:[#allocation3 + $0x8] sm:$0xff]
        %v443 = vld [vmem:[#allocation3 + $0x10] sm:$0xff]
        %v444 = vld [vmem:[#allocation3 + $0x18] sm:$0xff]
        %v445 = vld [vmem:[#allocation3 + $0x20] sm:$0xff]
        %v446 = vld [vmem:[#allocation3 + $0x28] sm:$0xff]
        %v447 = vld [vmem:[#allocation3 + $0x30] sm:$0xff]
        %v448 = vld [vmem:[#allocation3 + $0x38] sm:$0xff]
        %v449 = vmax.f32 %v441, %v409
        %v450 = vmax.f32 %v442, %v410
        %v451 = vmax.f32 %v443, %v411
        %v452 = vmax.f32 %v444, %v412
        %v453 = vmax.f32 %v445, %v413
        %v454 = vmax.f32 %v446, %v414
        %v455 = vmax.f32 %v447, %v415
        %v456 = vmax.f32 %v448, %v416
        %457 = vst [vmem:[#allocation3] sm:$0xff] %v449
        %458 = vst [vmem:[#allocation3 + $0x8] sm:$0xff] %v450
        %459 = vst [vmem:[#allocation3 + $0x10] sm:$0xff] %v451
        %460 = vst [vmem:[#allocation3 + $0x18] sm:$0xff] %v452
        %461 = vst [vmem:[#allocation3 + $0x20] sm:$0xff] %v453
        %462 = vst [vmem:[#allocation3 + $0x28] sm:$0xff] %v454
        %463 = vst [vmem:[#allocation3 + $0x30] sm:$0xff] %v455
        %464 = vst [vmem:[#allocation3 + $0x38] sm:$0xff] %v456
        // Predicated region
        $region45: #{cbam_attention.3} parent=31 // pred_check
          %p465 = pneg %p221
        $region46: #{cbam_attention.3} parent=31 // pred_check_branch
          %467 = sbr.rel (%p465) target = $region48
        $region47: #{cbam_attention.3} parent=31 // pred_region
          %v468 = vld [vmem:[#allocation2] sm:$0xff]
          %v469 = vld [vmem:[#allocation2 + $0x8] sm:$0xff]
          %v470 = vld [vmem:[#allocation2 + $0x10] sm:$0xff]
          %v471 = vld [vmem:[#allocation2 + $0x18] sm:$0xff]
          %v472 = vld [vmem:[#allocation2 + $0x20] sm:$0xff]
          %v473 = vld [vmem:[#allocation2 + $0x28] sm:$0xff]
          %v474 = vld [vmem:[#allocation2 + $0x30] sm:$0xff]
          %v475 = vld [vmem:[#allocation2 + $0x38] sm:$0xff]
          %v476 = vadd.f32 %v468, %v469
          %v477 = vadd.f32 %v476, %v470
          %v478 = vadd.f32 %v477, %v471
          %479 = vadd.xlane.f32.xlu0 %v478
          %v480 = vpop.xlane.xlu0 %479
          %v481 = vadd.f32 %v472, %v473
          %v482 = vadd.f32 %v481, %v474
          %v483 = vadd.f32 %v482, %v475
          %484 = vadd.xlane.f32.xlu0 %v483
          %v485 = vpop.xlane.xlu0 %484
          %v486 = vmul.f32 %v480, 0.00048828125
          %v487 = vmul.f32 %v485, 0.00048828125
          %v488 = vld [vmem:[#allocation3] sm:$0xff]
          %v489 = vld [vmem:[#allocation3 + $0x8] sm:$0xff]
          %v490 = vld [vmem:[#allocation3 + $0x10] sm:$0xff]
          %v491 = vld [vmem:[#allocation3 + $0x18] sm:$0xff]
          %v492 = vld [vmem:[#allocation3 + $0x20] sm:$0xff]
          %v493 = vld [vmem:[#allocation3 + $0x28] sm:$0xff]
          %v494 = vld [vmem:[#allocation3 + $0x30] sm:$0xff]
          %v495 = vld [vmem:[#allocation3 + $0x38] sm:$0xff]
          %v496 = vmax.f32 %v488, %v490
          %v497 = vmax.f32 %v489, %v491
          %v498 = vmax.f32 %v496, %v497
          %499 = vmax.xlane.f32.xlu0 %v498
          %v500 = vpop.xlane.xlu0 %499
          %v501 = vmax.f32 %v492, %v494
          %v502 = vmax.f32 %v493, %v495
          %v503 = vmax.f32 %v501, %v502
          %504 = vmax.xlane.f32.xlu0 %v503
          %v505 = vpop.xlane.xlu0 %504
          %vm506 = vcmask 7168
          %v507 = vsel %vm506, %v486, %v500
          %v508 = vsel %vm506, %v487, %v505
          %v509 = vld [vmem:[#allocation6] sm:$0x3]
          %v510 = vld [vmem:[%s2] sm:$0xff]
          %v511 = vld [vmem:[%s2 + $0x8] sm:$0xff]
          %vm512 = vcmask 130048
          %v514 = vsel %vm512, %v509, 0
          %516 = vmatprep.subr.mxu0 0.0
          %517 = vmatpush1.msra.mxu0 0.0
          %518 = vmatprep.subr.mxu0 0.0
          %519 = vmatpush1.msra.mxu0 0.0
          %520 = vmatprep.subr.mxu0 0.0
          %521 = vmatpush1.msra.mxu0 0.0
          %522 = vmatprep.subr.mxu0 0.0
          %523 = vmatpush1.msra.mxu0 0.0
          %524 = vmatprep.subr.mxu0 0.0
          %525 = vmatpush1.msra.mxu0 0.0
          %526 = vmatprep.subr.mxu0 0.0
          %527 = vmatpush1.msra.mxu0 0.0
          %528 = vmatprep.subr.mxu0 0.0
          %529 = vmatpush1.msra.mxu0 0.0
          %530 = vmatprep.subr.mxu0 0.0
          %531 = vmatpush1.msra.mxu0 0.0
          %532 = vmatprep.subr.mxu0 0.0
          %533 = vmatpush1.msra.mxu0 0.0
          %534 = vmatprep.subr.mxu0 0.0
          %535 = vmatpush1.msra.mxu0 0.0
          %536 = vmatprep.subr.mxu0 0.0
          %537 = vmatpush1.msra.mxu0 0.0
          %538 = vmatprep.subr.mxu0 0.0
          %539 = vmatpush1.msra.mxu0 0.0
          %540 = vmatprep.subr.mxu0 0.0
          %541 = vmatpush1.msra.mxu0 0.0
          %542 = vmatprep.subr.mxu0 0.0
          %543 = vmatpush1.msra.mxu0 0.0
          %544 = vmatprep.subr.mxu0 0.0
          %545 = vmatpush1.msra.mxu0 %v508
          %546 = vmatprep.subr.mxu0 0.0
          %547 = vmatpush1.msra.mxu0 %v507
          %548 = vmatprep.subr.mxu0 0.0
          %549 = vmatpush2.msra.mxu0 0.0
          %550 = vmatprep.subr.mxu0 0.0
          %551 = vmatpush2.msra.mxu0 0.0
          %552 = vmatprep.subr.mxu0 0.0
          %553 = vmatpush2.msra.mxu0 0.0
          %554 = vmatprep.subr.mxu0 0.0
          %555 = vmatpush2.msra.mxu0 0.0
          %556 = vmatprep.subr.mxu0 0.0
          %557 = vmatpush2.msra.mxu0 0.0
          %558 = vmatprep.subr.mxu0 0.0
          %559 = vmatpush2.msra.mxu0 0.0
          %560 = vmatprep.subr.mxu0 0.0
          %561 = vmatpush2.msra.mxu0 0.0
          %562 = vmatprep.subr.mxu0 0.0
          %563 = vmatpush2.msra.mxu0 0.0
          %564 = vmatprep.subr.mxu0 0.0
          %565 = vmatpush2.msra.mxu0 0.0
          %566 = vmatprep.subr.mxu0 0.0
          %567 = vmatpush2.msra.mxu0 0.0
          %568 = vmatprep.subr.mxu0 0.0
          %569 = vmatpush2.msra.mxu0 0.0
          %570 = vmatprep.subr.mxu0 0.0
          %571 = vmatpush2.msra.mxu0 0.0
          %572 = vmatprep.subr.mxu0 0.0
          %573 = vmatpush2.msra.mxu0 0.0
          %574 = vmatprep.subr.mxu0 0.0
          %575 = vmatpush2.msra.mxu0 0.0
          %576 = vmatprep.subr.mxu0 0.0
          %577 = vmatpush2.msra.mxu0 0.0
          %578 = vmatprep.subr.mxu0 0.0
          %579 = vmatpush2.msra.mxu0 0.0
          %580 = vmatprep.mubr.f32.mxu0 0.0
          %581 = vmatmul.mubr.f32.gmra.mxu0 %v514
          %v582 = vpop.f32.mrf.mxu0
          %v583 = vadd.f32 0.0, %v582
          %v584 = vpop.f32.mrf.mxu0
          %585 = vdwg.mxu0
          %v586 = vmax.f32 %v583, 0.0
          %vm587 = vcmask 15360
          %v589 = vsel %vm587, %v510, 0
          %v592 = vsel %vm587, %v511, 0
          %vm594 = vcmask 1041408
          %v596 = vsel %vm594, %v586, 0
          %598 = vmatprep.subr.mxu0 0.0
          %599 = vmatpush1.msra.mxu0 0.0
          %600 = vmatprep.subr.mxu0 0.0
          %601 = vmatpush1.msra.mxu0 0.0
          %602 = vmatprep.subr.mxu0 0.0
          %603 = vmatpush1.msra.mxu0 0.0
          %604 = vmatprep.subr.mxu0 0.0
          %605 = vmatpush1.msra.mxu0 0.0
          %606 = vmatprep.subr.mxu0 0.0
          %607 = vmatpush1.msra.mxu0 0.0
          %608 = vmatprep.subr.mxu0 0.0
          %609 = vmatpush1.msra.mxu0 0.0
          %610 = vmatprep.subr.mxu0 0.0
          %611 = vmatpush1.msra.mxu0 0.0
          %612 = vmatprep.subr.mxu0 0.0
          %613 = vmatpush1.msra.mxu0 0.0
          %614 = vmatprep.subr.mxu0 0.0
          %615 = vmatpush1.msra.mxu0 0.0
          %616 = vmatprep.subr.mxu0 0.0
          %617 = vmatpush1.msra.mxu0 0.0
          %618 = vmatprep.subr.mxu0 0.0
          %619 = vmatpush1.msra.mxu0 0.0
          %620 = vmatprep.subr.mxu0 0.0
          %621 = vmatpush1.msra.mxu0 0.0
          %622 = vmatprep.subr.mxu0 0.0
          %623 = vmatpush1.msra.mxu0 0.0
          %624 = vmatprep.subr.mxu0 0.0
          %625 = vmatpush1.msra.mxu0 0.0
          %626 = vmatprep.subr.mxu0 0.0
          %627 = vmatpush1.msra.mxu0 0.0
          %628 = vmatprep.subr.mxu0 0.0
          %629 = vmatpush1.msra.mxu0 %v596
          %630 = vmatprep.subr.mxu0 0.0
          %631 = vmatpush2.msra.mxu0 0.0
          %632 = vmatprep.subr.mxu0 0.0
          %633 = vmatpush2.msra.mxu0 0.0
          %634 = vmatprep.subr.mxu0 0.0
          %635 = vmatpush2.msra.mxu0 0.0
          %636 = vmatprep.subr.mxu0 0.0
          %637 = vmatpush2.msra.mxu0 0.0
          %638 = vmatprep.subr.mxu0 0.0
          %639 = vmatpush2.msra.mxu0 0.0
          %640 = vmatprep.subr.mxu0 0.0
          %641 = vmatpush2.msra.mxu0 0.0
          %642 = vmatprep.subr.mxu0 0.0
          %643 = vmatpush2.msra.mxu0 0.0
          %644 = vmatprep.subr.mxu0 0.0
          %645 = vmatpush2.msra.mxu0 0.0
          %646 = vmatprep.subr.mxu0 0.0
          %647 = vmatpush2.msra.mxu0 0.0
          %648 = vmatprep.subr.mxu0 0.0
          %649 = vmatpush2.msra.mxu0 0.0
          %650 = vmatprep.subr.mxu0 0.0
          %651 = vmatpush2.msra.mxu0 0.0
          %652 = vmatprep.subr.mxu0 0.0
          %653 = vmatpush2.msra.mxu0 0.0
          %654 = vmatprep.subr.mxu0 0.0
          %655 = vmatpush2.msra.mxu0 0.0
          %656 = vmatprep.subr.mxu0 0.0
          %657 = vmatpush2.msra.mxu0 0.0
          %658 = vmatprep.subr.mxu0 0.0
          %659 = vmatpush2.msra.mxu0 0.0
          %660 = vmatprep.subr.mxu0 0.0
          %661 = vmatpush2.msra.mxu0 0.0
          %662 = vmatprep.mubr.f32.mxu0 0.0
          %663 = vmatmul.mubr.f32.gmra.mxu0 %v589
          %v664 = vpop.f32.mrf.mxu0
          %v665 = vadd.f32 0.0, %v664
          %v666 = vpop.f32.mrf.mxu0
          %667 = vmatprep.mubr.f32.mxu0 0.0
          %668 = vmatmul.mubr.f32.gmra.mxu0 %v592
          %v669 = vpop.f32.mrf.mxu0
          %v670 = vadd.f32 0.0, %v669
          %v671 = vpop.f32.mrf.mxu0
          %672 = vdwg.mxu0
          %675 = vrot.lane.b32.xlu0 %v665, 127
          %v676 = vpop.permute.xlu0 %675
          %677 = vrot.lane.b32.xlu0 %v670, 127
          %v678 = vpop.permute.xlu0 %677
          %v681 = vadd.f32 %v665, %v676
          %v682 = vadd.f32 %v670, %v678
          %v683 = vxor.u32 %v681, 2147483648
          %v684 = vxor.u32 %v682, 2147483648
          %v685 = vmul.f32 %v683, 1.442695
          %v686 = vpow.pop %v685
          %v687 = vmul.f32 %v684, 1.442695
          %v688 = vpow.pop %v687
          %v689 = vadd.f32 %v686, 1.0
          %v690 = vadd.f32 %v688, 1.0
          %v691 = vrcp.pop %v689
          %v692 = vmul.f32 1.0, %v691
          %v693 = vrcp.pop %v690
          %v694 = vmul.f32 1.0, %v693
          %695 = vst.msk [vmem:[%s220] sm:$0xff] %vm506, %v692
          %696 = vst.msk [vmem:[%s220 + $0x8] sm:$0xff] %vm506, %v694
        $region48: #{cbam_attention.3} parent=31 // pred_fallthru
          _
        %p697 = scmp.lt.s32.totalorder %s22, 1
        %s698 = scalar_select %p697, %s22, 1
        %s699 = smul.addr %s698, 2
        %s700 = smul.addr %s699, 8
        %s701 = scalar_lea.vmem %s3, %s700
        // Predicated region
        $region49: #{cbam_attention.3} parent=31 // pred_check
          %p702 = pneg %p118
        $region50: #{cbam_attention.3} parent=31 // pred_check_branch
          %704 = sbr.rel (%p702) target = $region52
        $region51: #{cbam_attention.3} parent=31 // pred_region
          _
        $region52: #{cbam_attention.3} parent=31 // pred_fallthru
          _
      $region32: #{cbam_attention.3} parent=5 // pred_fallthru
        _
      %p705 = scmp.le.s32.totalorder 2, %s13
      // Predicated region
      $region53: #{cbam_attention.3} parent=5 // pred_check
        %p706 = pneg %p705
      $region54: #{cbam_attention.3} parent=5 // pred_check_branch
        %708 = sbr.rel (%p706) target = $region56
      $region55: #{cbam_attention.3} parent=5 // pred_region
        %s709 = ssub.s32 %s13, 2
        // Predicated region
        $region57: #{cbam_attention.3} parent=55 // pred_check
          %p710 = pneg %p124
        $region58: #{cbam_attention.3} parent=55 // pred_check_branch
          %712 = sbr.rel (%p710) target = $region60
        $region59: #{cbam_attention.3} parent=55 // pred_region
          %p713 = scmp.lt.s32.totalorder %s24, 1
          %s714 = scalar_select %p713, %s24, 1
          %s715 = smul.addr %s714, 2
          %s716 = smul.addr %s715, 8
          %s717 = scalar_lea.vmem %s3, %s716
        $region60: #{cbam_attention.3} parent=55 // pred_fallthru
          _
      $region56: #{cbam_attention.3} parent=5 // pred_fallthru
        _
    $region6: #{cbam_attention.3} parent=1 // loop_footer
      %s17 = sadd.s32 1, %s13
    $region7: #{cbam_attention.3} parent=1 // loop_footer_branch
      %12 = sbr.rel target = $region3
    $region8: #{cbam_attention.3} parent=1 // loop_exit
      _
    %718 = vsyncpa [#allocation5], 1
    %s719 = scalar_lea.sflag [#allocation5], 1
    %720 = vsyncpa %s719, 1
    %721 = vsyncpa [#allocation7], 1

// kernel: cbam_attention.5
$region0: #{cbam_attention.5}
  #allocation0 [shape = 'u32[]', space=smem, size = 0x4, offset = 0x4, fixed_abs, tag = 'smem constant byte address 0x4 - core index']
  #allocation1 [shape = 'u32[144,128]{1,0:T(1,128)}', space=vmem, size = 0x12000, scoped, tag = 'internal scratch']
  %s0 = inlined_call_operand.vmem [shape: f32[2,16,2048], index: 0, kind: input, shape index: {}]
  %s1 = inlined_call_operand.vmem [shape: f32[2,16,1], index: 1, kind: input, shape index: {}]
  %s2 = inlined_call_operand.vmem [shape: f32[2], index: 2, kind: input, shape index: {}]
  %s3 = inlined_call_operand.vmem [shape: f32[2], index: 3, kind: input, shape index: {}]
  %s4 = inlined_call_operand.hbm [shape: f32[2,16,2048], index: 4, kind: output, shape index: {}]
  %s5 = sld [smem:[#allocation0]]
  $region57: #{cbam_attention.5} parent=0
    _
  %s7 = ssub.s32 1, %s5
  %s8 = scalar_select 0, %s7, %s5
  $region1: #{cbam_attention.5} parent=0
    #allocation2 [shape = 'u8[512]{0}', space=smem, size = 0x200, scoped, tag = 'input window, operand 2, single buffered']
    #allocation3 [shape = 's32[2]{0}', space=sflag, size = 0x8, scoped, tag = 'scoped memory for cbam_attention.5']
    #allocation4 [shape = 's32[2]{0}', space=sflag, size = 0x8, scoped, tag = 'scoped memory for cbam_attention.5']
    #allocation5 [shape = 'u8[512]{0}', space=smem, size = 0x200, scoped, tag = 'input window, operand 3, single buffered']
    #allocation6 [shape = 's32[1]{0}', space=sflag, size = 0x4, scoped, tag = 'scoped memory for cbam_attention.5']
    #allocation7 [shape = 'u8[262144]{0}', space=vmem, size = 0x40000, scoped, tag = 'output window, operand 0']
    %9 = vsyncpa [#allocation4], 0
    %10 = vsyncpa [#allocation6], 0
    %11 = vsyncpa [#allocation3], 0
    %s12 = scalar_lea.sflag [#allocation3], 1
    %13 = vsyncpa %s12, 0
    loop: start=0, step=1, limit=4
    $region2: #{cbam_attention.5} parent=1 // loop_pre_header
      _
    $region3: #{cbam_attention.5} parent=1 // loop_header
      %s15 = sphi 0, %s19
      %p16 = scmp.ge.s32.totalorder %s15, 4
      %s22 = sphi 0, %s34
      %s23 = sphi 0, %s30
      %s24 = sphi 0, %s22
      %s25 = sphi 0, %s23
      %s26 = sphi 0, %s24
      %s27 = sphi 0, %s25
      %s39 = sphi 0, %s41
      %s42 = sphi 0, %s39
      %s43 = sphi 0, %s42
      %s59 = sphi 0, %s43
      %s65 = sphi 0, %s67
      %s68 = sphi 0, %s65
      %s69 = sphi 0, %s68
      %s85 = sphi 0, %s69
      %s89 = sphi 0, %s89
      %s91 = sphi 0, %s89
      %s92 = sphi 0, %s91
      %s106 = sphi 0, %s92
      %s110 = sphi 0, %s110
      %s112 = sphi 0, %s110
      %s113 = sphi 0, %s112
      %s127 = sphi 0, %s113
      %s135 = sphi 0, %s137
      %s138 = sphi 0, %s135
      %s139 = sphi 0, %s138
      %s155 = sphi 0, %s139
    $region4: #{cbam_attention.5} parent=1 // loop_header_branch
      %18 = sbr.rel (%p16) target = $region8
    $region5: #{cbam_attention.5} parent=1 // loop_body
      %s20 = ssub.s32 %s15, 1
      %s21 = ssub.s32 %s15, 2
      %s28 = sadd.s32 1, %s23
      %p29 = scmp.ge.s32.totalorder %s28, 1
      %s30 = scalar_select %p29, 0, %s28
      %s31 = sadd.s32 1, %s22
      %s32 = scalar_select %p29, %s31, %s22
      %p33 = scmp.ge.s32.totalorder %s32, 2
      %s34 = scalar_select %p33, 0, %s32
      %s35 = ssub.s32 %s22, %s34
      %s36 = ssub.s32 %s23, %s30
      %s37 = sor.u32 %s35, %s36
      %p38 = scmp.eq.s32.totalorder %s37, 0
      %s40 = sadd.s32 %s39, 1
      %s41 = scalar_select %p38, %s39, %s40
      %p44 = pneg %p38
      %p45 = scmp.eq.s32.totalorder %s15, 1
      %p46 = por %p44, %p45
      %p47 = scmp.ne.s32.totalorder %s39, %s42
      %p48 = scmp.eq.s32.totalorder %s15, 0
      %p49 = por %p47, %p48
      %p50 = scmp.ne.s32.totalorder %s39, %s42
      %p51 = scmp.eq.s32.totalorder %s20, 1
      %p52 = por %p50, %p51
      %p53 = scmp.ne.s32.totalorder %s42, %s43
      %p54 = scmp.eq.s32.totalorder %s20, 0
      %p55 = por %p53, %p54
      %p56 = scmp.ne.s32.totalorder %s42, %s43
      %p57 = scmp.eq.s32.totalorder %s21, 1
      %p58 = por %p56, %p57
      %p60 = scmp.ne.s32.totalorder %s43, %s59
      %p61 = scmp.eq.s32.totalorder %s21, 0
      %p62 = por %p60, %p61
      %s63 = ssub.s32 %s22, %s34
      %p64 = scmp.eq.s32.totalorder %s63, 0
      %s66 = sadd.s32 %s65, 1
      %s67 = scalar_select %p64, %s65, %s66
      %p70 = pneg %p64
      %p71 = scmp.eq.s32.totalorder %s15, 1
      %p72 = por %p70, %p71
      %p73 = scmp.ne.s32.totalorder %s65, %s68
      %p74 = scmp.eq.s32.totalorder %s15, 0
      %p75 = por %p73, %p74
      %p76 = scmp.ne.s32.totalorder %s65, %s68
      %p77 = scmp.eq.s32.totalorder %s20, 1
      %p78 = por %p76, %p77
      %p79 = scmp.ne.s32.totalorder %s68, %s69
      %p80 = scmp.eq.s32.totalorder %s20, 0
      %p81 = por %p79, %p80
      %p82 = scmp.ne.s32.totalorder %s68, %s69
      %p83 = scmp.eq.s32.totalorder %s21, 1
      %p84 = por %p82, %p83
      %p86 = scmp.ne.s32.totalorder %s69, %s85
      %p87 = scmp.eq.s32.totalorder %s21, 0
      %p88 = por %p86, %p87
      %s90 = sadd.s32 %s89, 1
      %p93 = scmp.eq.s32.totalorder %s15, 1
      %p94 = scmp.ne.s32.totalorder %s89, %s91
      %p95 = scmp.eq.s32.totalorder %s15, 0
      %p96 = por %p94, %p95
      %p97 = scmp.ne.s32.totalorder %s89, %s91
      %p98 = scmp.eq.s32.totalorder %s20, 1
      %p99 = por %p97, %p98
      %p100 = scmp.ne.s32.totalorder %s91, %s92
      %p101 = scmp.eq.s32.totalorder %s20, 0
      %p102 = por %p100, %p101
      %p103 = scmp.ne.s32.totalorder %s91, %s92
      %p104 = scmp.eq.s32.totalorder %s21, 1
      %p105 = por %p103, %p104
      %p107 = scmp.ne.s32.totalorder %s92, %s106
      %p108 = scmp.eq.s32.totalorder %s21, 0
      %p109 = por %p107, %p108
      %s111 = sadd.s32 %s110, 1
      %p114 = scmp.eq.s32.totalorder %s15, 1
      %p115 = scmp.ne.s32.totalorder %s110, %s112
      %p116 = scmp.eq.s32.totalorder %s15, 0
      %p117 = por %p115, %p116
      %p118 = scmp.ne.s32.totalorder %s110, %s112
      %p119 = scmp.eq.s32.totalorder %s20, 1
      %p120 = por %p118, %p119
      %p121 = scmp.ne.s32.totalorder %s112, %s113
      %p122 = scmp.eq.s32.totalorder %s20, 0
      %p123 = por %p121, %p122
      %p124 = scmp.ne.s32.totalorder %s112, %s113
      %p125 = scmp.eq.s32.totalorder %s21, 1
      %p126 = por %p124, %p125
      %p128 = scmp.ne.s32.totalorder %s113, %s127
      %p129 = scmp.eq.s32.totalorder %s21, 0
      %p130 = por %p128, %p129
      %s131 = ssub.s32 %s22, %s34
      %s132 = ssub.s32 %s23, %s30
      %s133 = sor.u32 %s131, %s132
      %p134 = scmp.eq.s32.totalorder %s133, 0
      %s136 = sadd.s32 %s135, 1
      %s137 = scalar_select %p134, %s135, %s136
      %p140 = pneg %p134
      %p141 = scmp.eq.s32.totalorder %s15, 1
      %p142 = por %p140, %p141
      %p143 = scmp.ne.s32.totalorder %s135, %s138
      %p144 = scmp.eq.s32.totalorder %s15, 0
      %p145 = por %p143, %p144
      %p146 = scmp.ne.s32.totalorder %s135, %s138
      %p147 = scmp.eq.s32.totalorder %s20, 1
      %p148 = por %p146, %p147
      %p149 = scmp.ne.s32.totalorder %s138, %s139
      %p150 = scmp.eq.s32.totalorder %s20, 0
      %p151 = por %p149, %p150
      %p152 = scmp.ne.s32.totalorder %s138, %s139
      %p153 = scmp.eq.s32.totalorder %s21, 1
      %p154 = por %p152, %p153
      %p156 = scmp.ne.s32.totalorder %s139, %s155
      %p157 = scmp.eq.s32.totalorder %s21, 0
      %p158 = por %p156, %p157
      %p159 = scmp.le.s32.totalorder 1, %s15
      %p160 = scmp.lt.s32.totalorder %s15, 3
      %p161 = pnand %p159, %p160
      %p162 = pneg %p161
      // Predicated region
      $region9: #{cbam_attention.5} parent=5 // pred_check
        _
      $region10: #{cbam_attention.5} parent=5 // pred_check_branch
        %164 = sbr.rel (%p161) target = $region12
      $region11: #{cbam_attention.5} parent=5 // pred_region
        %s165 = ssub.s32 %s15, 1
        // Predicated region
        $region13: #{cbam_attention.5} parent=11 // pred_check
          %p166 = pneg %p102
        $region14: #{cbam_attention.5} parent=11 // pred_check_branch
          %168 = sbr.rel (%p166) target = $region16
        $region15: #{cbam_attention.5} parent=11 // pred_region
          %s170 = ssub.s32 16, 16
          %171 = vsyncadd [#allocation4], %s170
          %s173 = sshll.u32 %s2, 4
          %s174 = int_to_ptr.vmem [resolvable:$true] %s173
          %176 = dma.vmem_to_smem %s174, 16, [#allocation2], [#allocation4]
        $region16: #{cbam_attention.5} parent=11 // pred_fallthru
          _
        // Predicated region
        $region17: #{cbam_attention.5} parent=11 // pred_check
          %p177 = pneg %p123
        $region18: #{cbam_attention.5} parent=11 // pred_check_branch
          %179 = sbr.rel (%p177) target = $region20
        $region19: #{cbam_attention.5} parent=11 // pred_region
          %s181 = ssub.s32 16, 16
          %182 = vsyncadd [#allocation6], %s181
          %s184 = sshll.u32 %s3, 4
          %s185 = int_to_ptr.vmem [resolvable:$true] %s184
          %187 = dma.vmem_to_smem %s185, 16, [#allocation5], [#allocation6]
        $region20: #{cbam_attention.5} parent=11 // pred_fallthru
          _
      $region12: #{cbam_attention.5} parent=5 // pred_fallthru
        _
      %p188 = scmp.lt.s32.totalorder %s15, 2
      // Predicated region
      $region21: #{cbam_attention.5} parent=5 // pred_check
        %p189 = pneg %p188
      $region22: #{cbam_attention.5} parent=5 // pred_check_branch
        %191 = sbr.rel (%p189) target = $region24
      $region23: #{cbam_attention.5} parent=5 // pred_region
        // Predicated region
        $region25: #{cbam_attention.5} parent=23 // pred_check
          %p192 = pneg %p49
        $region26: #{cbam_attention.5} parent=23 // pred_check_branch
          %194 = sbr.rel (%p192) target = $region28
        $region27: #{cbam_attention.5} parent=23 // pred_region
          %s195 = smul.u32 16, %s23
          %p196 = scmp.lt.s32.totalorder %s22, 1
          %s197 = scalar_select %p196, %s22, 1
          %p198 = scmp.lt.s32.totalorder %s195, 15
          %s199 = scalar_select %p198, %s195, 15
          %s200 = smul.addr %s197, 32
          %s201 = sadd.s32 %s199, %s200
          %s202 = smul.addr %s201, 8
          %s203 = scalar_lea.vmem %s0, %s202
          %s204 = smul.u32 16, %s23
        $region28: #{cbam_attention.5} parent=23 // pred_fallthru
          _
        // Predicated region
        $region29: #{cbam_attention.5} parent=23 // pred_check
          %p205 = pneg %p75
        $region30: #{cbam_attention.5} parent=23 // pred_check_branch
          %207 = sbr.rel (%p205) target = $region32
        $region31: #{cbam_attention.5} parent=23 // pred_region
          %p208 = scmp.lt.s32.totalorder %s22, 1
          %s209 = scalar_select %p208, %s22, 1
          %s210 = smul.addr %s209, 2
          %s211 = smul.addr %s210, 8
          %s212 = scalar_lea.vmem %s1, %s211
        $region32: #{cbam_attention.5} parent=23 // pred_fallthru
          _
      $region24: #{cbam_attention.5} parent=5 // pred_fallthru
        _
      %p213 = scmp.le.s32.totalorder 1, %s15
      %p214 = scmp.lt.s32.totalorder %s15, 3
      %p215 = pnand %p213, %p214
      %p216 = pneg %p215
      // Predicated region
      $region33: #{cbam_attention.5} parent=5 // pred_check
        _
      $region34: #{cbam_attention.5} parent=5 // pred_check_branch
        %218 = sbr.rel (%p215) target = $region36
      $region35: #{cbam_attention.5} parent=5 // pred_region
        %s219 = ssub.s32 %s15, 1
        // Predicated region
        $region37: #{cbam_attention.5} parent=35 // pred_check
          %p220 = pneg %p102
        $region38: #{cbam_attention.5} parent=35 // pred_check_branch
          %222 = sbr.rel (%p220) target = $region40
        $region39: #{cbam_attention.5} parent=35 // pred_region
          %223 = dma.done [#allocation4], 16
        $region40: #{cbam_attention.5} parent=35 // pred_fallthru
          _
        // Predicated region
        $region41: #{cbam_attention.5} parent=35 // pred_check
          %p224 = pneg %p123
        $region42: #{cbam_attention.5} parent=35 // pred_check_branch
          %226 = sbr.rel (%p224) target = $region44
        $region43: #{cbam_attention.5} parent=35 // pred_region
          %227 = dma.done [#allocation6], 16
        $region44: #{cbam_attention.5} parent=35 // pred_fallthru
          _
        %228 = sfence
        %s229 = smul.u32 16, %s25
        %p230 = scmp.lt.s32.totalorder %s24, 1
        %s231 = scalar_select %p230, %s24, 1
        %p232 = scmp.lt.s32.totalorder %s229, 15
        %s233 = scalar_select %p232, %s229, 15
        %s234 = smul.addr %s231, 32
        %s235 = sadd.s32 %s233, %s234
        %s236 = smul.addr %s235, 8
        %s237 = scalar_lea.vmem %s0, %s236
        %p238 = pneg %p55
        %p239 = pneg %p52
        %p240 = scmp.lt.s32.totalorder %s24, 1
        %s241 = scalar_select %p240, %s24, 1
        %s242 = smul.addr %s241, 2
        %s243 = smul.addr %s242, 8
        %s244 = scalar_lea.vmem %s1, %s243
        %p245 = pneg %p81
        %p246 = pneg %p78
        %p247 = pneg %p102
        %p248 = pneg %p99
        %p249 = pneg %p123
        %p250 = pneg %p120
        %p251 = pneg %p151
        %p252 = pneg %p148
        %s253 = sand.u32 %s138, 1
        %s254 = scalar_lea.sflag [#allocation3], %s253
        %s255 = sand.u32 %s138, 1
        %s256 = smul.addr %s255, 256
        %s257 = scalar_lea.vmem [#allocation7], %s256
        %s258 = smul.u32 16, %s25
        %p259 = scmp.lt.s32.totalorder %s24, 1
        %s260 = scalar_select %p259, %s24, 1
        %p261 = scmp.lt.s32.totalorder %s258, 15
        %s262 = scalar_select %p261, %s258, 15
        %s263 = smul.addr %s260, 32
        %s264 = sadd.s32 %s262, %s263
        %s265 = smul.addr %s264, 8
        %s266 = scalar_lea.vmem %s0, %s265
        %s267 = smul.u32 16, %s25
        %p268 = scmp.lt.s32.totalorder %s24, 1
        %s269 = scalar_select %p268, %s24, 1
        %s270 = smul.addr %s269, 2
        %s271 = smul.addr %s270, 8
        %s272 = scalar_lea.vmem %s1, %s271
        %s273 = smul.u32 16, %s25
        %v274 = vld [vmem:[%s272] sm:$0xff]
        %v275 = vld [vmem:[%s272 + $0x8] sm:$0xff]
        %s276 = sld [smem:[#allocation2]]
        %s277 = sld [smem:[#allocation2 + $0x1]]
        %s278 = sld [smem:[#allocation5]]
        %s279 = sld [smem:[#allocation5 + $0x1]]
        %v280 = vld [vmem:[%s266] sm:$0xff]
        %v281 = vld [vmem:[%s266 + $0x8] sm:$0xff]
        %v282 = vld [vmem:[%s266 + $0x10] sm:$0xff]
        %v283 = vld [vmem:[%s266 + $0x18] sm:$0xff]
        %v284 = vld [vmem:[%s266 + $0x80] sm:$0xff]
        %v285 = vld [vmem:[%s266 + $0x88] sm:$0xff]
        %v286 = vld [vmem:[%s266 + $0x90] sm:$0xff]
        %v287 = vld [vmem:[%s266 + $0x98] sm:$0xff]
        %289 = vset.pattern.permute.xlu0 0
        %290 = vperm.xlu0 %289, %v274
        %v291 = vpop.permute.xlu0 %290
        %294 = vset.pattern.permute.xlu0 0
        %295 = vperm.xlu0 %294, %v275
        %v296 = vpop.permute.xlu0 %295
        %v298 = vmul.f32 %v280, %v291
        %v299 = vmul.f32 %v281, %v291
        %v300 = vmul.f32 %v282, %v291
        %v301 = vmul.f32 %v283, %v291
        %v302 = vmul.f32 %v284, %v296
        %v303 = vmul.f32 %v285, %v296
        %v304 = vmul.f32 %v286, %v296
        %v305 = vmul.f32 %v287, %v296
        %v306 = vadd.f32 %v298, %v302
        %v307 = vrot.slane %v306, 4
        %v308 = vadd.f32 %v306, %v307
        %v309 = vrot.slane %v308, 2
        %v310 = vadd.f32 %v308, %v309
        %v311 = vrot.slane %v310, 1
        %v312 = vadd.f32 %v310, %v311
        %v313 = vadd.f32 %v299, %v303
        %v314 = vrot.slane %v313, 4
        %v315 = vadd.f32 %v313, %v314
        %v316 = vrot.slane %v315, 2
        %v317 = vadd.f32 %v315, %v316
        %v318 = vrot.slane %v317, 1
        %v319 = vadd.f32 %v317, %v318
        %v320 = vadd.f32 %v300, %v304
        %v321 = vrot.slane %v320, 4
        %v322 = vadd.f32 %v320, %v321
        %v323 = vrot.slane %v322, 2
        %v324 = vadd.f32 %v322, %v323
        %v325 = vrot.slane %v324, 1
        %v326 = vadd.f32 %v324, %v325
        %v327 = vadd.f32 %v301, %v305
        %v328 = vrot.slane %v327, 4
        %v329 = vadd.f32 %v327, %v328
        %v330 = vrot.slane %v329, 2
        %v331 = vadd.f32 %v329, %v330
        %v332 = vrot.slane %v331, 1
        %v333 = vadd.f32 %v331, %v332
        %v334 = vmul.f32 %v312, 0.0625
        %v335 = vmul.f32 %v319, 0.0625
        %v336 = vmul.f32 %v326, 0.0625
        %v337 = vmul.f32 %v333, 0.0625
        %v338 = vmax.f32 %v298, %v302
        %v339 = vrot.slane %v338, 4
        %v340 = vmax.f32 %v338, %v339
        %v341 = vrot.slane %v340, 2
        %v342 = vmax.f32 %v340, %v341
        %v343 = vrot.slane %v342, 1
        %v344 = vmax.f32 %v342, %v343
        %v345 = vmax.f32 %v299, %v303
        %v346 = vrot.slane %v345, 4
        %v347 = vmax.f32 %v345, %v346
        %v348 = vrot.slane %v347, 2
        %v349 = vmax.f32 %v347, %v348
        %v350 = vrot.slane %v349, 1
        %v351 = vmax.f32 %v349, %v350
        %v352 = vmax.f32 %v300, %v304
        %v353 = vrot.slane %v352, 4
        %v354 = vmax.f32 %v352, %v353
        %v355 = vrot.slane %v354, 2
        %v356 = vmax.f32 %v354, %v355
        %v357 = vrot.slane %v356, 1
        %v358 = vmax.f32 %v356, %v357
        %v359 = vmax.f32 %v301, %v305
        %v360 = vrot.slane %v359, 4
        %v361 = vmax.f32 %v359, %v360
        %v362 = vrot.slane %v361, 2
        %v363 = vmax.f32 %v361, %v362
        %v364 = vrot.slane %v363, 1
        %v365 = vmax.f32 %v363, %v364
        %v366 = vstv %s276
        %v367 = vmul.f32 %v366, %v344
        %v368 = vmul.f32 %v366, %v351
        %v369 = vmul.f32 %v366, %v358
        %v370 = vmul.f32 %v366, %v365
        %v371 = vstv %s277
        %v372 = vmul.f32 %v371, %v334
        %v373 = vmul.f32 %v371, %v335
        %v374 = vmul.f32 %v371, %v336
        %v375 = vmul.f32 %v371, %v337
        %v376 = vadd.f32 %v367, %v372
        %v377 = vadd.f32 %v368, %v373
        %v378 = vadd.f32 %v369, %v374
        %v379 = vadd.f32 %v370, %v375
        %v380 = vstv %s278
        %v381 = vmul.f32 %v376, %v380
        %v382 = vmul.f32 %v377, %v380
        %v383 = vmul.f32 %v378, %v380
        %v384 = vmul.f32 %v379, %v380
        %v385 = vstv %s279
        %v386 = vadd.f32 %v381, %v385
        %v387 = vadd.f32 %v382, %v385
        %v388 = vadd.f32 %v383, %v385
        %v389 = vadd.f32 %v384, %v385
        %v390 = vmax.f32 %v386, 0.0
        %v391 = vmax.f32 %v387, 0.0
        %v392 = vmax.f32 %v388, 0.0
        %v393 = vmax.f32 %v389, 0.0
        %v394 = vxor.u32 %v390, 2147483648
        %v395 = vxor.u32 %v391, 2147483648
        %v396 = vxor.u32 %v392, 2147483648
        %v397 = vxor.u32 %v393, 2147483648
        %v398 = vmul.f32 %v394, 1.442695
        %v399 = vpow.pop %v398
        %v400 = vmul.f32 %v395, 1.442695
        %v401 = vpow.pop %v400
        %v402 = vmul.f32 %v396, 1.442695
        %v403 = vpow.pop %v402
        %v404 = vmul.f32 %v397, 1.442695
        %v405 = vpow.pop %v404
        %v406 = vadd.f32 %v399, 1.0
        %v407 = vadd.f32 %v401, 1.0
        %v408 = vadd.f32 %v403, 1.0
        %v409 = vadd.f32 %v405, 1.0
        %v410 = vrcp.pop %v406
        %v411 = vmul.f32 1.0, %v410
        %v412 = vrcp.pop %v407
        %v413 = vmul.f32 1.0, %v412
        %v414 = vrcp.pop %v408
        %v415 = vmul.f32 1.0, %v414
        %v416 = vrcp.pop %v409
        %v417 = vmul.f32 1.0, %v416
        %v418 = vmul.f32 %v298, %v411
        %v419 = vmul.f32 %v299, %v413
        %v420 = vmul.f32 %v300, %v415
        %v421 = vmul.f32 %v301, %v417
        %v422 = vmul.f32 %v302, %v411
        %v423 = vmul.f32 %v303, %v413
        %v424 = vmul.f32 %v304, %v415
        %v425 = vmul.f32 %v305, %v417
        %426 = vst [vmem:[%s257] sm:$0xff] %v418
        %427 = vst [vmem:[%s257 + $0x8] sm:$0xff] %v419
        %428 = vst [vmem:[%s257 + $0x10] sm:$0xff] %v420
        %429 = vst [vmem:[%s257 + $0x18] sm:$0xff] %v421
        %430 = vst [vmem:[%s257 + $0x80] sm:$0xff] %v422
        %431 = vst [vmem:[%s257 + $0x88] sm:$0xff] %v423
        %432 = vst [vmem:[%s257 + $0x90] sm:$0xff] %v424
        %433 = vst [vmem:[%s257 + $0x98] sm:$0xff] %v425
        %v434 = vld [vmem:[%s266 + $0x20] sm:$0xff]
        %v435 = vld [vmem:[%s266 + $0x28] sm:$0xff]
        %v436 = vld [vmem:[%s266 + $0x30] sm:$0xff]
        %v437 = vld [vmem:[%s266 + $0x38] sm:$0xff]
        %v438 = vld [vmem:[%s266 + $0xa0] sm:$0xff]
        %v439 = vld [vmem:[%s266 + $0xa8] sm:$0xff]
        %v440 = vld [vmem:[%s266 + $0xb0] sm:$0xff]
        %v441 = vld [vmem:[%s266 + $0xb8] sm:$0xff]
        %v442 = vmul.f32 %v434, %v291
        %v443 = vmul.f32 %v435, %v291
        %v444 = vmul.f32 %v436, %v291
        %v445 = vmul.f32 %v437, %v291
        %v446 = vmul.f32 %v438, %v296
        %v447 = vmul.f32 %v439, %v296
        %v448 = vmul.f32 %v440, %v296
        %v449 = vmul.f32 %v441, %v296
        %v450 = vadd.f32 %v442, %v446
        %v451 = vrot.slane %v450, 4
        %v452 = vadd.f32 %v450, %v451
        %v453 = vrot.slane %v452, 2
        %v454 = vadd.f32 %v452, %v453
        %v455 = vrot.slane %v454, 1
        %v456 = vadd.f32 %v454, %v455
        %v457 = vadd.f32 %v443, %v447
        %v458 = vrot.slane %v457, 4
        %v459 = vadd.f32 %v457, %v458
        %v460 = vrot.slane %v459, 2
        %v461 = vadd.f32 %v459, %v460
        %v462 = vrot.slane %v461, 1
        %v463 = vadd.f32 %v461, %v462
        %v464 = vadd.f32 %v444, %v448
        %v465 = vrot.slane %v464, 4
        %v466 = vadd.f32 %v464, %v465
        %v467 = vrot.slane %v466, 2
        %v468 = vadd.f32 %v466, %v467
        %v469 = vrot.slane %v468, 1
        %v470 = vadd.f32 %v468, %v469
        %v471 = vadd.f32 %v445, %v449
        %v472 = vrot.slane %v471, 4
        %v473 = vadd.f32 %v471, %v472
        %v474 = vrot.slane %v473, 2
        %v475 = vadd.f32 %v473, %v474
        %v476 = vrot.slane %v475, 1
        %v477 = vadd.f32 %v475, %v476
        %v478 = vmul.f32 %v456, 0.0625
        %v479 = vmul.f32 %v463, 0.0625
        %v480 = vmul.f32 %v470, 0.0625
        %v481 = vmul.f32 %v477, 0.0625
        %v482 = vmax.f32 %v442, %v446
        %v483 = vrot.slane %v482, 4
        %v484 = vmax.f32 %v482, %v483
        %v485 = vrot.slane %v484, 2
        %v486 = vmax.f32 %v484, %v485
        %v487 = vrot.slane %v486, 1
        %v488 = vmax.f32 %v486, %v487
        %v489 = vmax.f32 %v443, %v447
        %v490 = vrot.slane %v489, 4
        %v491 = vmax.f32 %v489, %v490
        %v492 = vrot.slane %v491, 2
        %v493 = vmax.f32 %v491, %v492
        %v494 = vrot.slane %v493, 1
        %v495 = vmax.f32 %v493, %v494
        %v496 = vmax.f32 %v444, %v448
        %v497 = vrot.slane %v496, 4
        %v498 = vmax.f32 %v496, %v497
        %v499 = vrot.slane %v498, 2
        %v500 = vmax.f32 %v498, %v499
        %v501 = vrot.slane %v500, 1
        %v502 = vmax.f32 %v500, %v501
        %v503 = vmax.f32 %v445, %v449
        %v504 = vrot.slane %v503, 4
        %v505 = vmax.f32 %v503, %v504
        %v506 = vrot.slane %v505, 2
        %v507 = vmax.f32 %v505, %v506
        %v508 = vrot.slane %v507, 1
        %v509 = vmax.f32 %v507, %v508
        %v510 = vmul.f32 %v366, %v488
        %v511 = vmul.f32 %v366, %v495
        %v512 = vmul.f32 %v366, %v502
        %v513 = vmul.f32 %v366, %v509
        %v514 = vmul.f32 %v371, %v478
        %v515 = vmul.f32 %v371, %v479
        %v516 = vmul.f32 %v371, %v480
        %v517 = vmul.f32 %v371, %v481
        %v518 = vadd.f32 %v510, %v514
        %v519 = vadd.f32 %v511, %v515
        %v520 = vadd.f32 %v512, %v516
        %v521 = vadd.f32 %v513, %v517
        %v522 = vmul.f32 %v518, %v380
        %v523 = vmul.f32 %v519, %v380
        %v524 = vmul.f32 %v520, %v380
        %v525 = vmul.f32 %v521, %v380
        %v526 = vadd.f32 %v522, %v385
        %v527 = vadd.f32 %v523, %v385
        %v528 = vadd.f32 %v524, %v385
        %v529 = vadd.f32 %v525, %v385
        %v530 = vmax.f32 %v526, 0.0
        %v531 = vmax.f32 %v527, 0.0
        %v532 = vmax.f32 %v528, 0.0
        %v533 = vmax.f32 %v529, 0.0
        %v534 = vxor.u32 %v530, 2147483648
        %v535 = vxor.u32 %v531, 2147483648
        %v536 = vxor.u32 %v532, 2147483648
        %v537 = vxor.u32 %v533, 2147483648
        %v538 = vmul.f32 %v534, 1.442695
        %v539 = vpow.pop %v538
        %v540 = vmul.f32 %v535, 1.442695
        %v541 = vpow.pop %v540
        %v542 = vmul.f32 %v536, 1.442695
        %v543 = vpow.pop %v542
        %v544 = vmul.f32 %v537, 1.442695
        %v545 = vpow.pop %v544
        %v546 = vadd.f32 %v539, 1.0
        %v547 = vadd.f32 %v541, 1.0
        %v548 = vadd.f32 %v543, 1.0
        %v549 = vadd.f32 %v545, 1.0
        %v550 = vrcp.pop %v546
        %v551 = vmul.f32 1.0, %v550
        %v552 = vrcp.pop %v547
        %v553 = vmul.f32 1.0, %v552
        %v554 = vrcp.pop %v548
        %v555 = vmul.f32 1.0, %v554
        %v556 = vrcp.pop %v549
        %v557 = vmul.f32 1.0, %v556
        %v558 = vmul.f32 %v442, %v551
        %v559 = vmul.f32 %v443, %v553
        %v560 = vmul.f32 %v444, %v555
        %v561 = vmul.f32 %v445, %v557
        %v562 = vmul.f32 %v446, %v551
        %v563 = vmul.f32 %v447, %v553
        %v564 = vmul.f32 %v448, %v555
        %v565 = vmul.f32 %v449, %v557
        %566 = vst [vmem:[%s257 + $0x20] sm:$0xff] %v558
        %567 = vst [vmem:[%s257 + $0x28] sm:$0xff] %v559
        %568 = vst [vmem:[%s257 + $0x30] sm:$0xff] %v560
        %569 = vst [vmem:[%s257 + $0x38] sm:$0xff] %v561
        %570 = vst [vmem:[%s257 + $0xa0] sm:$0xff] %v562
        %571 = vst [vmem:[%s257 + $0xa8] sm:$0xff] %v563
        %572 = vst [vmem:[%s257 + $0xb0] sm:$0xff] %v564
        %573 = vst [vmem:[%s257 + $0xb8] sm:$0xff] %v565
        %v574 = vld [vmem:[%s266 + $0x40] sm:$0xff]
        %v575 = vld [vmem:[%s266 + $0x48] sm:$0xff]
        %v576 = vld [vmem:[%s266 + $0x50] sm:$0xff]
        %v577 = vld [vmem:[%s266 + $0x58] sm:$0xff]
        %v578 = vld [vmem:[%s266 + $0xc0] sm:$0xff]
        %v579 = vld [vmem:[%s266 + $0xc8] sm:$0xff]
        %v580 = vld [vmem:[%s266 + $0xd0] sm:$0xff]
        %v581 = vld [vmem:[%s266 + $0xd8] sm:$0xff]
        %v582 = vmul.f32 %v574, %v291
        %v583 = vmul.f32 %v575, %v291
        %v584 = vmul.f32 %v576, %v291
        %v585 = vmul.f32 %v577, %v291
        %v586 = vmul.f32 %v578, %v296
        %v587 = vmul.f32 %v579, %v296
        %v588 = vmul.f32 %v580, %v296
        %v589 = vmul.f32 %v581, %v296
        %v590 = vadd.f32 %v582, %v586
        %v591 = vrot.slane %v590, 4
        %v592 = vadd.f32 %v590, %v591
        %v593 = vrot.slane %v592, 2
        %v594 = vadd.f32 %v592, %v593
        %v595 = vrot.slane %v594, 1
        %v596 = vadd.f32 %v594, %v595
        %v597 = vadd.f32 %v583, %v587
        %v598 = vrot.slane %v597, 4
        %v599 = vadd.f32 %v597, %v598
        %v600 = vrot.slane %v599, 2
        %v601 = vadd.f32 %v599, %v600
        %v602 = vrot.slane %v601, 1
        %v603 = vadd.f32 %v601, %v602
        %v604 = vadd.f32 %v584, %v588
        %v605 = vrot.slane %v604, 4
        %v606 = vadd.f32 %v604, %v605
        %v607 = vrot.slane %v606, 2
        %v608 = vadd.f32 %v606, %v607
        %v609 = vrot.slane %v608, 1
        %v610 = vadd.f32 %v608, %v609
        %v611 = vadd.f32 %v585, %v589
        %v612 = vrot.slane %v611, 4
        %v613 = vadd.f32 %v611, %v612
        %v614 = vrot.slane %v613, 2
        %v615 = vadd.f32 %v613, %v614
        %v616 = vrot.slane %v615, 1
        %v617 = vadd.f32 %v615, %v616
        %v618 = vmul.f32 %v596, 0.0625
        %v619 = vmul.f32 %v603, 0.0625
        %v620 = vmul.f32 %v610, 0.0625
        %v621 = vmul.f32 %v617, 0.0625
        %v622 = vmax.f32 %v582, %v586
        %v623 = vrot.slane %v622, 4
        %v624 = vmax.f32 %v622, %v623
        %v625 = vrot.slane %v624, 2
        %v626 = vmax.f32 %v624, %v625
        %v627 = vrot.slane %v626, 1
        %v628 = vmax.f32 %v626, %v627
        %v629 = vmax.f32 %v583, %v587
        %v630 = vrot.slane %v629, 4
        %v631 = vmax.f32 %v629, %v630
        %v632 = vrot.slane %v631, 2
        %v633 = vmax.f32 %v631, %v632
        %v634 = vrot.slane %v633, 1
        %v635 = vmax.f32 %v633, %v634
        %v636 = vmax.f32 %v584, %v588
        %v637 = vrot.slane %v636, 4
        %v638 = vmax.f32 %v636, %v637
        %v639 = vrot.slane %v638, 2
        %v640 = vmax.f32 %v638, %v639
        %v641 = vrot.slane %v640, 1
        %v642 = vmax.f32 %v640, %v641
        %v643 = vmax.f32 %v585, %v589
        %v644 = vrot.slane %v643, 4
        %v645 = vmax.f32 %v643, %v644
        %v646 = vrot.slane %v645, 2
        %v647 = vmax.f32 %v645, %v646
        %v648 = vrot.slane %v647, 1
        %v649 = vmax.f32 %v647, %v648
        %v650 = vmul.f32 %v366, %v628
        %v651 = vmul.f32 %v366, %v635
        %v652 = vmul.f32 %v366, %v642
        %v653 = vmul.f32 %v366, %v649
        %v654 = vmul.f32 %v371, %v618
        %v655 = vmul.f32 %v371, %v619
        %v656 = vmul.f32 %v371, %v620
        %v657 = vmul.f32 %v371, %v621
        %v658 = vadd.f32 %v650, %v654
        %v659 = vadd.f32 %v651, %v655
        %v660 = vadd.f32 %v652, %v656
        %v661 = vadd.f32 %v653, %v657
        %v662 = vmul.f32 %v658, %v380
        %v663 = vmul.f32 %v659, %v380
        %v664 = vmul.f32 %v660, %v380
        %v665 = vmul.f32 %v661, %v380
        %v666 = vadd.f32 %v662, %v385
        %v667 = vadd.f32 %v663, %v385
        %v668 = vadd.f32 %v664, %v385
        %v669 = vadd.f32 %v665, %v385
        %v670 = vmax.f32 %v666, 0.0
        %v671 = vmax.f32 %v667, 0.0
        %v672 = vmax.f32 %v668, 0.0
        %v673 = vmax.f32 %v669, 0.0
        %v674 = vxor.u32 %v670, 2147483648
        %v675 = vxor.u32 %v671, 2147483648
        %v676 = vxor.u32 %v672, 2147483648
        %v677 = vxor.u32 %v673, 2147483648
        %v678 = vmul.f32 %v674, 1.442695
        %v679 = vpow.pop %v678
        %v680 = vmul.f32 %v675, 1.442695
        %v681 = vpow.pop %v680
        %v682 = vmul.f32 %v676, 1.442695
        %v683 = vpow.pop %v682
        %v684 = vmul.f32 %v677, 1.442695
        %v685 = vpow.pop %v684
        %v686 = vadd.f32 %v679, 1.0
        %v687 = vadd.f32 %v681, 1.0
        %v688 = vadd.f32 %v683, 1.0
        %v689 = vadd.f32 %v685, 1.0
        %v690 = vrcp.pop %v686
        %v691 = vmul.f32 1.0, %v690
        %v692 = vrcp.pop %v687
        %v693 = vmul.f32 1.0, %v692
        %v694 = vrcp.pop %v688
        %v695 = vmul.f32 1.0, %v694
        %v696 = vrcp.pop %v689
        %v697 = vmul.f32 1.0, %v696
        %v698 = vmul.f32 %v582, %v691
        %v699 = vmul.f32 %v583, %v693
        %v700 = vmul.f32 %v584, %v695
        %v701 = vmul.f32 %v585, %v697
        %v702 = vmul.f32 %v586, %v691
        %v703 = vmul.f32 %v587, %v693
        %v704 = vmul.f32 %v588, %v695
        %v705 = vmul.f32 %v589, %v697
        %706 = vst [vmem:[%s257 + $0x40] sm:$0xff] %v698
        %707 = vst [vmem:[%s257 + $0x48] sm:$0xff] %v699
        %708 = vst [vmem:[%s257 + $0x50] sm:$0xff] %v700
        %709 = vst [vmem:[%s257 + $0x58] sm:$0xff] %v701
        %710 = vst [vmem:[%s257 + $0xc0] sm:$0xff] %v702
        %711 = vst [vmem:[%s257 + $0xc8] sm:$0xff] %v703
        %712 = vst [vmem:[%s257 + $0xd0] sm:$0xff] %v704
        %713 = vst [vmem:[%s257 + $0xd8] sm:$0xff] %v705
        %v714 = vld [vmem:[%s266 + $0x60] sm:$0xff]
        %v715 = vld [vmem:[%s266 + $0x68] sm:$0xff]
        %v716 = vld [vmem:[%s266 + $0x70] sm:$0xff]
        %v717 = vld [vmem:[%s266 + $0x78] sm:$0xff]
        %v718 = vld [vmem:[%s266 + $0xe0] sm:$0xff]
        %v719 = vld [vmem:[%s266 + $0xe8] sm:$0xff]
        %v720 = vld [vmem:[%s266 + $0xf0] sm:$0xff]
        %v721 = vld [vmem:[%s266 + $0xf8] sm:$0xff]
        %v722 = vmul.f32 %v714, %v291
        %v723 = vmul.f32 %v715, %v291
        %v724 = vmul.f32 %v716, %v291
        %v725 = vmul.f32 %v717, %v291
        %v726 = vmul.f32 %v718, %v296
        %v727 = vmul.f32 %v719, %v296
        %v728 = vmul.f32 %v720, %v296
        %v729 = vmul.f32 %v721, %v296
        %v730 = vadd.f32 %v722, %v726
        %v731 = vrot.slane %v730, 4
        %v732 = vadd.f32 %v730, %v731
        %v733 = vrot.slane %v732, 2
        %v734 = vadd.f32 %v732, %v733
        %v735 = vrot.slane %v734, 1
        %v736 = vadd.f32 %v734, %v735
        %v737 = vadd.f32 %v723, %v727
        %v738 = vrot.slane %v737, 4
        %v739 = vadd.f32 %v737, %v738
        %v740 = vrot.slane %v739, 2
        %v741 = vadd.f32 %v739, %v740
        %v742 = vrot.slane %v741, 1
        %v743 = vadd.f32 %v741, %v742
        %v744 = vadd.f32 %v724, %v728
        %v745 = vrot.slane %v744, 4
        %v746 = vadd.f32 %v744, %v745
        %v747 = vrot.slane %v746, 2
        %v748 = vadd.f32 %v746, %v747
        %v749 = vrot.slane %v748, 1
        %v750 = vadd.f32 %v748, %v749
        %v751 = vadd.f32 %v725, %v729
        %v752 = vrot.slane %v751, 4
        %v753 = vadd.f32 %v751, %v752
        %v754 = vrot.slane %v753, 2
        %v755 = vadd.f32 %v753, %v754
        %v756 = vrot.slane %v755, 1
        %v757 = vadd.f32 %v755, %v756
        %v758 = vmul.f32 %v736, 0.0625
        %v759 = vmul.f32 %v743, 0.0625
        %v760 = vmul.f32 %v750, 0.0625
        %v761 = vmul.f32 %v757, 0.0625
        %v762 = vmax.f32 %v722, %v726
        %v763 = vrot.slane %v762, 4
        %v764 = vmax.f32 %v762, %v763
        %v765 = vrot.slane %v764, 2
        %v766 = vmax.f32 %v764, %v765
        %v767 = vrot.slane %v766, 1
        %v768 = vmax.f32 %v766, %v767
        %v769 = vmax.f32 %v723, %v727
        %v770 = vrot.slane %v769, 4
        %v771 = vmax.f32 %v769, %v770
        %v772 = vrot.slane %v771, 2
        %v773 = vmax.f32 %v771, %v772
        %v774 = vrot.slane %v773, 1
        %v775 = vmax.f32 %v773, %v774
        %v776 = vmax.f32 %v724, %v728
        %v777 = vrot.slane %v776, 4
        %v778 = vmax.f32 %v776, %v777
        %v779 = vrot.slane %v778, 2
        %v780 = vmax.f32 %v778, %v779
        %v781 = vrot.slane %v780, 1
        %v782 = vmax.f32 %v780, %v781
        %v783 = vmax.f32 %v725, %v729
        %v784 = vrot.slane %v783, 4
        %v785 = vmax.f32 %v783, %v784
        %v786 = vrot.slane %v785, 2
        %v787 = vmax.f32 %v785, %v786
        %v788 = vrot.slane %v787, 1
        %v789 = vmax.f32 %v787, %v788
        %v790 = vmul.f32 %v366, %v768
        %v791 = vmul.f32 %v366, %v775
        %v792 = vmul.f32 %v366, %v782
        %v793 = vmul.f32 %v366, %v789
        %v794 = vmul.f32 %v371, %v758
        %v795 = vmul.f32 %v371, %v759
        %v796 = vmul.f32 %v371, %v760
        %v797 = vmul.f32 %v371, %v761
        %v798 = vadd.f32 %v790, %v794
        %v799 = vadd.f32 %v791, %v795
        %v800 = vadd.f32 %v792, %v796
        %v801 = vadd.f32 %v793, %v797
        %v802 = vmul.f32 %v798, %v380
        %v803 = vmul.f32 %v799, %v380
        %v804 = vmul.f32 %v800, %v380
        %v805 = vmul.f32 %v801, %v380
        %v806 = vadd.f32 %v802, %v385
        %v807 = vadd.f32 %v803, %v385
        %v808 = vadd.f32 %v804, %v385
        %v809 = vadd.f32 %v805, %v385
        %v810 = vmax.f32 %v806, 0.0
        %v811 = vmax.f32 %v807, 0.0
        %v812 = vmax.f32 %v808, 0.0
        %v813 = vmax.f32 %v809, 0.0
        %v814 = vxor.u32 %v810, 2147483648
        %v815 = vxor.u32 %v811, 2147483648
        %v816 = vxor.u32 %v812, 2147483648
        %v817 = vxor.u32 %v813, 2147483648
        %v818 = vmul.f32 %v814, 1.442695
        %v819 = vpow.pop %v818
        %v820 = vmul.f32 %v815, 1.442695
        %v821 = vpow.pop %v820
        %v822 = vmul.f32 %v816, 1.442695
        %v823 = vpow.pop %v822
        %v824 = vmul.f32 %v817, 1.442695
        %v825 = vpow.pop %v824
        %v826 = vadd.f32 %v819, 1.0
        %v827 = vadd.f32 %v821, 1.0
        %v828 = vadd.f32 %v823, 1.0
        %v829 = vadd.f32 %v825, 1.0
        %v830 = vrcp.pop %v826
        %v831 = vmul.f32 1.0, %v830
        %v832 = vrcp.pop %v827
        %v833 = vmul.f32 1.0, %v832
        %v834 = vrcp.pop %v828
        %v835 = vmul.f32 1.0, %v834
        %v836 = vrcp.pop %v829
        %v837 = vmul.f32 1.0, %v836
        %v838 = vmul.f32 %v722, %v831
        %v839 = vmul.f32 %v723, %v833
        %v840 = vmul.f32 %v724, %v835
        %v841 = vmul.f32 %v725, %v837
        %v842 = vmul.f32 %v726, %v831
        %v843 = vmul.f32 %v727, %v833
        %v844 = vmul.f32 %v728, %v835
        %v845 = vmul.f32 %v729, %v837
        %846 = vst [vmem:[%s257 + $0x60] sm:$0xff] %v838
        %847 = vst [vmem:[%s257 + $0x68] sm:$0xff] %v839
        %848 = vst [vmem:[%s257 + $0x70] sm:$0xff] %v840
        %849 = vst [vmem:[%s257 + $0x78] sm:$0xff] %v841
        %850 = vst [vmem:[%s257 + $0xe0] sm:$0xff] %v842
        %851 = vst [vmem:[%s257 + $0xe8] sm:$0xff] %v843
        %852 = vst [vmem:[%s257 + $0xf0] sm:$0xff] %v844
        %853 = vst [vmem:[%s257 + $0xf8] sm:$0xff] %v845
        %s854 = sand.u32 %s138, 1
        %s855 = scalar_lea.sflag [#allocation3], %s854
        %s856 = sand.u32 %s138, 1
        %s857 = smul.addr %s856, 256
        %s858 = scalar_lea.vmem [#allocation7], %s857
        // Predicated region
        $region45: #{cbam_attention.5} parent=35 // pred_check
          %p859 = pneg %p148
        $region46: #{cbam_attention.5} parent=35 // pred_check_branch
          %861 = sbr.rel (%p859) target = $region48
        $region47: #{cbam_attention.5} parent=35 // pred_region
          %s862 = smul.u32 16, %s25
          %s864 = ssub.s32 4096, 4096
          %865 = vsyncadd %s855, %s864
          %s866 = smul.addr %s24, 32
          %s867 = sadd.s32 %s862, %s866
          %s868 = smul.addr %s867, 128
          %s869 = scalar_lea.hbm %s4, %s868
          %s870 = sshll.u32 %s858, 4
          %s871 = int_to_ptr.vmem [resolvable:$true] %s870
          %876 = dma.vmem_to_hbm [thread:$0]  %s871, 4096, %s869, %s855, 2048, 2048, 128
        $region48: #{cbam_attention.5} parent=35 // pred_fallthru
          _
      $region36: #{cbam_attention.5} parent=5 // pred_fallthru
        _
      %p877 = scmp.le.s32.totalorder 2, %s15
      // Predicated region
      $region49: #{cbam_attention.5} parent=5 // pred_check
        %p878 = pneg %p877
      $region50: #{cbam_attention.5} parent=5 // pred_check_branch
        %880 = sbr.rel (%p878) target = $region52
      $region51: #{cbam_attention.5} parent=5 // pred_region
        %s881 = ssub.s32 %s15, 2
        // Predicated region
        $region53: #{cbam_attention.5} parent=51 // pred_check
          %p882 = pneg %p154
        $region54: #{cbam_attention.5} parent=51 // pred_check_branch
          %884 = sbr.rel (%p882) target = $region56
        $region55: #{cbam_attention.5} parent=51 // pred_region
          %s885 = sand.u32 %s139, 1
          %s886 = scalar_lea.sflag [#allocation3], %s885
          %s887 = sand.u32 %s139, 1
          %s888 = smul.addr %s887, 256
          %s889 = scalar_lea.vmem [#allocation7], %s888
          %890 = dma.done %s886, 4096
        $region56: #{cbam_attention.5} parent=51 // pred_fallthru
          _
      $region52: #{cbam_attention.5} parent=5 // pred_fallthru
        _
    $region6: #{cbam_attention.5} parent=1 // loop_footer
      %s19 = sadd.s32 1, %s15
    $region7: #{cbam_attention.5} parent=1 // loop_footer_branch
      %14 = sbr.rel target = $region3
    $region8: #{cbam_attention.5} parent=1 // loop_exit
      _
    %891 = vsyncpa [#allocation3], 1
    %s892 = scalar_lea.sflag [#allocation3], 1
    %893 = vsyncpa %s892, 1
    %894 = vsyncpa [#allocation4], 1
    %s895 = scalar_lea.sflag [#allocation4], 1
    %896 = vsyncpa %s895, 1
    %897 = vsyncpa [#allocation6], 1

</llo_original>
